<compile_context>
chip_gen: v7x
topology: tpu7x:2x2x1
jax: 0.10.0
libtpu: 0.0.40
codegen_flags: <defaults>
</compile_context>

<pallas_src>
import functools

import jax
import jax.numpy as jnp
from jax.experimental import pallas as pl
from jax.experimental.pallas import tpu as pltpu


def _mha_kernel(x_ref, wqkv_ref, bqkv_ref, o_ref, *, n_heads, dim_heads,
                matmul_dtype, head_batched):
    bt, n, d_model = x_ref.shape

    # ---- Fused Q/K/V projection: one (Bt*N, D) x (D, 3D) MXU matmul. ----
    # The 1/sqrt(dim_heads) softmax scale is folded into W_q / b_q on the host.
    x = x_ref[...].reshape(bt * n, d_model)
    qkv = jnp.dot(x, wqkv_ref[...], preferred_element_type=jnp.float32)
    qkv = qkv + bqkv_ref[...]                     # bias broadcast from (1, 3D)
    if matmul_dtype is not None:
        qkv = qkv.astype(matmul_dtype)            # single cast covers Q, K, V
    qkv = qkv.reshape(bt, n, 3 * d_model)

    approx = matmul_dtype is not None             # exact recip on the f32 path

    if head_batched:
        # Head-batched attention: one QK^T dot_general, one softmax reduction
        # chain / exp stream, one PV dot_general for all heads.  q/k/v keep the
        # head axis next to dim_heads so no operand transpose is needed.
        q = qkv[:, :, :d_model].reshape(bt, n, n_heads, dim_heads)
        k = qkv[:, :, d_model:2 * d_model].reshape(bt, n, n_heads, dim_heads)
        v = qkv[:, :, 2 * d_model:].reshape(bt, n, n_heads, dim_heads)

        logits = jnp.einsum('bnhd,bmhd->bhnm', q, k,
                            preferred_element_type=jnp.float32)
        # Softmax kept in f32 on all generations (v5e VPU/EUP have no bf16).
        # TODO(synk): on v6e/v7x the EUP exp stream is the binding slot at ViT
        # scale — compute exp()/probs in bf16 (f32 max-subtract, f32 denom sum)
        # once accuracy is validated per generation.
        logits = logits - jnp.max(logits, axis=-1, keepdims=True)
        p = jnp.exp(logits)
        attn = p * pl.reciprocal(jnp.sum(p, axis=-1, keepdims=True),
                                 approx=approx)
        if matmul_dtype is not None:
            attn = attn.astype(matmul_dtype)
        out4 = jnp.einsum('bhnm,bmhd->bhnd', attn, v,
                          preferred_element_type=jnp.float32)  # (bt, H, N, d)
        # 'b h n d -> b n (h d)': cheap major-dim slices + ONE lane-axis concat,
        # then a single lane-dense full-tile store.
        out = jnp.concatenate([out4[:, h] for h in range(n_heads)], axis=-1)
    else:
        # Fallback path (known-good lowering on all generations): per-head loop.
        head_outs = []
        for h in range(n_heads):
            lo = h * dim_heads
            q_h = qkv[:, :, lo:lo + dim_heads]
            k_h = qkv[:, :, d_model + lo:d_model + lo + dim_heads]
            v_h = qkv[:, :, 2 * d_model + lo:2 * d_model + lo + dim_heads]
            logits = jnp.einsum('bnd,bmd->bnm', q_h, k_h,
                                preferred_element_type=jnp.float32)
            logits = logits - jnp.max(logits, axis=-1, keepdims=True)
            p = jnp.exp(logits)
            a = p * pl.reciprocal(jnp.sum(p, axis=-1, keepdims=True),
                                  approx=approx)
            if matmul_dtype is not None:
                a = a.astype(matmul_dtype)
            head_outs.append(jnp.einsum('bnm,bmd->bnd', a, v_h,
                                        preferred_element_type=jnp.float32))
        out = jnp.concatenate(head_outs, axis=-1)

    o_ref[...] = out.astype(o_ref.dtype)


def _pick_batch_block(batch, seq, target_rows=256, min_rows=128):
    """Batch elements per grid step.

    Prefers >=2 grid steps (v7x shards the "parallel" axis over its 2 TCs)
    while feeding the fused projection with >= target_rows rows (v6e/v7x MXUs
    are 2x256^2).  Collapses to a single step only when B*N is truly tiny and
    the ~0.35 us per-step overhead would dominate.
    """
    divisors = [d for d in range(1, batch + 1) if batch % d == 0]
    multi = [d for d in divisors if batch // d >= 2]
    for d in multi:                       # smallest block meeting the target
        if d * seq >= target_rows:
            return d
    for d in reversed(multi):             # can't reach target: biggest >= min
        if d * seq >= min_rows:
            return d
    return batch                          # truly tiny: single grid step


def _estimate_step_vmem_bytes(bt, n, d_model, n_heads, x_bytes, w_bytes,
                              out_bytes, cast_bytes, weight_buffers):
    """Rough per-grid-step VMEM footprint (bytes)."""
    rows = bt * n
    pipelined = 2 * rows * d_model * (x_bytes + out_bytes)   # dbl-buffered x/out
    wbuf = 2 if weight_buffers is None else weight_buffers
    weights = wbuf * (d_model * 3 * d_model + 3 * d_model) * w_bytes
    qkv = rows * 3 * d_model * (4 + cast_bytes)              # f32 proj (+ cast)
    attn = bt * n_heads * n * n * (4 + 4 + cast_bytes)       # logits + probs
    acc = rows * d_model * 4                                 # f32 pre-store out
    return pipelined + weights + qkv + attn + acc


def multi_head_attention(x, wq, wk, wv, bq, bk, bv, *, n_heads,
                         batch_block=None, use_bf16=False):
    """Forward pass of the PyTorch MultiHeadAttention module.

    x:        (B, N, D) — (batch, n_patches + 1, dim)
    wq/wk/wv: (D, D), applied as y = x @ W + b  (i.e. W == nn.Linear.weight.T)
    bq/bk/bv: (D,)
    use_bf16: bf16 MXU operands (valid on v5e/v6e/v7x); softmax + accumulation
              stay f32 inside the kernel.
    """
    B, N, D = x.shape
    assert D % n_heads == 0
    dim_heads = D // n_heads
    scale = dim_heads ** (-0.5)

    # Host-side (free) prep: fuse the three projections into one (D, 3D) weight
    # / (1, 3D) bias and fold the softmax scale into the Q projection.
    wqkv = jnp.concatenate([wq * scale, wk, wv], axis=1)            # (D, 3D)
    bqkv = jnp.concatenate([bq * scale, bk, bv]).reshape(1, 3 * D)  # (1, 3D)

    if use_bf16:
        x_in = x.astype(jnp.bfloat16)
        wqkv = wqkv.astype(jnp.bfloat16)
        matmul_dtype = jnp.bfloat16
    else:
        x_in = x
        matmul_dtype = None

    auto_block = batch_block is None
    if auto_block:
        batch_block = _pick_batch_block(B, N)
    assert B % batch_block == 0

    x_bytes = jnp.dtype(x_in.dtype).itemsize
    w_bytes = jnp.dtype(wqkv.dtype).itemsize
    out_bytes = jnp.dtype(x.dtype).itemsize
    cast_bytes = 0 if matmul_dtype is None else 2

    def est(bb, weight_buffers):
        return _estimate_step_vmem_bytes(bb, N, D, n_heads, x_bytes, w_bytes,
                                         out_bytes, cast_bytes, weight_buffers)

    # v7x has 64 MiB physical VMEM — keep headroom; shrink batch_block if the
    # auto-picked value would not fit.
    vmem_budget = 44 << 20
    if auto_block:
        while batch_block > 1 and est(batch_block, 1) > vmem_budget:
            batch_block = max(d for d in range(1, batch_block) if B % d == 0)

    grid = (B // batch_block,)

    # TODO(synk): if N is ever tiled (block < full N) at shapes where N is not
    # a multiple of 128, pad keys and apply a -inf mask before the softmax;
    # here every block spans the full N so no padded lanes enter the reductions.

    def build(head_batched, weight_buffers):
        kernel = functools.partial(
            _mha_kernel, n_heads=n_heads, dim_heads=dim_heads,
            matmul_dtype=matmul_dtype, head_batched=head_batched)
        w_kwargs = ({} if weight_buffers is None
                    else dict(pipeline_mode=pl.Buffered(weight_buffers)))
        grid_spec = pltpu.PrefetchScalarGridSpec(
            num_scalar_prefetch=0,
            grid=grid,
            in_specs=[
                pl.BlockSpec((batch_block, N, D), lambda b: (b, 0, 0)),   # x
                # Constant-index weight/bias tiles: single-buffered (no point
                # double-buffering a block that never changes).
                pl.BlockSpec((D, 3 * D), lambda b: (0, 0), **w_kwargs),   # W_qkv
                pl.BlockSpec((1, 3 * D), lambda b: (0, 0), **w_kwargs),   # b_qkv
            ],
            out_specs=pl.BlockSpec((batch_block, N, D), lambda b: (b, 0, 0)),
        )
        vmem_limit = int(min(64 << 20,
                             max(32 << 20,
                                 est(batch_block, weight_buffers) * 3 // 2)))
        return pl.pallas_call(
            kernel,
            out_shape=jax.ShapeDtypeStruct((B, N, D), x.dtype),
            grid_spec=grid_spec,
            compiler_params=pltpu.CompilerParams(
                dimension_semantics=("parallel",),
                vmem_limit_bytes=vmem_limit),
        )

    # Config cascade: most optimized first, proven-safe last.  Lowering support
    # for multi-batch-dim dot_general and Buffered(1) block specs varies across
    # jax/Mosaic versions; fall back rather than fail.
    last_err = None
    for head_batched, weight_buffers in ((True, 1), (True, None),
                                         (False, 1), (False, None)):
        try:
            return build(head_batched, weight_buffers)(x_in, wqkv, bqkv)
        except Exception as e:            # noqa: BLE001 — try next config
            last_err = e
    raise last_err


def _reference(x, wq, wk, wv, bq, bk, bv, n_heads):
    """Pure-JAX reference mirroring the PyTorch forward exactly."""
    B, N, D = x.shape
    d = D // n_heads
    q = x @ wq + bq
    k = x @ wk + bk
    v = x @ wv + bv

    def split(t):  # b n (h d) -> b h n d
        return t.reshape(B, N, n_heads, d).transpose(0, 2, 1, 3)

    q, k, v = split(q), split(k), split(v)
    logit = jnp.einsum("bhnd,bhmd->bhnm", q, k) * (d ** -0.5)
    w = jax.nn.softmax(logit, axis=-1)
    out = jnp.einsum("bhnm,bhmd->bhnd", w, v)
    return out.transpose(0, 2, 1, 3).reshape(B, N, D)  # b h n d -> b n (h d)


if __name__ == "__main__":
    # Small shapes consistent with the module: batch=2, seq (n_patches+1)=8,
    # dim=32, n_heads=4 -> dim_heads=8.
    B, N, D, H = 2, 8, 32, 4

    key = jax.random.PRNGKey(0)
    kx, kq, kk, kv, kbq, kbk, kbv = jax.random.split(key, 7)

    x = jax.random.normal(kx, (B, N, D), dtype=jnp.float32)
    wq = jax.random.normal(kq, (D, D), dtype=jnp.float32) * 0.1
    wk = jax.random.normal(kk, (D, D), dtype=jnp.float32) * 0.1
    wv = jax.random.normal(kv, (D, D), dtype=jnp.float32) * 0.1
    bq = jax.random.normal(kbq, (D,), dtype=jnp.float32) * 0.1
    bk = jax.random.normal(kbk, (D,), dtype=jnp.float32) * 0.1
    bv = jax.random.normal(kbv, (D,), dtype=jnp.float32) * 0.1

    ref = _reference(x, wq, wk, wv, bq, bk, bv, H)

    # f32 path (module-faithful; exact softmax reciprocal).
    out = multi_head_attention(x, wq, wk, wv, bq, bk, bv, n_heads=H)
    out = jax.block_until_ready(out)
    assert out.shape == (B, N, D)
    assert jnp.allclose(out, ref, atol=5e-3, rtol=5e-3), "f32 mismatch vs reference"

    # bf16-MXU path (all generations); f32 accumulation + f32 softmax.
    out_bf16 = multi_head_attention(x, wq, wk, wv, bq, bk, bv, n_heads=H,
                                    use_bf16=True)
    out_bf16 = jax.block_until_ready(out_bf16)
    assert jnp.allclose(out_bf16, ref, atol=5e-2, rtol=5e-2), "bf16 mismatch vs reference"

    print("KERNEL_OK")
</pallas_src>

<mosaic_0001>
module attributes {stable_mosaic.version = 11 : i64} {
  func.func @_mha_kernel(%arg0: i32, %arg1: memref<2x8x32xf32, #tpu.memory_space<vmem>>, %arg2: memref<32x96xf32, #tpu.memory_space<vmem>>, %arg3: memref<1x96xf32, #tpu.memory_space<vmem>>, %arg4: memref<2x8x32xf32, #tpu.memory_space<vmem>>) attributes {dimension_semantics = [#tpu.dimension_semantics<parallel>], iteration_bounds = array<i64: 1>, scalar_prefetch = 0 : i64, scratch_operands = 0 : i64, tpu.core_type = #tpu.core_type<tc>, window_params = [{transform_indices = @transform_0, window_bounds = array<i64: 2, 8, 32>}, {pipeline_mode = #tpu.pipeline_mode<synchronous>, transform_indices = @transform_1, window_bounds = array<i64: 32, 96>}, {pipeline_mode = #tpu.pipeline_mode<synchronous>, transform_indices = @transform_2, window_bounds = array<i64: 1, 96>}, {transform_indices = @transform_3, window_bounds = array<i64: 2, 8, 32>}]} {
    %c0 = arith.constant 0 : index
    %c0_0 = arith.constant 0 : index
    %c0_1 = arith.constant 0 : index
    %0 = vector.load %arg1[%c0, %c0_0, %c0_1] : memref<2x8x32xf32, #tpu.memory_space<vmem>>, vector<2x8x32xf32>
    %1 = vector.shape_cast %0 : vector<2x8x32xf32> to vector<16x32xf32>
    %c0_2 = arith.constant 0 : index
    %c0_3 = arith.constant 0 : index
    %2 = vector.load %arg2[%c0_2, %c0_3] : memref<32x96xf32, #tpu.memory_space<vmem>>, vector<32x96xf32>
    %cst = arith.constant dense<0.000000e+00> : vector<16x96xf32>
    %3 = tpu.matmul %1, %2, %cst {dimension_numbers = #tpu.dot_dimension_numbers<[1], [0], [0], [1], [0, 0, 1, 1], [], []>} : vector<16x32xf32>, vector<32x96xf32>, vector<16x96xf32> -> vector<16x96xf32>
    %c0_4 = arith.constant 0 : index
    %c0_5 = arith.constant 0 : index
    %4 = vector.load %arg3[%c0_4, %c0_5] : memref<1x96xf32, #tpu.memory_space<vmem>>, vector<1x96xf32>
    %5 = vector.broadcast %4 : vector<1x96xf32> to vector<16x96xf32>
    %6 = arith.addf %3, %5 : vector<16x96xf32>
    %7 = vector.shape_cast %6 : vector<16x96xf32> to vector<2x8x96xf32>
    %8 = vector.extract_strided_slice %7 {offsets = [0, 0, 0], sizes = [2, 8, 8], strides = [1, 1, 1]} : vector<2x8x96xf32> to vector<2x8x8xf32>
    %9 = vector.extract_strided_slice %7 {offsets = [0, 0, 32], sizes = [2, 8, 8], strides = [1, 1, 1]} : vector<2x8x96xf32> to vector<2x8x8xf32>
    %10 = vector.extract_strided_slice %7 {offsets = [0, 0, 64], sizes = [2, 8, 8], strides = [1, 1, 1]} : vector<2x8x96xf32> to vector<2x8x8xf32>
    "tpu.trace_start"() <{level = 10 : i32, message = "bnd,bmd->bnm"}> : () -> ()
    %cst_6 = arith.constant dense<0.000000e+00> : vector<2x8x8xf32>
    %11 = tpu.matmul %8, %9, %cst_6 {dimension_numbers = #tpu.dot_dimension_numbers<[2], [2], [1], [1], [0, 0, 0, 1, 1, 1], [0], [0]>} : vector<2x8x8xf32>, vector<2x8x8xf32>, vector<2x8x8xf32> -> vector<2x8x8xf32>
    "tpu.trace_stop"() : () -> ()
    %cst_7 = arith.constant dense<0xFF800000> : vector<2x8xf32>
    %12 = vector.multi_reduction <maximumf>, %11, %cst_7 [2] : vector<2x8x8xf32> to vector<2x8xf32>
    %13 = vector.shape_cast %12 : vector<2x8xf32> to vector<2x8x1xf32>
    %14 = vector.broadcast %13 : vector<2x8x1xf32> to vector<2x8x8xf32>
    %15 = arith.subf %11, %14 : vector<2x8x8xf32>
    %16 = math.exp %15 : vector<2x8x8xf32>
    %cst_8 = arith.constant dense<0.000000e+00> : vector<2x8xf32>
    %17 = vector.multi_reduction <add>, %16, %cst_8 [2] : vector<2x8x8xf32> to vector<2x8xf32>
    %18 = vector.shape_cast %17 : vector<2x8xf32> to vector<2x8x1xf32>
    %19 = tpu.reciprocal %18 : vector<2x8x1xf32> -> vector<2x8x1xf32>
    %20 = vector.broadcast %19 : vector<2x8x1xf32> to vector<2x8x8xf32>
    %21 = arith.mulf %16, %20 : vector<2x8x8xf32>
    "tpu.trace_start"() <{level = 10 : i32, message = "bnm,bmd->bnd"}> : () -> ()
    %cst_9 = arith.constant dense<0.000000e+00> : vector<2x8x8xf32>
    %22 = tpu.matmul %21, %10, %cst_9 {dimension_numbers = #tpu.dot_dimension_numbers<[2], [1], [1], [2], [0, 0, 0, 1, 1, 2], [0], [0]>} : vector<2x8x8xf32>, vector<2x8x8xf32>, vector<2x8x8xf32> -> vector<2x8x8xf32>
    "tpu.trace_stop"() : () -> ()
    %23 = vector.extract_strided_slice %7 {offsets = [0, 0, 8], sizes = [2, 8, 8], strides = [1, 1, 1]} : vector<2x8x96xf32> to vector<2x8x8xf32>
    %24 = vector.extract_strided_slice %7 {offsets = [0, 0, 40], sizes = [2, 8, 8], strides = [1, 1, 1]} : vector<2x8x96xf32> to vector<2x8x8xf32>
    %25 = vector.extract_strided_slice %7 {offsets = [0, 0, 72], sizes = [2, 8, 8], strides = [1, 1, 1]} : vector<2x8x96xf32> to vector<2x8x8xf32>
    "tpu.trace_start"() <{level = 10 : i32, message = "bnd,bmd->bnm"}> : () -> ()
    %cst_10 = arith.constant dense<0.000000e+00> : vector<2x8x8xf32>
    %26 = tpu.matmul %23, %24, %cst_10 {dimension_numbers = #tpu.dot_dimension_numbers<[2], [2], [1], [1], [0, 0, 0, 1, 1, 1], [0], [0]>} : vector<2x8x8xf32>, vector<2x8x8xf32>, vector<2x8x8xf32> -> vector<2x8x8xf32>
    "tpu.trace_stop"() : () -> ()
    %cst_11 = arith.constant dense<0xFF800000> : vector<2x8xf32>
    %27 = vector.multi_reduction <maximumf>, %26, %cst_11 [2] : vector<2x8x8xf32> to vector<2x8xf32>
    %28 = vector.shape_cast %27 : vector<2x8xf32> to vector<2x8x1xf32>
    %29 = vector.broadcast %28 : vector<2x8x1xf32> to vector<2x8x8xf32>
    %30 = arith.subf %26, %29 : vector<2x8x8xf32>
    %31 = math.exp %30 : vector<2x8x8xf32>
    %cst_12 = arith.constant dense<0.000000e+00> : vector<2x8xf32>
    %32 = vector.multi_reduction <add>, %31, %cst_12 [2] : vector<2x8x8xf32> to vector<2x8xf32>
    %33 = vector.shape_cast %32 : vector<2x8xf32> to vector<2x8x1xf32>
    %34 = tpu.reciprocal %33 : vector<2x8x1xf32> -> vector<2x8x1xf32>
    %35 = vector.broadcast %34 : vector<2x8x1xf32> to vector<2x8x8xf32>
    %36 = arith.mulf %31, %35 : vector<2x8x8xf32>
    "tpu.trace_start"() <{level = 10 : i32, message = "bnm,bmd->bnd"}> : () -> ()
    %cst_13 = arith.constant dense<0.000000e+00> : vector<2x8x8xf32>
    %37 = tpu.matmul %36, %25, %cst_13 {dimension_numbers = #tpu.dot_dimension_numbers<[2], [1], [1], [2], [0, 0, 0, 1, 1, 2], [0], [0]>} : vector<2x8x8xf32>, vector<2x8x8xf32>, vector<2x8x8xf32> -> vector<2x8x8xf32>
    "tpu.trace_stop"() : () -> ()
    %38 = vector.extract_strided_slice %7 {offsets = [0, 0, 16], sizes = [2, 8, 8], strides = [1, 1, 1]} : vector<2x8x96xf32> to vector<2x8x8xf32>
    %39 = vector.extract_strided_slice %7 {offsets = [0, 0, 48], sizes = [2, 8, 8], strides = [1, 1, 1]} : vector<2x8x96xf32> to vector<2x8x8xf32>
    %40 = vector.extract_strided_slice %7 {offsets = [0, 0, 80], sizes = [2, 8, 8], strides = [1, 1, 1]} : vector<2x8x96xf32> to vector<2x8x8xf32>
    "tpu.trace_start"() <{level = 10 : i32, message = "bnd,bmd->bnm"}> : () -> ()
    %cst_14 = arith.constant dense<0.000000e+00> : vector<2x8x8xf32>
    %41 = tpu.matmul %38, %39, %cst_14 {dimension_numbers = #tpu.dot_dimension_numbers<[2], [2], [1], [1], [0, 0, 0, 1, 1, 1], [0], [0]>} : vector<2x8x8xf32>, vector<2x8x8xf32>, vector<2x8x8xf32> -> vector<2x8x8xf32>
    "tpu.trace_stop"() : () -> ()
    %cst_15 = arith.constant dense<0xFF800000> : vector<2x8xf32>
    %42 = vector.multi_reduction <maximumf>, %41, %cst_15 [2] : vector<2x8x8xf32> to vector<2x8xf32>
    %43 = vector.shape_cast %42 : vector<2x8xf32> to vector<2x8x1xf32>
    %44 = vector.broadcast %43 : vector<2x8x1xf32> to vector<2x8x8xf32>
    %45 = arith.subf %41, %44 : vector<2x8x8xf32>
    %46 = math.exp %45 : vector<2x8x8xf32>
    %cst_16 = arith.constant dense<0.000000e+00> : vector<2x8xf32>
    %47 = vector.multi_reduction <add>, %46, %cst_16 [2] : vector<2x8x8xf32> to vector<2x8xf32>
    %48 = vector.shape_cast %47 : vector<2x8xf32> to vector<2x8x1xf32>
    %49 = tpu.reciprocal %48 : vector<2x8x1xf32> -> vector<2x8x1xf32>
    %50 = vector.broadcast %49 : vector<2x8x1xf32> to vector<2x8x8xf32>
    %51 = arith.mulf %46, %50 : vector<2x8x8xf32>
    "tpu.trace_start"() <{level = 10 : i32, message = "bnm,bmd->bnd"}> : () -> ()
    %cst_17 = arith.constant dense<0.000000e+00> : vector<2x8x8xf32>
    %52 = tpu.matmul %51, %40, %cst_17 {dimension_numbers = #tpu.dot_dimension_numbers<[2], [1], [1], [2], [0, 0, 0, 1, 1, 2], [0], [0]>} : vector<2x8x8xf32>, vector<2x8x8xf32>, vector<2x8x8xf32> -> vector<2x8x8xf32>
    "tpu.trace_stop"() : () -> ()
    %53 = vector.extract_strided_slice %7 {offsets = [0, 0, 24], sizes = [2, 8, 8], strides = [1, 1, 1]} : vector<2x8x96xf32> to vector<2x8x8xf32>
    %54 = vector.extract_strided_slice %7 {offsets = [0, 0, 56], sizes = [2, 8, 8], strides = [1, 1, 1]} : vector<2x8x96xf32> to vector<2x8x8xf32>
    %55 = vector.extract_strided_slice %7 {offsets = [0, 0, 88], sizes = [2, 8, 8], strides = [1, 1, 1]} : vector<2x8x96xf32> to vector<2x8x8xf32>
    "tpu.trace_start"() <{level = 10 : i32, message = "bnd,bmd->bnm"}> : () -> ()
    %cst_18 = arith.constant dense<0.000000e+00> : vector<2x8x8xf32>
    %56 = tpu.matmul %53, %54, %cst_18 {dimension_numbers = #tpu.dot_dimension_numbers<[2], [2], [1], [1], [0, 0, 0, 1, 1, 1], [0], [0]>} : vector<2x8x8xf32>, vector<2x8x8xf32>, vector<2x8x8xf32> -> vector<2x8x8xf32>
    "tpu.trace_stop"() : () -> ()
    %cst_19 = arith.constant dense<0xFF800000> : vector<2x8xf32>
    %57 = vector.multi_reduction <maximumf>, %56, %cst_19 [2] : vector<2x8x8xf32> to vector<2x8xf32>
    %58 = vector.shape_cast %57 : vector<2x8xf32> to vector<2x8x1xf32>
    %59 = vector.broadcast %58 : vector<2x8x1xf32> to vector<2x8x8xf32>
    %60 = arith.subf %56, %59 : vector<2x8x8xf32>
    %61 = math.exp %60 : vector<2x8x8xf32>
    %cst_20 = arith.constant dense<0.000000e+00> : vector<2x8xf32>
    %62 = vector.multi_reduction <add>, %61, %cst_20 [2] : vector<2x8x8xf32> to vector<2x8xf32>
    %63 = vector.shape_cast %62 : vector<2x8xf32> to vector<2x8x1xf32>
    %64 = tpu.reciprocal %63 : vector<2x8x1xf32> -> vector<2x8x1xf32>
    %65 = vector.broadcast %64 : vector<2x8x1xf32> to vector<2x8x8xf32>
    %66 = arith.mulf %61, %65 : vector<2x8x8xf32>
    "tpu.trace_start"() <{level = 10 : i32, message = "bnm,bmd->bnd"}> : () -> ()
    %cst_21 = arith.constant dense<0.000000e+00> : vector<2x8x8xf32>
    %67 = tpu.matmul %66, %55, %cst_21 {dimension_numbers = #tpu.dot_dimension_numbers<[2], [1], [1], [2], [0, 0, 0, 1, 1, 2], [0], [0]>} : vector<2x8x8xf32>, vector<2x8x8xf32>, vector<2x8x8xf32> -> vector<2x8x8xf32>
    "tpu.trace_stop"() : () -> ()
    %68 = tpu.concatenate %22, %37, %52, %67 in 2 : vector<2x8x8xf32>, vector<2x8x8xf32>, vector<2x8x8xf32>, vector<2x8x8xf32> -> vector<2x8x32xf32>
    %c0_22 = arith.constant 0 : index
    %c0_23 = arith.constant 0 : index
    %c0_24 = arith.constant 0 : index
    %69 = vector.load %arg4[%c0_22, %c0_23, %c0_24] : memref<2x8x32xf32, #tpu.memory_space<vmem>>, vector<2x8x32xf32>
    tpu.vector_store %arg4[%c0_22, %c0_23, %c0_24], %68 {strides = array<i32>} : memref<2x8x32xf32, #tpu.memory_space<vmem>>, vector<2x8x32xf32>,
    return
  }
  func.func @transform_0(%arg0: i32) -> (i32, i32, i32) {
    %c0_i32 = arith.constant 0 : i32
    %c0_i32_0 = arith.constant 0 : i32
    %c0_i32_1 = arith.constant 0 : i32
    return %arg0, %c0_i32, %c0_i32_0 : i32, i32, i32
  }
  func.func @transform_1(%arg0: i32) -> (i32, i32) {
    %c0_i32 = arith.constant 0 : i32
    %c0_i32_0 = arith.constant 0 : i32
    %c0_i32_1 = arith.constant 0 : i32
    return %c0_i32, %c0_i32_0 : i32, i32
  }
  func.func @transform_2(%arg0: i32) -> (i32, i32) {
    %c0_i32 = arith.constant 0 : i32
    %c0_i32_0 = arith.constant 0 : i32
    %c0_i32_1 = arith.constant 0 : i32
    return %c0_i32, %c0_i32_0 : i32, i32
  }
  func.func @transform_3(%arg0: i32) -> (i32, i32, i32) {
    %c0_i32 = arith.constant 0 : i32
    %c0_i32_0 = arith.constant 0 : i32
    %c0_i32_1 = arith.constant 0 : i32
    return %arg0, %c0_i32, %c0_i32_0 : i32, i32, i32
  }
}

module attributes {stable_mosaic.version = 11 : i64} {
  func.func @_mha_kernel(%arg0: i32, %arg1: memref<2x8x32xf32, #tpu.memory_space<vmem>>, %arg2: memref<32x96xf32, #tpu.memory_space<vmem>>, %arg3: memref<1x96xf32, #tpu.memory_space<vmem>>, %arg4: memref<2x8x32xf32, #tpu.memory_space<vmem>>) attributes {dimension_semantics = [#tpu.dimension_semantics<parallel>], iteration_bounds = array<i64: 1>, scalar_prefetch = 0 : i64, scratch_operands = 0 : i64, tpu.core_type = #tpu.core_type<tc>, window_params = [{transform_indices = @transform_0, window_bounds = array<i64: 2, 8, 32>}, {pipeline_mode = #tpu.pipeline_mode<synchronous>, transform_indices = @transform_1, window_bounds = array<i64: 32, 96>}, {pipeline_mode = #tpu.pipeline_mode<synchronous>, transform_indices = @transform_2, window_bounds = array<i64: 1, 96>}, {transform_indices = @transform_3, window_bounds = array<i64: 2, 8, 32>}]} {
    %c0 = arith.constant 0 : index
    %c0_0 = arith.constant 0 : index
    %c0_1 = arith.constant 0 : index
    %0 = vector.load %arg1[%c0, %c0_0, %c0_1] : memref<2x8x32xf32, #tpu.memory_space<vmem>>, vector<2x8x32xf32>
    %1 = vector.shape_cast %0 : vector<2x8x32xf32> to vector<16x32xf32>
    %c0_2 = arith.constant 0 : index
    %c0_3 = arith.constant 0 : index
    %2 = vector.load %arg2[%c0_2, %c0_3] : memref<32x96xf32, #tpu.memory_space<vmem>>, vector<32x96xf32>
    %cst = arith.constant dense<0.000000e+00> : vector<16x96xf32>
    %3 = tpu.matmul %1, %2, %cst {dimension_numbers = #tpu.dot_dimension_numbers<[1], [0], [0], [1], [0, 0, 1, 1], [], []>} : vector<16x32xf32>, vector<32x96xf32>, vector<16x96xf32> -> vector<16x96xf32>
    %c0_4 = arith.constant 0 : index
    %c0_5 = arith.constant 0 : index
    %4 = vector.load %arg3[%c0_4, %c0_5] : memref<1x96xf32, #tpu.memory_space<vmem>>, vector<1x96xf32>
    %5 = vector.broadcast %4 : vector<1x96xf32> to vector<16x96xf32>
    %6 = arith.addf %3, %5 : vector<16x96xf32>
    %7 = vector.shape_cast %6 : vector<16x96xf32> to vector<2x8x96xf32>
    %8 = vector.extract_strided_slice %7 {offsets = [0, 0, 0], sizes = [2, 8, 8], strides = [1, 1, 1]} : vector<2x8x96xf32> to vector<2x8x8xf32>
    %9 = vector.extract_strided_slice %7 {offsets = [0, 0, 32], sizes = [2, 8, 8], strides = [1, 1, 1]} : vector<2x8x96xf32> to vector<2x8x8xf32>
    %10 = vector.extract_strided_slice %7 {offsets = [0, 0, 64], sizes = [2, 8, 8], strides = [1, 1, 1]} : vector<2x8x96xf32> to vector<2x8x8xf32>
    "tpu.trace_start"() <{level = 10 : i32, message = "bnd,bmd->bnm"}> : () -> ()
    %cst_6 = arith.constant dense<0.000000e+00> : vector<2x8x8xf32>
    %11 = tpu.matmul %8, %9, %cst_6 {dimension_numbers = #tpu.dot_dimension_numbers<[2], [2], [1], [1], [0, 0, 0, 1, 1, 1], [0], [0]>} : vector<2x8x8xf32>, vector<2x8x8xf32>, vector<2x8x8xf32> -> vector<2x8x8xf32>
    "tpu.trace_stop"() : () -> ()
    %cst_7 = arith.constant dense<0xFF800000> : vector<2x8xf32>
    %12 = vector.multi_reduction <maximumf>, %11, %cst_7 [2] : vector<2x8x8xf32> to vector<2x8xf32>
    %13 = vector.shape_cast %12 : vector<2x8xf32> to vector<2x8x1xf32>
    %14 = vector.broadcast %13 : vector<2x8x1xf32> to vector<2x8x8xf32>
    %15 = arith.subf %11, %14 : vector<2x8x8xf32>
    %16 = math.exp %15 : vector<2x8x8xf32>
    %cst_8 = arith.constant dense<0.000000e+00> : vector<2x8xf32>
    %17 = vector.multi_reduction <add>, %16, %cst_8 [2] : vector<2x8x8xf32> to vector<2x8xf32>
    %18 = vector.shape_cast %17 : vector<2x8xf32> to vector<2x8x1xf32>
    %19 = tpu.reciprocal %18 : vector<2x8x1xf32> -> vector<2x8x1xf32>
    %20 = vector.broadcast %19 : vector<2x8x1xf32> to vector<2x8x8xf32>
    %21 = arith.mulf %16, %20 : vector<2x8x8xf32>
    "tpu.trace_start"() <{level = 10 : i32, message = "bnm,bmd->bnd"}> : () -> ()
    %cst_9 = arith.constant dense<0.000000e+00> : vector<2x8x8xf32>
    %22 = tpu.matmul %21, %10, %cst_9 {dimension_numbers = #tpu.dot_dimension_numbers<[2], [1], [1], [2], [0, 0, 0, 1, 1, 2], [0], [0]>} : vector<2x8x8xf32>, vector<2x8x8xf32>, vector<2x8x8xf32> -> vector<2x8x8xf32>
    "tpu.trace_stop"() : () -> ()
    %23 = vector.extract_strided_slice %7 {offsets = [0, 0, 8], sizes = [2, 8, 8], strides = [1, 1, 1]} : vector<2x8x96xf32> to vector<2x8x8xf32>
    %24 = vector.extract_strided_slice %7 {offsets = [0, 0, 40], sizes = [2, 8, 8], strides = [1, 1, 1]} : vector<2x8x96xf32> to vector<2x8x8xf32>
    %25 = vector.extract_strided_slice %7 {offsets = [0, 0, 72], sizes = [2, 8, 8], strides = [1, 1, 1]} : vector<2x8x96xf32> to vector<2x8x8xf32>
    "tpu.trace_start"() <{level = 10 : i32, message = "bnd,bmd->bnm"}> : () -> ()
    %cst_10 = arith.constant dense<0.000000e+00> : vector<2x8x8xf32>
    %26 = tpu.matmul %23, %24, %cst_10 {dimension_numbers = #tpu.dot_dimension_numbers<[2], [2], [1], [1], [0, 0, 0, 1, 1, 1], [0], [0]>} : vector<2x8x8xf32>, vector<2x8x8xf32>, vector<2x8x8xf32> -> vector<2x8x8xf32>
    "tpu.trace_stop"() : () -> ()
    %cst_11 = arith.constant dense<0xFF800000> : vector<2x8xf32>
    %27 = vector.multi_reduction <maximumf>, %26, %cst_11 [2] : vector<2x8x8xf32> to vector<2x8xf32>
    %28 = vector.shape_cast %27 : vector<2x8xf32> to vector<2x8x1xf32>
    %29 = vector.broadcast %28 : vector<2x8x1xf32> to vector<2x8x8xf32>
    %30 = arith.subf %26, %29 : vector<2x8x8xf32>
    %31 = math.exp %30 : vector<2x8x8xf32>
    %cst_12 = arith.constant dense<0.000000e+00> : vector<2x8xf32>
    %32 = vector.multi_reduction <add>, %31, %cst_12 [2] : vector<2x8x8xf32> to vector<2x8xf32>
    %33 = vector.shape_cast %32 : vector<2x8xf32> to vector<2x8x1xf32>
    %34 = tpu.reciprocal %33 : vector<2x8x1xf32> -> vector<2x8x1xf32>
    %35 = vector.broadcast %34 : vector<2x8x1xf32> to vector<2x8x8xf32>
    %36 = arith.mulf %31, %35 : vector<2x8x8xf32>
    "tpu.trace_start"() <{level = 10 : i32, message = "bnm,bmd->bnd"}> : () -> ()
    %cst_13 = arith.constant dense<0.000000e+00> : vector<2x8x8xf32>
    %37 = tpu.matmul %36, %25, %cst_13 {dimension_numbers = #tpu.dot_dimension_numbers<[2], [1], [1], [2], [0, 0, 0, 1, 1, 2], [0], [0]>} : vector<2x8x8xf32>, vector<2x8x8xf32>, vector<2x8x8xf32> -> vector<2x8x8xf32>
    "tpu.trace_stop"() : () -> ()
    %38 = vector.extract_strided_slice %7 {offsets = [0, 0, 16], sizes = [2, 8, 8], strides = [1, 1, 1]} : vector<2x8x96xf32> to vector<2x8x8xf32>
    %39 = vector.extract_strided_slice %7 {offsets = [0, 0, 48], sizes = [2, 8, 8], strides = [1, 1, 1]} : vector<2x8x96xf32> to vector<2x8x8xf32>
    %40 = vector.extract_strided_slice %7 {offsets = [0, 0, 80], sizes = [2, 8, 8], strides = [1, 1, 1]} : vector<2x8x96xf32> to vector<2x8x8xf32>
    "tpu.trace_start"() <{level = 10 : i32, message = "bnd,bmd->bnm"}> : () -> ()
    %cst_14 = arith.constant dense<0.000000e+00> : vector<2x8x8xf32>
    %41 = tpu.matmul %38, %39, %cst_14 {dimension_numbers = #tpu.dot_dimension_numbers<[2], [2], [1], [1], [0, 0, 0, 1, 1, 1], [0], [0]>} : vector<2x8x8xf32>, vector<2x8x8xf32>, vector<2x8x8xf32> -> vector<2x8x8xf32>
    "tpu.trace_stop"() : () -> ()
    %cst_15 = arith.constant dense<0xFF800000> : vector<2x8xf32>
    %42 = vector.multi_reduction <maximumf>, %41, %cst_15 [2] : vector<2x8x8xf32> to vector<2x8xf32>
    %43 = vector.shape_cast %42 : vector<2x8xf32> to vector<2x8x1xf32>
    %44 = vector.broadcast %43 : vector<2x8x1xf32> to vector<2x8x8xf32>
    %45 = arith.subf %41, %44 : vector<2x8x8xf32>
    %46 = math.exp %45 : vector<2x8x8xf32>
    %cst_16 = arith.constant dense<0.000000e+00> : vector<2x8xf32>
    %47 = vector.multi_reduction <add>, %46, %cst_16 [2] : vector<2x8x8xf32> to vector<2x8xf32>
    %48 = vector.shape_cast %47 : vector<2x8xf32> to vector<2x8x1xf32>
    %49 = tpu.reciprocal %48 : vector<2x8x1xf32> -> vector<2x8x1xf32>
    %50 = vector.broadcast %49 : vector<2x8x1xf32> to vector<2x8x8xf32>
    %51 = arith.mulf %46, %50 : vector<2x8x8xf32>
    "tpu.trace_start"() <{level = 10 : i32, message = "bnm,bmd->bnd"}> : () -> ()
    %cst_17 = arith.constant dense<0.000000e+00> : vector<2x8x8xf32>
    %52 = tpu.matmul %51, %40, %cst_17 {dimension_numbers = #tpu.dot_dimension_numbers<[2], [1], [1], [2], [0, 0, 0, 1, 1, 2], [0], [0]>} : vector<2x8x8xf32>, vector<2x8x8xf32>, vector<2x8x8xf32> -> vector<2x8x8xf32>
    "tpu.trace_stop"() : () -> ()
    %53 = vector.extract_strided_slice %7 {offsets = [0, 0, 24], sizes = [2, 8, 8], strides = [1, 1, 1]} : vector<2x8x96xf32> to vector<2x8x8xf32>
    %54 = vector.extract_strided_slice %7 {offsets = [0, 0, 56], sizes = [2, 8, 8], strides = [1, 1, 1]} : vector<2x8x96xf32> to vector<2x8x8xf32>
    %55 = vector.extract_strided_slice %7 {offsets = [0, 0, 88], sizes = [2, 8, 8], strides = [1, 1, 1]} : vector<2x8x96xf32> to vector<2x8x8xf32>
    "tpu.trace_start"() <{level = 10 : i32, message = "bnd,bmd->bnm"}> : () -> ()
    %cst_18 = arith.constant dense<0.000000e+00> : vector<2x8x8xf32>
    %56 = tpu.matmul %53, %54, %cst_18 {dimension_numbers = #tpu.dot_dimension_numbers<[2], [2], [1], [1], [0, 0, 0, 1, 1, 1], [0], [0]>} : vector<2x8x8xf32>, vector<2x8x8xf32>, vector<2x8x8xf32> -> vector<2x8x8xf32>
    "tpu.trace_stop"() : () -> ()
    %cst_19 = arith.constant dense<0xFF800000> : vector<2x8xf32>
    %57 = vector.multi_reduction <maximumf>, %56, %cst_19 [2] : vector<2x8x8xf32> to vector<2x8xf32>
    %58 = vector.shape_cast %57 : vector<2x8xf32> to vector<2x8x1xf32>
    %59 = vector.broadcast %58 : vector<2x8x1xf32> to vector<2x8x8xf32>
    %60 = arith.subf %56, %59 : vector<2x8x8xf32>
    %61 = math.exp %60 : vector<2x8x8xf32>
    %cst_20 = arith.constant dense<0.000000e+00> : vector<2x8xf32>
    %62 = vector.multi_reduction <add>, %61, %cst_20 [2] : vector<2x8x8xf32> to vector<2x8xf32>
    %63 = vector.shape_cast %62 : vector<2x8xf32> to vector<2x8x1xf32>
    %64 = tpu.reciprocal %63 : vector<2x8x1xf32> -> vector<2x8x1xf32>
    %65 = vector.broadcast %64 : vector<2x8x1xf32> to vector<2x8x8xf32>
    %66 = arith.mulf %61, %65 : vector<2x8x8xf32>
    "tpu.trace_start"() <{level = 10 : i32, message = "bnm,bmd->bnd"}> : () -> ()
    %cst_21 = arith.constant dense<0.000000e+00> : vector<2x8x8xf32>
    %67 = tpu.matmul %66, %55, %cst_21 {dimension_numbers = #tpu.dot_dimension_numbers<[2], [1], [1], [2], [0, 0, 0, 1, 1, 2], [0], [0]>} : vector<2x8x8xf32>, vector<2x8x8xf32>, vector<2x8x8xf32> -> vector<2x8x8xf32>
    "tpu.trace_stop"() : () -> ()
    %68 = tpu.concatenate %22, %37, %52, %67 in 2 : vector<2x8x8xf32>, vector<2x8x8xf32>, vector<2x8x8xf32>, vector<2x8x8xf32> -> vector<2x8x32xf32>
    %c0_22 = arith.constant 0 : index
    %c0_23 = arith.constant 0 : index
    %c0_24 = arith.constant 0 : index
    %69 = vector.load %arg4[%c0_22, %c0_23, %c0_24] : memref<2x8x32xf32, #tpu.memory_space<vmem>>, vector<2x8x32xf32>
    tpu.vector_store %arg4[%c0_22, %c0_23, %c0_24], %68 {strides = array<i32>} : memref<2x8x32xf32, #tpu.memory_space<vmem>>, vector<2x8x32xf32>,
    return
  }
  func.func @transform_0(%arg0: i32) -> (i32, i32, i32) {
    %c0_i32 = arith.constant 0 : i32
    %c0_i32_0 = arith.constant 0 : i32
    %c0_i32_1 = arith.constant 0 : i32
    return %arg0, %c0_i32, %c0_i32_0 : i32, i32, i32
  }
  func.func @transform_1(%arg0: i32) -> (i32, i32) {
    %c0_i32 = arith.constant 0 : i32
    %c0_i32_0 = arith.constant 0 : i32
    %c0_i32_1 = arith.constant 0 : i32
    return %c0_i32, %c0_i32_0 : i32, i32
  }
  func.func @transform_2(%arg0: i32) -> (i32, i32) {
    %c0_i32 = arith.constant 0 : i32
    %c0_i32_0 = arith.constant 0 : i32
    %c0_i32_1 = arith.constant 0 : i32
    return %c0_i32, %c0_i32_0 : i32, i32
  }
  func.func @transform_3(%arg0: i32) -> (i32, i32, i32) {
    %c0_i32 = arith.constant 0 : i32
    %c0_i32_0 = arith.constant 0 : i32
    %c0_i32_1 = arith.constant 0 : i32
    return %arg0, %c0_i32, %c0_i32_0 : i32, i32, i32
  }
}

</mosaic_0001>

<llo_original>
// kernel: tpu_custom_call.1
$region0: #{tpu_custom_call.1}
  #allocation0 [shape = 'u32[]', space=smem, size = 0x4, offset = 0x4, fixed_abs, tag = 'smem constant byte address 0x4 - core index']
  #allocation1 [shape = 'u32[144,128]{1,0:T(1,128)}', space=vmem, size = 0x12000, scoped, tag = 'internal scratch']
  %s0 = inlined_call_operand.hbm [shape: f32[2,8,32], index: 0, kind: input, shape index: {}]
  %s1 = inlined_call_operand.hbm [shape: f32[32,96], index: 1, kind: input, shape index: {}]
  %s2 = inlined_call_operand.vmem [shape: f32[1,96], index: 2, kind: input, shape index: {}]
  %s3 = inlined_call_operand.hbm [shape: f32[2,8,32], index: 3, kind: output, shape index: {}]
  %s4 = sld [smem:[#allocation0]]
  $region30: #{tpu_custom_call.1} parent=0
    _
  %s6 = ssub.s32 1, %s4
  %s7 = scalar_select 0, %s6, %s4
  $region1: #{tpu_custom_call.1} parent=0
    #allocation2 [shape = 'u8[8192]{0}', space=vmem, size = 0x2000, scoped, tag = 'input window, operand 0, single buffered']
    #allocation3 [shape = 's32[1]{0}', space=sflag, size = 0x4, scoped, tag = 'scoped memory for tpu_custom_call.1']
    #allocation4 [shape = 's32[1]{0}', space=sflag, size = 0x4, scoped, tag = 'scoped memory for tpu_custom_call.1']
    #allocation5 [shape = 'u8[16384]{0}', space=vmem, size = 0x4000, scoped, tag = 'input window, operand 1, single buffered']
    #allocation6 [shape = 's32[1]{0}', space=sflag, size = 0x4, scoped, tag = 'scoped memory for tpu_custom_call.1']
    #allocation7 [shape = 'u8[8192]{0}', space=vmem, size = 0x2000, scoped, tag = 'output window, operand 0, single buffered']
    %8 = vsyncpa [#allocation3], 0
    %9 = vsyncpa [#allocation6], 0
    %10 = vsyncpa [#allocation4], 0
    // Predicated region
    $region2: #{tpu_custom_call.1} parent=1 // pred_check
      _
    $region3: #{tpu_custom_call.1} parent=1 // pred_check_branch
      %12 = sbr.rel (0) target = $region5
    $region4: #{tpu_custom_call.1} parent=1 // pred_region
      %s14 = ssub.s32 256, 256
      %15 = vsyncadd [#allocation3], %s14
      %s16 = sshll.u32 [#allocation2], 4
      %s17 = int_to_ptr.vmem [resolvable:$true] %s16
      %22 = dma.hbm_to_vmem [thread:$0]  %s0, 256, %s17, [#allocation3], 128, 128, 8
    $region5: #{tpu_custom_call.1} parent=1 // pred_fallthru
      _
    // Predicated region
    $region6: #{tpu_custom_call.1} parent=1 // pred_check
      _
    $region7: #{tpu_custom_call.1} parent=1 // pred_check_branch
      %24 = sbr.rel (0) target = $region9
    $region8: #{tpu_custom_call.1} parent=1 // pred_region
      %s26 = ssub.s32 512, 512
      %27 = vsyncadd [#allocation6], %s26
      %s28 = sshll.u32 [#allocation5], 4
      %s29 = int_to_ptr.vmem [resolvable:$true] %s28
      %34 = dma.hbm_to_vmem [thread:$0]  %s1, 512, %s29, [#allocation6], 128, 128, 8
    $region9: #{tpu_custom_call.1} parent=1 // pred_fallthru
      _
    // Predicated region
    $region10: #{tpu_custom_call.1} parent=1 // pred_check
      _
    $region11: #{tpu_custom_call.1} parent=1 // pred_check_branch
      %36 = sbr.rel (0) target = $region13
    $region12: #{tpu_custom_call.1} parent=1 // pred_region
      _
    $region13: #{tpu_custom_call.1} parent=1 // pred_fallthru
      _
    // Predicated region
    $region14: #{tpu_custom_call.1} parent=1 // pred_check
      _
    $region15: #{tpu_custom_call.1} parent=1 // pred_check_branch
      %38 = sbr.rel (0) target = $region17
    $region16: #{tpu_custom_call.1} parent=1 // pred_region
      %39 = dma.done [#allocation3], 256
    $region17: #{tpu_custom_call.1} parent=1 // pred_fallthru
      _
    // Predicated region
    $region18: #{tpu_custom_call.1} parent=1 // pred_check
      _
    $region19: #{tpu_custom_call.1} parent=1 // pred_check_branch
      %41 = sbr.rel (0) target = $region21
    $region20: #{tpu_custom_call.1} parent=1 // pred_region
      %42 = dma.done [#allocation6], 512
    $region21: #{tpu_custom_call.1} parent=1 // pred_fallthru
      _
    %v43 = vld [vmem:[#allocation2] sm:$0xff]
    %v44 = vld [vmem:[#allocation2 + $0x8] sm:$0xff]
    %v45 = vld [vmem:[#allocation5] sm:$0xff]
    %v46 = vld [vmem:[#allocation5 + $0x8] sm:$0xff]
    %v47 = vld [vmem:[#allocation5 + $0x10] sm:$0xff]
    %v48 = vld [vmem:[#allocation5 + $0x18] sm:$0xff]
    %v49 = vld [vmem:[%s2] sm:$0x1]
    %v51 = vlaneseq
    %v52 = vshrl.u32 %v51, 7
    %v53 = vsub.s32 0, %v52
    %v54 = vrot.slane %v49, %v53
    %vm56 = vcmask 261120
    %v58 = vsel %vm56, %v43, 0
    %v61 = vsel %vm56, %v44, 0
    %63 = vmatprep.subr.mxu0 0.0
    %64 = vmatpush1.msra.mxu0 %v45
    %65 = vmatprep.subr.mxu0 0.0
    %66 = vmatpush1.msra.mxu0 %v46
    %67 = vmatprep.subr.mxu0 0.0
    %68 = vmatpush1.msra.mxu0 %v47
    %69 = vmatprep.subr.mxu0 0.0
    %70 = vmatpush1.msra.mxu0 %v48
    %71 = vmatprep.subr.mxu0 0.0
    %72 = vmatpush1.msra.mxu0 0.0
    %73 = vmatprep.subr.mxu0 0.0
    %74 = vmatpush1.msra.mxu0 0.0
    %75 = vmatprep.subr.mxu0 0.0
    %76 = vmatpush1.msra.mxu0 0.0
    %77 = vmatprep.subr.mxu0 0.0
    %78 = vmatpush1.msra.mxu0 0.0
    %79 = vmatprep.subr.mxu0 0.0
    %80 = vmatpush1.msra.mxu0 0.0
    %81 = vmatprep.subr.mxu0 0.0
    %82 = vmatpush1.msra.mxu0 0.0
    %83 = vmatprep.subr.mxu0 0.0
    %84 = vmatpush1.msra.mxu0 0.0
    %85 = vmatprep.subr.mxu0 0.0
    %86 = vmatpush1.msra.mxu0 0.0
    %87 = vmatprep.subr.mxu0 0.0
    %88 = vmatpush1.msra.mxu0 0.0
    %89 = vmatprep.subr.mxu0 0.0
    %90 = vmatpush1.msra.mxu0 0.0
    %91 = vmatprep.subr.mxu0 0.0
    %92 = vmatpush1.msra.mxu0 0.0
    %93 = vmatprep.subr.mxu0 0.0
    %94 = vmatpush1.msra.mxu0 0.0
    %95 = vmatprep.subr.mxu0 0.0
    %96 = vmatpush1.msra.mxu0 0.0
    %97 = vmatprep.subr.mxu0 0.0
    %98 = vmatpush1.msra.mxu0 0.0
    %99 = vmatprep.subr.mxu0 0.0
    %100 = vmatpush1.msra.mxu0 0.0
    %101 = vmatprep.subr.mxu0 0.0
    %102 = vmatpush1.msra.mxu0 0.0
    %103 = vmatprep.subr.mxu0 0.0
    %104 = vmatpush1.msra.mxu0 0.0
    %105 = vmatprep.subr.mxu0 0.0
    %106 = vmatpush1.msra.mxu0 0.0
    %107 = vmatprep.subr.mxu0 0.0
    %108 = vmatpush1.msra.mxu0 0.0
    %109 = vmatprep.subr.mxu0 0.0
    %110 = vmatpush1.msra.mxu0 0.0
    %111 = vmatprep.subr.mxu0 0.0
    %112 = vmatpush1.msra.mxu0 0.0
    %113 = vmatprep.subr.mxu0 0.0
    %114 = vmatpush1.msra.mxu0 0.0
    %115 = vmatprep.subr.mxu0 0.0
    %116 = vmatpush1.msra.mxu0 0.0
    %117 = vmatprep.subr.mxu0 0.0
    %118 = vmatpush1.msra.mxu0 0.0
    %119 = vmatprep.subr.mxu0 0.0
    %120 = vmatpush1.msra.mxu0 0.0
    %121 = vmatprep.subr.mxu0 0.0
    %122 = vmatpush1.msra.mxu0 0.0
    %123 = vmatprep.subr.mxu0 0.0
    %124 = vmatpush1.msra.mxu0 0.0
    %125 = vmatprep.subr.mxu0 0.0
    %126 = vmatpush1.msra.mxu0 0.0
    %127 = vmatprep.mubr.f32.mxu0 0.0
    %128 = vmatmul.mubr.f32.gmra.mrb[0].mxu0 %v58
    %v129 = vpop.f32.mrb[0].mxu0
    %v130 = vadd.f32 %v54, %v129
    %v131 = vpop.f32.mrb[0].mxu0
    %132 = vmatprep.mubr.f32.mxu0 0.0
    %133 = vmatmul.mubr.f32.gmra.mrb[0].mxu0 %v61
    %v134 = vpop.f32.mrb[0].mxu0
    %v135 = vadd.f32 %v54, %v134
    %v136 = vpop.f32.mrb[0].mxu0
    %137 = vdwg.mxu0
    %139 = vrot.lane.b32.xlu0 %v130, 96
    %v140 = vpop.permute.xlu0 %139
    %vm141 = vcmask 64512
    %v142 = vsel %vm141, %v130, 0
    %v144 = vsel %vm141, %v140, 0
    %146 = vmatprep.subr.mxu0 0.0
    %147 = vmatpush1.xpose.msra.mxu0 %v144
    %148 = vmatprep.subr.mxu0 0.0
    %149 = vmatpush1.xpose.msra.mxu0 0.0
    %150 = vmatprep.subr.mxu0 0.0
    %151 = vmatpush1.xpose.msra.mxu0 0.0
    %152 = vmatprep.subr.mxu0 0.0
    %153 = vmatpush1.xpose.msra.mxu0 0.0
    %154 = vmatprep.subr.mxu0 0.0
    %155 = vmatpush1.xpose.msra.mxu0 0.0
    %156 = vmatprep.subr.mxu0 0.0
    %157 = vmatpush1.xpose.msra.mxu0 0.0
    %158 = vmatprep.subr.mxu0 0.0
    %159 = vmatpush1.xpose.msra.mxu0 0.0
    %160 = vmatprep.subr.mxu0 0.0
    %161 = vmatpush1.xpose.msra.mxu0 0.0
    %162 = vmatprep.subr.mxu0 0.0
    %163 = vmatpush1.xpose.msra.mxu0 0.0
    %164 = vmatprep.subr.mxu0 0.0
    %165 = vmatpush1.xpose.msra.mxu0 0.0
    %166 = vmatprep.subr.mxu0 0.0
    %167 = vmatpush1.xpose.msra.mxu0 0.0
    %168 = vmatprep.subr.mxu0 0.0
    %169 = vmatpush1.xpose.msra.mxu0 0.0
    %170 = vmatprep.subr.mxu0 0.0
    %171 = vmatpush1.xpose.msra.mxu0 0.0
    %172 = vmatprep.subr.mxu0 0.0
    %173 = vmatpush1.xpose.msra.mxu0 0.0
    %174 = vmatprep.subr.mxu0 0.0
    %175 = vmatpush1.xpose.msra.mxu0 0.0
    %176 = vmatprep.subr.mxu0 0.0
    %177 = vmatpush1.xpose.msra.mxu0 0.0
    %178 = vmatprep.subr.mxu0 0.0
    %179 = vmatpush1.xpose.msra.mxu0 0.0
    %180 = vmatprep.subr.mxu0 0.0
    %181 = vmatpush1.xpose.msra.mxu0 0.0
    %182 = vmatprep.subr.mxu0 0.0
    %183 = vmatpush1.xpose.msra.mxu0 0.0
    %184 = vmatprep.subr.mxu0 0.0
    %185 = vmatpush1.xpose.msra.mxu0 0.0
    %186 = vmatprep.subr.mxu0 0.0
    %187 = vmatpush1.xpose.msra.mxu0 0.0
    %188 = vmatprep.subr.mxu0 0.0
    %189 = vmatpush1.xpose.msra.mxu0 0.0
    %190 = vmatprep.subr.mxu0 0.0
    %191 = vmatpush1.xpose.msra.mxu0 0.0
    %192 = vmatprep.subr.mxu0 0.0
    %193 = vmatpush1.xpose.msra.mxu0 0.0
    %194 = vmatprep.subr.mxu0 0.0
    %195 = vmatpush1.xpose.msra.mxu0 0.0
    %196 = vmatprep.subr.mxu0 0.0
    %197 = vmatpush1.xpose.msra.mxu0 0.0
    %198 = vmatprep.subr.mxu0 0.0
    %199 = vmatpush1.xpose.msra.mxu0 0.0
    %200 = vmatprep.subr.mxu0 0.0
    %201 = vmatpush1.xpose.msra.mxu0 0.0
    %202 = vmatprep.subr.mxu0 0.0
    %203 = vmatpush1.xpose.msra.mxu0 0.0
    %204 = vmatprep.subr.mxu0 0.0
    %205 = vmatpush1.xpose.msra.mxu0 0.0
    %206 = vmatprep.subr.mxu0 0.0
    %207 = vmatpush1.xpose.msra.mxu0 0.0
    %208 = vmatprep.subr.mxu0 0.0
    %209 = vmatpush1.xpose.msra.mxu0 0.0
    %210 = vmatprep.mubr.f32.mxu0 0.0
    %211 = vmatmul.mubr.f32.gmra.mrb[0].mxu0 %v142
    %v212 = vpop.f32.mrb[0].mxu0
    %v213 = vadd.f32 0.0, %v212
    %v214 = vpop.f32.mrb[0].mxu0
    %215 = vdwg.mxu0
    %217 = vrot.lane.b32.xlu0 %v135, 96
    %v218 = vpop.permute.xlu0 %217
    %v219 = vsel %vm141, %v135, 0
    %v221 = vsel %vm141, %v218, 0
    %223 = vmatprep.subr.mxu0 0.0
    %224 = vmatpush1.xpose.msra.mxu0 %v221
    %225 = vmatprep.subr.mxu0 0.0
    %226 = vmatpush1.xpose.msra.mxu0 0.0
    %227 = vmatprep.subr.mxu0 0.0
    %228 = vmatpush1.xpose.msra.mxu0 0.0
    %229 = vmatprep.subr.mxu0 0.0
    %230 = vmatpush1.xpose.msra.mxu0 0.0
    %231 = vmatprep.subr.mxu0 0.0
    %232 = vmatpush1.xpose.msra.mxu0 0.0
    %233 = vmatprep.subr.mxu0 0.0
    %234 = vmatpush1.xpose.msra.mxu0 0.0
    %235 = vmatprep.subr.mxu0 0.0
    %236 = vmatpush1.xpose.msra.mxu0 0.0
    %237 = vmatprep.subr.mxu0 0.0
    %238 = vmatpush1.xpose.msra.mxu0 0.0
    %239 = vmatprep.subr.mxu0 0.0
    %240 = vmatpush1.xpose.msra.mxu0 0.0
    %241 = vmatprep.subr.mxu0 0.0
    %242 = vmatpush1.xpose.msra.mxu0 0.0
    %243 = vmatprep.subr.mxu0 0.0
    %244 = vmatpush1.xpose.msra.mxu0 0.0
    %245 = vmatprep.subr.mxu0 0.0
    %246 = vmatpush1.xpose.msra.mxu0 0.0
    %247 = vmatprep.subr.mxu0 0.0
    %248 = vmatpush1.xpose.msra.mxu0 0.0
    %249 = vmatprep.subr.mxu0 0.0
    %250 = vmatpush1.xpose.msra.mxu0 0.0
    %251 = vmatprep.subr.mxu0 0.0
    %252 = vmatpush1.xpose.msra.mxu0 0.0
    %253 = vmatprep.subr.mxu0 0.0
    %254 = vmatpush1.xpose.msra.mxu0 0.0
    %255 = vmatprep.subr.mxu0 0.0
    %256 = vmatpush1.xpose.msra.mxu0 0.0
    %257 = vmatprep.subr.mxu0 0.0
    %258 = vmatpush1.xpose.msra.mxu0 0.0
    %259 = vmatprep.subr.mxu0 0.0
    %260 = vmatpush1.xpose.msra.mxu0 0.0
    %261 = vmatprep.subr.mxu0 0.0
    %262 = vmatpush1.xpose.msra.mxu0 0.0
    %263 = vmatprep.subr.mxu0 0.0
    %264 = vmatpush1.xpose.msra.mxu0 0.0
    %265 = vmatprep.subr.mxu0 0.0
    %266 = vmatpush1.xpose.msra.mxu0 0.0
    %267 = vmatprep.subr.mxu0 0.0
    %268 = vmatpush1.xpose.msra.mxu0 0.0
    %269 = vmatprep.subr.mxu0 0.0
    %270 = vmatpush1.xpose.msra.mxu0 0.0
    %271 = vmatprep.subr.mxu0 0.0
    %272 = vmatpush1.xpose.msra.mxu0 0.0
    %273 = vmatprep.subr.mxu0 0.0
    %274 = vmatpush1.xpose.msra.mxu0 0.0
    %275 = vmatprep.subr.mxu0 0.0
    %276 = vmatpush1.xpose.msra.mxu0 0.0
    %277 = vmatprep.subr.mxu0 0.0
    %278 = vmatpush1.xpose.msra.mxu0 0.0
    %279 = vmatprep.subr.mxu0 0.0
    %280 = vmatpush1.xpose.msra.mxu0 0.0
    %281 = vmatprep.subr.mxu0 0.0
    %282 = vmatpush1.xpose.msra.mxu0 0.0
    %283 = vmatprep.subr.mxu0 0.0
    %284 = vmatpush1.xpose.msra.mxu0 0.0
    %285 = vmatprep.subr.mxu0 0.0
    %286 = vmatpush1.xpose.msra.mxu0 0.0
    %287 = vmatprep.mubr.f32.mxu0 0.0
    %288 = vmatmul.mubr.f32.gmra.mrb[0].mxu0 %v219
    %v289 = vpop.f32.mrb[0].mxu0
    %v290 = vadd.f32 0.0, %v289
    %v291 = vpop.f32.mrb[0].mxu0
    %292 = vdwg.mxu0
    %v293 = vsel %vm141, %v213, -inf
    %294 = vmax.xlane.f32.xlu0 %v293
    %v295 = vpop.xlane.xlu0 %294
    %v296 = vsel %vm141, %v290, -inf
    %297 = vmax.xlane.f32.xlu0 %v296
    %v298 = vpop.xlane.xlu0 %297
    %v299 = vsub.f32 %v213, %v295
    %v300 = vsub.f32 %v290, %v298
    %v301 = vmul.f32 %v299, 1.442695
    %v302 = vpow.pop %v301
    %v303 = vmul.f32 %v300, 1.442695
    %v304 = vpow.pop %v303
    %v305 = vsel %vm141, %v302, 0.0
    %306 = vadd.xlane.f32.xlu0 %v305
    %v307 = vpop.xlane.xlu0 %306
    %v308 = vsel %vm141, %v304, 0.0
    %309 = vadd.xlane.f32.xlu0 %v308
    %v310 = vpop.xlane.xlu0 %309
    %v311 = vrcp.pop %v307
    %v312 = vrcp.pop %v310
    %v313 = vmul.f32 %v302, %v311
    %v314 = vmul.f32 %v304, %v312
    %315 = vrot.lane.b32.xlu0 %v130, 64
    %v316 = vpop.permute.xlu0 %315
    %v319 = vsel %vm141, %v313, 0
    %321 = vmatprep.subr.mxu0 0.0
    %322 = vmatpush1.msra.mxu0 %v316
    %323 = vmatprep.subr.mxu0 0.0
    %324 = vmatpush1.msra.mxu0 0.0
    %325 = vmatprep.subr.mxu0 0.0
    %326 = vmatpush1.msra.mxu0 0.0
    %327 = vmatprep.subr.mxu0 0.0
    %328 = vmatpush1.msra.mxu0 0.0
    %329 = vmatprep.subr.mxu0 0.0
    %330 = vmatpush1.msra.mxu0 0.0
    %331 = vmatprep.subr.mxu0 0.0
    %332 = vmatpush1.msra.mxu0 0.0
    %333 = vmatprep.subr.mxu0 0.0
    %334 = vmatpush1.msra.mxu0 0.0
    %335 = vmatprep.subr.mxu0 0.0
    %336 = vmatpush1.msra.mxu0 0.0
    %337 = vmatprep.subr.mxu0 0.0
    %338 = vmatpush1.msra.mxu0 0.0
    %339 = vmatprep.subr.mxu0 0.0
    %340 = vmatpush1.msra.mxu0 0.0
    %341 = vmatprep.subr.mxu0 0.0
    %342 = vmatpush1.msra.mxu0 0.0
    %343 = vmatprep.subr.mxu0 0.0
    %344 = vmatpush1.msra.mxu0 0.0
    %345 = vmatprep.subr.mxu0 0.0
    %346 = vmatpush1.msra.mxu0 0.0
    %347 = vmatprep.subr.mxu0 0.0
    %348 = vmatpush1.msra.mxu0 0.0
    %349 = vmatprep.subr.mxu0 0.0
    %350 = vmatpush1.msra.mxu0 0.0
    %351 = vmatprep.subr.mxu0 0.0
    %352 = vmatpush1.msra.mxu0 0.0
    %353 = vmatprep.subr.mxu0 0.0
    %354 = vmatpush1.msra.mxu0 0.0
    %355 = vmatprep.subr.mxu0 0.0
    %356 = vmatpush1.msra.mxu0 0.0
    %357 = vmatprep.subr.mxu0 0.0
    %358 = vmatpush1.msra.mxu0 0.0
    %359 = vmatprep.subr.mxu0 0.0
    %360 = vmatpush1.msra.mxu0 0.0
    %361 = vmatprep.subr.mxu0 0.0
    %362 = vmatpush1.msra.mxu0 0.0
    %363 = vmatprep.subr.mxu0 0.0
    %364 = vmatpush1.msra.mxu0 0.0
    %365 = vmatprep.subr.mxu0 0.0
    %366 = vmatpush1.msra.mxu0 0.0
    %367 = vmatprep.subr.mxu0 0.0
    %368 = vmatpush1.msra.mxu0 0.0
    %369 = vmatprep.subr.mxu0 0.0
    %370 = vmatpush1.msra.mxu0 0.0
    %371 = vmatprep.subr.mxu0 0.0
    %372 = vmatpush1.msra.mxu0 0.0
    %373 = vmatprep.subr.mxu0 0.0
    %374 = vmatpush1.msra.mxu0 0.0
    %375 = vmatprep.subr.mxu0 0.0
    %376 = vmatpush1.msra.mxu0 0.0
    %377 = vmatprep.subr.mxu0 0.0
    %378 = vmatpush1.msra.mxu0 0.0
    %379 = vmatprep.subr.mxu0 0.0
    %380 = vmatpush1.msra.mxu0 0.0
    %381 = vmatprep.subr.mxu0 0.0
    %382 = vmatpush1.msra.mxu0 0.0
    %383 = vmatprep.subr.mxu0 0.0
    %384 = vmatpush1.msra.mxu0 0.0
    %385 = vmatprep.mubr.f32.mxu0 0.0
    %386 = vmatmul.mubr.f32.gmra.mrb[0].mxu0 %v319
    %v387 = vpop.f32.mrb[0].mxu0
    %v388 = vadd.f32 0.0, %v387
    %v389 = vpop.f32.mrb[0].mxu0
    %390 = vdwg.mxu0
    %391 = vrot.lane.b32.xlu0 %v135, 64
    %v392 = vpop.permute.xlu0 %391
    %v395 = vsel %vm141, %v314, 0
    %397 = vmatprep.subr.mxu0 0.0
    %398 = vmatpush1.msra.mxu0 %v392
    %399 = vmatprep.subr.mxu0 0.0
    %400 = vmatpush1.msra.mxu0 0.0
    %401 = vmatprep.subr.mxu0 0.0
    %402 = vmatpush1.msra.mxu0 0.0
    %403 = vmatprep.subr.mxu0 0.0
    %404 = vmatpush1.msra.mxu0 0.0
    %405 = vmatprep.subr.mxu0 0.0
    %406 = vmatpush1.msra.mxu0 0.0
    %407 = vmatprep.subr.mxu0 0.0
    %408 = vmatpush1.msra.mxu0 0.0
    %409 = vmatprep.subr.mxu0 0.0
    %410 = vmatpush1.msra.mxu0 0.0
    %411 = vmatprep.subr.mxu0 0.0
    %412 = vmatpush1.msra.mxu0 0.0
    %413 = vmatprep.subr.mxu0 0.0
    %414 = vmatpush1.msra.mxu0 0.0
    %415 = vmatprep.subr.mxu0 0.0
    %416 = vmatpush1.msra.mxu0 0.0
    %417 = vmatprep.subr.mxu0 0.0
    %418 = vmatpush1.msra.mxu0 0.0
    %419 = vmatprep.subr.mxu0 0.0
    %420 = vmatpush1.msra.mxu0 0.0
    %421 = vmatprep.subr.mxu0 0.0
    %422 = vmatpush1.msra.mxu0 0.0
    %423 = vmatprep.subr.mxu0 0.0
    %424 = vmatpush1.msra.mxu0 0.0
    %425 = vmatprep.subr.mxu0 0.0
    %426 = vmatpush1.msra.mxu0 0.0
    %427 = vmatprep.subr.mxu0 0.0
    %428 = vmatpush1.msra.mxu0 0.0
    %429 = vmatprep.subr.mxu0 0.0
    %430 = vmatpush1.msra.mxu0 0.0
    %431 = vmatprep.subr.mxu0 0.0
    %432 = vmatpush1.msra.mxu0 0.0
    %433 = vmatprep.subr.mxu0 0.0
    %434 = vmatpush1.msra.mxu0 0.0
    %435 = vmatprep.subr.mxu0 0.0
    %436 = vmatpush1.msra.mxu0 0.0
    %437 = vmatprep.subr.mxu0 0.0
    %438 = vmatpush1.msra.mxu0 0.0
    %439 = vmatprep.subr.mxu0 0.0
    %440 = vmatpush1.msra.mxu0 0.0
    %441 = vmatprep.subr.mxu0 0.0
    %442 = vmatpush1.msra.mxu0 0.0
    %443 = vmatprep.subr.mxu0 0.0
    %444 = vmatpush1.msra.mxu0 0.0
    %445 = vmatprep.subr.mxu0 0.0
    %446 = vmatpush1.msra.mxu0 0.0
    %447 = vmatprep.subr.mxu0 0.0
    %448 = vmatpush1.msra.mxu0 0.0
    %449 = vmatprep.subr.mxu0 0.0
    %450 = vmatpush1.msra.mxu0 0.0
    %451 = vmatprep.subr.mxu0 0.0
    %452 = vmatpush1.msra.mxu0 0.0
    %453 = vmatprep.subr.mxu0 0.0
    %454 = vmatpush1.msra.mxu0 0.0
    %455 = vmatprep.subr.mxu0 0.0
    %456 = vmatpush1.msra.mxu0 0.0
    %457 = vmatprep.subr.mxu0 0.0
    %458 = vmatpush1.msra.mxu0 0.0
    %459 = vmatprep.subr.mxu0 0.0
    %460 = vmatpush1.msra.mxu0 0.0
    %461 = vmatprep.mubr.f32.mxu0 0.0
    %462 = vmatmul.mubr.f32.gmra.mrb[0].mxu0 %v395
    %v463 = vpop.f32.mrb[0].mxu0
    %v464 = vadd.f32 0.0, %v463
    %v465 = vpop.f32.mrb[0].mxu0
    %466 = vdwg.mxu0
    %467 = vrot.lane.b32.xlu0 %v130, 120
    %v468 = vpop.permute.xlu0 %467
    %469 = vrot.lane.b32.xlu0 %v130, 88
    %v470 = vpop.permute.xlu0 %469
    %v471 = vsel %vm141, %v468, 0
    %v473 = vsel %vm141, %v470, 0
    %475 = vmatprep.subr.mxu0 0.0
    %476 = vmatpush1.xpose.msra.mxu0 %v473
    %477 = vmatprep.subr.mxu0 0.0
    %478 = vmatpush1.xpose.msra.mxu0 0.0
    %479 = vmatprep.subr.mxu0 0.0
    %480 = vmatpush1.xpose.msra.mxu0 0.0
    %481 = vmatprep.subr.mxu0 0.0
    %482 = vmatpush1.xpose.msra.mxu0 0.0
    %483 = vmatprep.subr.mxu0 0.0
    %484 = vmatpush1.xpose.msra.mxu0 0.0
    %485 = vmatprep.subr.mxu0 0.0
    %486 = vmatpush1.xpose.msra.mxu0 0.0
    %487 = vmatprep.subr.mxu0 0.0
    %488 = vmatpush1.xpose.msra.mxu0 0.0
    %489 = vmatprep.subr.mxu0 0.0
    %490 = vmatpush1.xpose.msra.mxu0 0.0
    %491 = vmatprep.subr.mxu0 0.0
    %492 = vmatpush1.xpose.msra.mxu0 0.0
    %493 = vmatprep.subr.mxu0 0.0
    %494 = vmatpush1.xpose.msra.mxu0 0.0
    %495 = vmatprep.subr.mxu0 0.0
    %496 = vmatpush1.xpose.msra.mxu0 0.0
    %497 = vmatprep.subr.mxu0 0.0
    %498 = vmatpush1.xpose.msra.mxu0 0.0
    %499 = vmatprep.subr.mxu0 0.0
    %500 = vmatpush1.xpose.msra.mxu0 0.0
    %501 = vmatprep.subr.mxu0 0.0
    %502 = vmatpush1.xpose.msra.mxu0 0.0
    %503 = vmatprep.subr.mxu0 0.0
    %504 = vmatpush1.xpose.msra.mxu0 0.0
    %505 = vmatprep.subr.mxu0 0.0
    %506 = vmatpush1.xpose.msra.mxu0 0.0
    %507 = vmatprep.subr.mxu0 0.0
    %508 = vmatpush1.xpose.msra.mxu0 0.0
    %509 = vmatprep.subr.mxu0 0.0
    %510 = vmatpush1.xpose.msra.mxu0 0.0
    %511 = vmatprep.subr.mxu0 0.0
    %512 = vmatpush1.xpose.msra.mxu0 0.0
    %513 = vmatprep.subr.mxu0 0.0
    %514 = vmatpush1.xpose.msra.mxu0 0.0
    %515 = vmatprep.subr.mxu0 0.0
    %516 = vmatpush1.xpose.msra.mxu0 0.0
    %517 = vmatprep.subr.mxu0 0.0
    %518 = vmatpush1.xpose.msra.mxu0 0.0
    %519 = vmatprep.subr.mxu0 0.0
    %520 = vmatpush1.xpose.msra.mxu0 0.0
    %521 = vmatprep.subr.mxu0 0.0
    %522 = vmatpush1.xpose.msra.mxu0 0.0
    %523 = vmatprep.subr.mxu0 0.0
    %524 = vmatpush1.xpose.msra.mxu0 0.0
    %525 = vmatprep.subr.mxu0 0.0
    %526 = vmatpush1.xpose.msra.mxu0 0.0
    %527 = vmatprep.subr.mxu0 0.0
    %528 = vmatpush1.xpose.msra.mxu0 0.0
    %529 = vmatprep.subr.mxu0 0.0
    %530 = vmatpush1.xpose.msra.mxu0 0.0
    %531 = vmatprep.subr.mxu0 0.0
    %532 = vmatpush1.xpose.msra.mxu0 0.0
    %533 = vmatprep.subr.mxu0 0.0
    %534 = vmatpush1.xpose.msra.mxu0 0.0
    %535 = vmatprep.subr.mxu0 0.0
    %536 = vmatpush1.xpose.msra.mxu0 0.0
    %537 = vmatprep.subr.mxu0 0.0
    %538 = vmatpush1.xpose.msra.mxu0 0.0
    %539 = vmatprep.mubr.f32.mxu0 0.0
    %540 = vmatmul.mubr.f32.gmra.mrb[0].mxu0 %v471
    %v541 = vpop.f32.mrb[0].mxu0
    %v542 = vadd.f32 0.0, %v541
    %v543 = vpop.f32.mrb[0].mxu0
    %544 = vdwg.mxu0
    %545 = vrot.lane.b32.xlu0 %v135, 120
    %v546 = vpop.permute.xlu0 %545
    %547 = vrot.lane.b32.xlu0 %v135, 88
    %v548 = vpop.permute.xlu0 %547
    %v549 = vsel %vm141, %v546, 0
    %v551 = vsel %vm141, %v548, 0
    %553 = vmatprep.subr.mxu0 0.0
    %554 = vmatpush1.xpose.msra.mxu0 %v551
    %555 = vmatprep.subr.mxu0 0.0
    %556 = vmatpush1.xpose.msra.mxu0 0.0
    %557 = vmatprep.subr.mxu0 0.0
    %558 = vmatpush1.xpose.msra.mxu0 0.0
    %559 = vmatprep.subr.mxu0 0.0
    %560 = vmatpush1.xpose.msra.mxu0 0.0
    %561 = vmatprep.subr.mxu0 0.0
    %562 = vmatpush1.xpose.msra.mxu0 0.0
    %563 = vmatprep.subr.mxu0 0.0
    %564 = vmatpush1.xpose.msra.mxu0 0.0
    %565 = vmatprep.subr.mxu0 0.0
    %566 = vmatpush1.xpose.msra.mxu0 0.0
    %567 = vmatprep.subr.mxu0 0.0
    %568 = vmatpush1.xpose.msra.mxu0 0.0
    %569 = vmatprep.subr.mxu0 0.0
    %570 = vmatpush1.xpose.msra.mxu0 0.0
    %571 = vmatprep.subr.mxu0 0.0
    %572 = vmatpush1.xpose.msra.mxu0 0.0
    %573 = vmatprep.subr.mxu0 0.0
    %574 = vmatpush1.xpose.msra.mxu0 0.0
    %575 = vmatprep.subr.mxu0 0.0
    %576 = vmatpush1.xpose.msra.mxu0 0.0
    %577 = vmatprep.subr.mxu0 0.0
    %578 = vmatpush1.xpose.msra.mxu0 0.0
    %579 = vmatprep.subr.mxu0 0.0
    %580 = vmatpush1.xpose.msra.mxu0 0.0
    %581 = vmatprep.subr.mxu0 0.0
    %582 = vmatpush1.xpose.msra.mxu0 0.0
    %583 = vmatprep.subr.mxu0 0.0
    %584 = vmatpush1.xpose.msra.mxu0 0.0
    %585 = vmatprep.subr.mxu0 0.0
    %586 = vmatpush1.xpose.msra.mxu0 0.0
    %587 = vmatprep.subr.mxu0 0.0
    %588 = vmatpush1.xpose.msra.mxu0 0.0
    %589 = vmatprep.subr.mxu0 0.0
    %590 = vmatpush1.xpose.msra.mxu0 0.0
    %591 = vmatprep.subr.mxu0 0.0
    %592 = vmatpush1.xpose.msra.mxu0 0.0
    %593 = vmatprep.subr.mxu0 0.0
    %594 = vmatpush1.xpose.msra.mxu0 0.0
    %595 = vmatprep.subr.mxu0 0.0
    %596 = vmatpush1.xpose.msra.mxu0 0.0
    %597 = vmatprep.subr.mxu0 0.0
    %598 = vmatpush1.xpose.msra.mxu0 0.0
    %599 = vmatprep.subr.mxu0 0.0
    %600 = vmatpush1.xpose.msra.mxu0 0.0
    %601 = vmatprep.subr.mxu0 0.0
    %602 = vmatpush1.xpose.msra.mxu0 0.0
    %603 = vmatprep.subr.mxu0 0.0
    %604 = vmatpush1.xpose.msra.mxu0 0.0
    %605 = vmatprep.subr.mxu0 0.0
    %606 = vmatpush1.xpose.msra.mxu0 0.0
    %607 = vmatprep.subr.mxu0 0.0
    %608 = vmatpush1.xpose.msra.mxu0 0.0
    %609 = vmatprep.subr.mxu0 0.0
    %610 = vmatpush1.xpose.msra.mxu0 0.0
    %611 = vmatprep.subr.mxu0 0.0
    %612 = vmatpush1.xpose.msra.mxu0 0.0
    %613 = vmatprep.subr.mxu0 0.0
    %614 = vmatpush1.xpose.msra.mxu0 0.0
    %615 = vmatprep.subr.mxu0 0.0
    %616 = vmatpush1.xpose.msra.mxu0 0.0
    %617 = vmatprep.mubr.f32.mxu0 0.0
    %618 = vmatmul.mubr.f32.gmra.mrb[0].mxu0 %v549
    %v619 = vpop.f32.mrb[0].mxu0
    %v620 = vadd.f32 0.0, %v619
    %v621 = vpop.f32.mrb[0].mxu0
    %622 = vdwg.mxu0
    %v623 = vsel %vm141, %v542, -inf
    %624 = vmax.xlane.f32.xlu0 %v623
    %v625 = vpop.xlane.xlu0 %624
    %v626 = vsel %vm141, %v620, -inf
    %627 = vmax.xlane.f32.xlu0 %v626
    %v628 = vpop.xlane.xlu0 %627
    %v629 = vsub.f32 %v542, %v625
    %v630 = vsub.f32 %v620, %v628
    %v631 = vmul.f32 %v629, 1.442695
    %v632 = vpow.pop %v631
    %v633 = vmul.f32 %v630, 1.442695
    %v634 = vpow.pop %v633
    %v635 = vsel %vm141, %v632, 0.0
    %636 = vadd.xlane.f32.xlu0 %v635
    %v637 = vpop.xlane.xlu0 %636
    %v638 = vsel %vm141, %v634, 0.0
    %639 = vadd.xlane.f32.xlu0 %v638
    %v640 = vpop.xlane.xlu0 %639
    %v641 = vrcp.pop %v637
    %v642 = vrcp.pop %v640
    %v643 = vmul.f32 %v632, %v641
    %v644 = vmul.f32 %v634, %v642
    %645 = vrot.lane.b32.xlu0 %v130, 56
    %v646 = vpop.permute.xlu0 %645
    %v649 = vsel %vm141, %v643, 0
    %651 = vmatprep.subr.mxu0 0.0
    %652 = vmatpush1.msra.mxu0 %v646
    %653 = vmatprep.subr.mxu0 0.0
    %654 = vmatpush1.msra.mxu0 0.0
    %655 = vmatprep.subr.mxu0 0.0
    %656 = vmatpush1.msra.mxu0 0.0
    %657 = vmatprep.subr.mxu0 0.0
    %658 = vmatpush1.msra.mxu0 0.0
    %659 = vmatprep.subr.mxu0 0.0
    %660 = vmatpush1.msra.mxu0 0.0
    %661 = vmatprep.subr.mxu0 0.0
    %662 = vmatpush1.msra.mxu0 0.0
    %663 = vmatprep.subr.mxu0 0.0
    %664 = vmatpush1.msra.mxu0 0.0
    %665 = vmatprep.subr.mxu0 0.0
    %666 = vmatpush1.msra.mxu0 0.0
    %667 = vmatprep.subr.mxu0 0.0
    %668 = vmatpush1.msra.mxu0 0.0
    %669 = vmatprep.subr.mxu0 0.0
    %670 = vmatpush1.msra.mxu0 0.0
    %671 = vmatprep.subr.mxu0 0.0
    %672 = vmatpush1.msra.mxu0 0.0
    %673 = vmatprep.subr.mxu0 0.0
    %674 = vmatpush1.msra.mxu0 0.0
    %675 = vmatprep.subr.mxu0 0.0
    %676 = vmatpush1.msra.mxu0 0.0
    %677 = vmatprep.subr.mxu0 0.0
    %678 = vmatpush1.msra.mxu0 0.0
    %679 = vmatprep.subr.mxu0 0.0
    %680 = vmatpush1.msra.mxu0 0.0
    %681 = vmatprep.subr.mxu0 0.0
    %682 = vmatpush1.msra.mxu0 0.0
    %683 = vmatprep.subr.mxu0 0.0
    %684 = vmatpush1.msra.mxu0 0.0
    %685 = vmatprep.subr.mxu0 0.0
    %686 = vmatpush1.msra.mxu0 0.0
    %687 = vmatprep.subr.mxu0 0.0
    %688 = vmatpush1.msra.mxu0 0.0
    %689 = vmatprep.subr.mxu0 0.0
    %690 = vmatpush1.msra.mxu0 0.0
    %691 = vmatprep.subr.mxu0 0.0
    %692 = vmatpush1.msra.mxu0 0.0
    %693 = vmatprep.subr.mxu0 0.0
    %694 = vmatpush1.msra.mxu0 0.0
    %695 = vmatprep.subr.mxu0 0.0
    %696 = vmatpush1.msra.mxu0 0.0
    %697 = vmatprep.subr.mxu0 0.0
    %698 = vmatpush1.msra.mxu0 0.0
    %699 = vmatprep.subr.mxu0 0.0
    %700 = vmatpush1.msra.mxu0 0.0
    %701 = vmatprep.subr.mxu0 0.0
    %702 = vmatpush1.msra.mxu0 0.0
    %703 = vmatprep.subr.mxu0 0.0
    %704 = vmatpush1.msra.mxu0 0.0
    %705 = vmatprep.subr.mxu0 0.0
    %706 = vmatpush1.msra.mxu0 0.0
    %707 = vmatprep.subr.mxu0 0.0
    %708 = vmatpush1.msra.mxu0 0.0
    %709 = vmatprep.subr.mxu0 0.0
    %710 = vmatpush1.msra.mxu0 0.0
    %711 = vmatprep.subr.mxu0 0.0
    %712 = vmatpush1.msra.mxu0 0.0
    %713 = vmatprep.subr.mxu0 0.0
    %714 = vmatpush1.msra.mxu0 0.0
    %715 = vmatprep.mubr.f32.mxu0 0.0
    %716 = vmatmul.mubr.f32.gmra.mrb[0].mxu0 %v649
    %v717 = vpop.f32.mrb[0].mxu0
    %v718 = vadd.f32 0.0, %v717
    %v719 = vpop.f32.mrb[0].mxu0
    %720 = vdwg.mxu0
    %721 = vrot.lane.b32.xlu0 %v135, 56
    %v722 = vpop.permute.xlu0 %721
    %v725 = vsel %vm141, %v644, 0
    %727 = vmatprep.subr.mxu0 0.0
    %728 = vmatpush1.msra.mxu0 %v722
    %729 = vmatprep.subr.mxu0 0.0
    %730 = vmatpush1.msra.mxu0 0.0
    %731 = vmatprep.subr.mxu0 0.0
    %732 = vmatpush1.msra.mxu0 0.0
    %733 = vmatprep.subr.mxu0 0.0
    %734 = vmatpush1.msra.mxu0 0.0
    %735 = vmatprep.subr.mxu0 0.0
    %736 = vmatpush1.msra.mxu0 0.0
    %737 = vmatprep.subr.mxu0 0.0
    %738 = vmatpush1.msra.mxu0 0.0
    %739 = vmatprep.subr.mxu0 0.0
    %740 = vmatpush1.msra.mxu0 0.0
    %741 = vmatprep.subr.mxu0 0.0
    %742 = vmatpush1.msra.mxu0 0.0
    %743 = vmatprep.subr.mxu0 0.0
    %744 = vmatpush1.msra.mxu0 0.0
    %745 = vmatprep.subr.mxu0 0.0
    %746 = vmatpush1.msra.mxu0 0.0
    %747 = vmatprep.subr.mxu0 0.0
    %748 = vmatpush1.msra.mxu0 0.0
    %749 = vmatprep.subr.mxu0 0.0
    %750 = vmatpush1.msra.mxu0 0.0
    %751 = vmatprep.subr.mxu0 0.0
    %752 = vmatpush1.msra.mxu0 0.0
    %753 = vmatprep.subr.mxu0 0.0
    %754 = vmatpush1.msra.mxu0 0.0
    %755 = vmatprep.subr.mxu0 0.0
    %756 = vmatpush1.msra.mxu0 0.0
    %757 = vmatprep.subr.mxu0 0.0
    %758 = vmatpush1.msra.mxu0 0.0
    %759 = vmatprep.subr.mxu0 0.0
    %760 = vmatpush1.msra.mxu0 0.0
    %761 = vmatprep.subr.mxu0 0.0
    %762 = vmatpush1.msra.mxu0 0.0
    %763 = vmatprep.subr.mxu0 0.0
    %764 = vmatpush1.msra.mxu0 0.0
    %765 = vmatprep.subr.mxu0 0.0
    %766 = vmatpush1.msra.mxu0 0.0
    %767 = vmatprep.subr.mxu0 0.0
    %768 = vmatpush1.msra.mxu0 0.0
    %769 = vmatprep.subr.mxu0 0.0
    %770 = vmatpush1.msra.mxu0 0.0
    %771 = vmatprep.subr.mxu0 0.0
    %772 = vmatpush1.msra.mxu0 0.0
    %773 = vmatprep.subr.mxu0 0.0
    %774 = vmatpush1.msra.mxu0 0.0
    %775 = vmatprep.subr.mxu0 0.0
    %776 = vmatpush1.msra.mxu0 0.0
    %777 = vmatprep.subr.mxu0 0.0
    %778 = vmatpush1.msra.mxu0 0.0
    %779 = vmatprep.subr.mxu0 0.0
    %780 = vmatpush1.msra.mxu0 0.0
    %781 = vmatprep.subr.mxu0 0.0
    %782 = vmatpush1.msra.mxu0 0.0
    %783 = vmatprep.subr.mxu0 0.0
    %784 = vmatpush1.msra.mxu0 0.0
    %785 = vmatprep.subr.mxu0 0.0
    %786 = vmatpush1.msra.mxu0 0.0
    %787 = vmatprep.subr.mxu0 0.0
    %788 = vmatpush1.msra.mxu0 0.0
    %789 = vmatprep.subr.mxu0 0.0
    %790 = vmatpush1.msra.mxu0 0.0
    %791 = vmatprep.mubr.f32.mxu0 0.0
    %792 = vmatmul.mubr.f32.gmra.mrb[0].mxu0 %v725
    %v793 = vpop.f32.mrb[0].mxu0
    %v794 = vadd.f32 0.0, %v793
    %v795 = vpop.f32.mrb[0].mxu0
    %796 = vdwg.mxu0
    %797 = vrot.lane.b32.xlu0 %v130, 112
    %v798 = vpop.permute.xlu0 %797
    %799 = vrot.lane.b32.xlu0 %v130, 80
    %v800 = vpop.permute.xlu0 %799
    %v801 = vsel %vm141, %v798, 0
    %v803 = vsel %vm141, %v800, 0
    %805 = vmatprep.subr.mxu0 0.0
    %806 = vmatpush1.xpose.msra.mxu0 %v803
    %807 = vmatprep.subr.mxu0 0.0
    %808 = vmatpush1.xpose.msra.mxu0 0.0
    %809 = vmatprep.subr.mxu0 0.0
    %810 = vmatpush1.xpose.msra.mxu0 0.0
    %811 = vmatprep.subr.mxu0 0.0
    %812 = vmatpush1.xpose.msra.mxu0 0.0
    %813 = vmatprep.subr.mxu0 0.0
    %814 = vmatpush1.xpose.msra.mxu0 0.0
    %815 = vmatprep.subr.mxu0 0.0
    %816 = vmatpush1.xpose.msra.mxu0 0.0
    %817 = vmatprep.subr.mxu0 0.0
    %818 = vmatpush1.xpose.msra.mxu0 0.0
    %819 = vmatprep.subr.mxu0 0.0
    %820 = vmatpush1.xpose.msra.mxu0 0.0
    %821 = vmatprep.subr.mxu0 0.0
    %822 = vmatpush1.xpose.msra.mxu0 0.0
    %823 = vmatprep.subr.mxu0 0.0
    %824 = vmatpush1.xpose.msra.mxu0 0.0
    %825 = vmatprep.subr.mxu0 0.0
    %826 = vmatpush1.xpose.msra.mxu0 0.0
    %827 = vmatprep.subr.mxu0 0.0
    %828 = vmatpush1.xpose.msra.mxu0 0.0
    %829 = vmatprep.subr.mxu0 0.0
    %830 = vmatpush1.xpose.msra.mxu0 0.0
    %831 = vmatprep.subr.mxu0 0.0
    %832 = vmatpush1.xpose.msra.mxu0 0.0
    %833 = vmatprep.subr.mxu0 0.0
    %834 = vmatpush1.xpose.msra.mxu0 0.0
    %835 = vmatprep.subr.mxu0 0.0
    %836 = vmatpush1.xpose.msra.mxu0 0.0
    %837 = vmatprep.subr.mxu0 0.0
    %838 = vmatpush1.xpose.msra.mxu0 0.0
    %839 = vmatprep.subr.mxu0 0.0
    %840 = vmatpush1.xpose.msra.mxu0 0.0
    %841 = vmatprep.subr.mxu0 0.0
    %842 = vmatpush1.xpose.msra.mxu0 0.0
    %843 = vmatprep.subr.mxu0 0.0
    %844 = vmatpush1.xpose.msra.mxu0 0.0
    %845 = vmatprep.subr.mxu0 0.0
    %846 = vmatpush1.xpose.msra.mxu0 0.0
    %847 = vmatprep.subr.mxu0 0.0
    %848 = vmatpush1.xpose.msra.mxu0 0.0
    %849 = vmatprep.subr.mxu0 0.0
    %850 = vmatpush1.xpose.msra.mxu0 0.0
    %851 = vmatprep.subr.mxu0 0.0
    %852 = vmatpush1.xpose.msra.mxu0 0.0
    %853 = vmatprep.subr.mxu0 0.0
    %854 = vmatpush1.xpose.msra.mxu0 0.0
    %855 = vmatprep.subr.mxu0 0.0
    %856 = vmatpush1.xpose.msra.mxu0 0.0
    %857 = vmatprep.subr.mxu0 0.0
    %858 = vmatpush1.xpose.msra.mxu0 0.0
    %859 = vmatprep.subr.mxu0 0.0
    %860 = vmatpush1.xpose.msra.mxu0 0.0
    %861 = vmatprep.subr.mxu0 0.0
    %862 = vmatpush1.xpose.msra.mxu0 0.0
    %863 = vmatprep.subr.mxu0 0.0
    %864 = vmatpush1.xpose.msra.mxu0 0.0
    %865 = vmatprep.subr.mxu0 0.0
    %866 = vmatpush1.xpose.msra.mxu0 0.0
    %867 = vmatprep.subr.mxu0 0.0
    %868 = vmatpush1.xpose.msra.mxu0 0.0
    %869 = vmatprep.mubr.f32.mxu0 0.0
    %870 = vmatmul.mubr.f32.gmra.mrb[0].mxu0 %v801
    %v871 = vpop.f32.mrb[0].mxu0
    %v872 = vadd.f32 0.0, %v871
    %v873 = vpop.f32.mrb[0].mxu0
    %874 = vdwg.mxu0
    %875 = vrot.lane.b32.xlu0 %v135, 112
    %v876 = vpop.permute.xlu0 %875
    %877 = vrot.lane.b32.xlu0 %v135, 80
    %v878 = vpop.permute.xlu0 %877
    %v879 = vsel %vm141, %v876, 0
    %v881 = vsel %vm141, %v878, 0
    %883 = vmatprep.subr.mxu0 0.0
    %884 = vmatpush1.xpose.msra.mxu0 %v881
    %885 = vmatprep.subr.mxu0 0.0
    %886 = vmatpush1.xpose.msra.mxu0 0.0
    %887 = vmatprep.subr.mxu0 0.0
    %888 = vmatpush1.xpose.msra.mxu0 0.0
    %889 = vmatprep.subr.mxu0 0.0
    %890 = vmatpush1.xpose.msra.mxu0 0.0
    %891 = vmatprep.subr.mxu0 0.0
    %892 = vmatpush1.xpose.msra.mxu0 0.0
    %893 = vmatprep.subr.mxu0 0.0
    %894 = vmatpush1.xpose.msra.mxu0 0.0
    %895 = vmatprep.subr.mxu0 0.0
    %896 = vmatpush1.xpose.msra.mxu0 0.0
    %897 = vmatprep.subr.mxu0 0.0
    %898 = vmatpush1.xpose.msra.mxu0 0.0
    %899 = vmatprep.subr.mxu0 0.0
    %900 = vmatpush1.xpose.msra.mxu0 0.0
    %901 = vmatprep.subr.mxu0 0.0
    %902 = vmatpush1.xpose.msra.mxu0 0.0
    %903 = vmatprep.subr.mxu0 0.0
    %904 = vmatpush1.xpose.msra.mxu0 0.0
    %905 = vmatprep.subr.mxu0 0.0
    %906 = vmatpush1.xpose.msra.mxu0 0.0
    %907 = vmatprep.subr.mxu0 0.0
    %908 = vmatpush1.xpose.msra.mxu0 0.0
    %909 = vmatprep.subr.mxu0 0.0
    %910 = vmatpush1.xpose.msra.mxu0 0.0
    %911 = vmatprep.subr.mxu0 0.0
    %912 = vmatpush1.xpose.msra.mxu0 0.0
    %913 = vmatprep.subr.mxu0 0.0
    %914 = vmatpush1.xpose.msra.mxu0 0.0
    %915 = vmatprep.subr.mxu0 0.0
    %916 = vmatpush1.xpose.msra.mxu0 0.0
    %917 = vmatprep.subr.mxu0 0.0
    %918 = vmatpush1.xpose.msra.mxu0 0.0
    %919 = vmatprep.subr.mxu0 0.0
    %920 = vmatpush1.xpose.msra.mxu0 0.0
    %921 = vmatprep.subr.mxu0 0.0
    %922 = vmatpush1.xpose.msra.mxu0 0.0
    %923 = vmatprep.subr.mxu0 0.0
    %924 = vmatpush1.xpose.msra.mxu0 0.0
    %925 = vmatprep.subr.mxu0 0.0
    %926 = vmatpush1.xpose.msra.mxu0 0.0
    %927 = vmatprep.subr.mxu0 0.0
    %928 = vmatpush1.xpose.msra.mxu0 0.0
    %929 = vmatprep.subr.mxu0 0.0
    %930 = vmatpush1.xpose.msra.mxu0 0.0
    %931 = vmatprep.subr.mxu0 0.0
    %932 = vmatpush1.xpose.msra.mxu0 0.0
    %933 = vmatprep.subr.mxu0 0.0
    %934 = vmatpush1.xpose.msra.mxu0 0.0
    %935 = vmatprep.subr.mxu0 0.0
    %936 = vmatpush1.xpose.msra.mxu0 0.0
    %937 = vmatprep.subr.mxu0 0.0
    %938 = vmatpush1.xpose.msra.mxu0 0.0
    %939 = vmatprep.subr.mxu0 0.0
    %940 = vmatpush1.xpose.msra.mxu0 0.0
    %941 = vmatprep.subr.mxu0 0.0
    %942 = vmatpush1.xpose.msra.mxu0 0.0
    %943 = vmatprep.subr.mxu0 0.0
    %944 = vmatpush1.xpose.msra.mxu0 0.0
    %945 = vmatprep.subr.mxu0 0.0
    %946 = vmatpush1.xpose.msra.mxu0 0.0
    %947 = vmatprep.mubr.f32.mxu0 0.0
    %948 = vmatmul.mubr.f32.gmra.mrb[0].mxu0 %v879
    %v949 = vpop.f32.mrb[0].mxu0
    %v950 = vadd.f32 0.0, %v949
    %v951 = vpop.f32.mrb[0].mxu0
    %952 = vdwg.mxu0
    %v953 = vsel %vm141, %v872, -inf
    %954 = vmax.xlane.f32.xlu0 %v953
    %v955 = vpop.xlane.xlu0 %954
    %v956 = vsel %vm141, %v950, -inf
    %957 = vmax.xlane.f32.xlu0 %v956
    %v958 = vpop.xlane.xlu0 %957
    %v959 = vsub.f32 %v872, %v955
    %v960 = vsub.f32 %v950, %v958
    %v961 = vmul.f32 %v959, 1.442695
    %v962 = vpow.pop %v961
    %v963 = vmul.f32 %v960, 1.442695
    %v964 = vpow.pop %v963
    %v965 = vsel %vm141, %v962, 0.0
    %966 = vadd.xlane.f32.xlu0 %v965
    %v967 = vpop.xlane.xlu0 %966
    %v968 = vsel %vm141, %v964, 0.0
    %969 = vadd.xlane.f32.xlu0 %v968
    %v970 = vpop.xlane.xlu0 %969
    %v971 = vrcp.pop %v967
    %v972 = vrcp.pop %v970
    %v973 = vmul.f32 %v962, %v971
    %v974 = vmul.f32 %v964, %v972
    %975 = vrot.lane.b32.xlu0 %v130, 48
    %v976 = vpop.permute.xlu0 %975
    %v979 = vsel %vm141, %v973, 0
    %981 = vmatprep.subr.mxu0 0.0
    %982 = vmatpush1.msra.mxu0 %v976
    %983 = vmatprep.subr.mxu0 0.0
    %984 = vmatpush1.msra.mxu0 0.0
    %985 = vmatprep.subr.mxu0 0.0
    %986 = vmatpush1.msra.mxu0 0.0
    %987 = vmatprep.subr.mxu0 0.0
    %988 = vmatpush1.msra.mxu0 0.0
    %989 = vmatprep.subr.mxu0 0.0
    %990 = vmatpush1.msra.mxu0 0.0
    %991 = vmatprep.subr.mxu0 0.0
    %992 = vmatpush1.msra.mxu0 0.0
    %993 = vmatprep.subr.mxu0 0.0
    %994 = vmatpush1.msra.mxu0 0.0
    %995 = vmatprep.subr.mxu0 0.0
    %996 = vmatpush1.msra.mxu0 0.0
    %997 = vmatprep.subr.mxu0 0.0
    %998 = vmatpush1.msra.mxu0 0.0
    %999 = vmatprep.subr.mxu0 0.0
    %1000 = vmatpush1.msra.mxu0 0.0
    %1001 = vmatprep.subr.mxu0 0.0
    %1002 = vmatpush1.msra.mxu0 0.0
    %1003 = vmatprep.subr.mxu0 0.0
    %1004 = vmatpush1.msra.mxu0 0.0
    %1005 = vmatprep.subr.mxu0 0.0
    %1006 = vmatpush1.msra.mxu0 0.0
    %1007 = vmatprep.subr.mxu0 0.0
    %1008 = vmatpush1.msra.mxu0 0.0
    %1009 = vmatprep.subr.mxu0 0.0
    %1010 = vmatpush1.msra.mxu0 0.0
    %1011 = vmatprep.subr.mxu0 0.0
    %1012 = vmatpush1.msra.mxu0 0.0
    %1013 = vmatprep.subr.mxu0 0.0
    %1014 = vmatpush1.msra.mxu0 0.0
    %1015 = vmatprep.subr.mxu0 0.0
    %1016 = vmatpush1.msra.mxu0 0.0
    %1017 = vmatprep.subr.mxu0 0.0
    %1018 = vmatpush1.msra.mxu0 0.0
    %1019 = vmatprep.subr.mxu0 0.0
    %1020 = vmatpush1.msra.mxu0 0.0
    %1021 = vmatprep.subr.mxu0 0.0
    %1022 = vmatpush1.msra.mxu0 0.0
    %1023 = vmatprep.subr.mxu0 0.0
    %1024 = vmatpush1.msra.mxu0 0.0
    %1025 = vmatprep.subr.mxu0 0.0
    %1026 = vmatpush1.msra.mxu0 0.0
    %1027 = vmatprep.subr.mxu0 0.0
    %1028 = vmatpush1.msra.mxu0 0.0
    %1029 = vmatprep.subr.mxu0 0.0
    %1030 = vmatpush1.msra.mxu0 0.0
    %1031 = vmatprep.subr.mxu0 0.0
    %1032 = vmatpush1.msra.mxu0 0.0
    %1033 = vmatprep.subr.mxu0 0.0
    %1034 = vmatpush1.msra.mxu0 0.0
    %1035 = vmatprep.subr.mxu0 0.0
    %1036 = vmatpush1.msra.mxu0 0.0
    %1037 = vmatprep.subr.mxu0 0.0
    %1038 = vmatpush1.msra.mxu0 0.0
    %1039 = vmatprep.subr.mxu0 0.0
    %1040 = vmatpush1.msra.mxu0 0.0
    %1041 = vmatprep.subr.mxu0 0.0
    %1042 = vmatpush1.msra.mxu0 0.0
    %1043 = vmatprep.subr.mxu0 0.0
    %1044 = vmatpush1.msra.mxu0 0.0
    %1045 = vmatprep.mubr.f32.mxu0 0.0
    %1046 = vmatmul.mubr.f32.gmra.mrb[0].mxu0 %v979
    %v1047 = vpop.f32.mrb[0].mxu0
    %v1048 = vadd.f32 0.0, %v1047
    %v1049 = vpop.f32.mrb[0].mxu0
    %1050 = vdwg.mxu0
    %1051 = vrot.lane.b32.xlu0 %v135, 48
    %v1052 = vpop.permute.xlu0 %1051
    %v1055 = vsel %vm141, %v974, 0
    %1057 = vmatprep.subr.mxu0 0.0
    %1058 = vmatpush1.msra.mxu0 %v1052
    %1059 = vmatprep.subr.mxu0 0.0
    %1060 = vmatpush1.msra.mxu0 0.0
    %1061 = vmatprep.subr.mxu0 0.0
    %1062 = vmatpush1.msra.mxu0 0.0
    %1063 = vmatprep.subr.mxu0 0.0
    %1064 = vmatpush1.msra.mxu0 0.0
    %1065 = vmatprep.subr.mxu0 0.0
    %1066 = vmatpush1.msra.mxu0 0.0
    %1067 = vmatprep.subr.mxu0 0.0
    %1068 = vmatpush1.msra.mxu0 0.0
    %1069 = vmatprep.subr.mxu0 0.0
    %1070 = vmatpush1.msra.mxu0 0.0
    %1071 = vmatprep.subr.mxu0 0.0
    %1072 = vmatpush1.msra.mxu0 0.0
    %1073 = vmatprep.subr.mxu0 0.0
    %1074 = vmatpush1.msra.mxu0 0.0
    %1075 = vmatprep.subr.mxu0 0.0
    %1076 = vmatpush1.msra.mxu0 0.0
    %1077 = vmatprep.subr.mxu0 0.0
    %1078 = vmatpush1.msra.mxu0 0.0
    %1079 = vmatprep.subr.mxu0 0.0
    %1080 = vmatpush1.msra.mxu0 0.0
    %1081 = vmatprep.subr.mxu0 0.0
    %1082 = vmatpush1.msra.mxu0 0.0
    %1083 = vmatprep.subr.mxu0 0.0
    %1084 = vmatpush1.msra.mxu0 0.0
    %1085 = vmatprep.subr.mxu0 0.0
    %1086 = vmatpush1.msra.mxu0 0.0
    %1087 = vmatprep.subr.mxu0 0.0
    %1088 = vmatpush1.msra.mxu0 0.0
    %1089 = vmatprep.subr.mxu0 0.0
    %1090 = vmatpush1.msra.mxu0 0.0
    %1091 = vmatprep.subr.mxu0 0.0
    %1092 = vmatpush1.msra.mxu0 0.0
    %1093 = vmatprep.subr.mxu0 0.0
    %1094 = vmatpush1.msra.mxu0 0.0
    %1095 = vmatprep.subr.mxu0 0.0
    %1096 = vmatpush1.msra.mxu0 0.0
    %1097 = vmatprep.subr.mxu0 0.0
    %1098 = vmatpush1.msra.mxu0 0.0
    %1099 = vmatprep.subr.mxu0 0.0
    %1100 = vmatpush1.msra.mxu0 0.0
    %1101 = vmatprep.subr.mxu0 0.0
    %1102 = vmatpush1.msra.mxu0 0.0
    %1103 = vmatprep.subr.mxu0 0.0
    %1104 = vmatpush1.msra.mxu0 0.0
    %1105 = vmatprep.subr.mxu0 0.0
    %1106 = vmatpush1.msra.mxu0 0.0
    %1107 = vmatprep.subr.mxu0 0.0
    %1108 = vmatpush1.msra.mxu0 0.0
    %1109 = vmatprep.subr.mxu0 0.0
    %1110 = vmatpush1.msra.mxu0 0.0
    %1111 = vmatprep.subr.mxu0 0.0
    %1112 = vmatpush1.msra.mxu0 0.0
    %1113 = vmatprep.subr.mxu0 0.0
    %1114 = vmatpush1.msra.mxu0 0.0
    %1115 = vmatprep.subr.mxu0 0.0
    %1116 = vmatpush1.msra.mxu0 0.0
    %1117 = vmatprep.subr.mxu0 0.0
    %1118 = vmatpush1.msra.mxu0 0.0
    %1119 = vmatprep.subr.mxu0 0.0
    %1120 = vmatpush1.msra.mxu0 0.0
    %1121 = vmatprep.mubr.f32.mxu0 0.0
    %1122 = vmatmul.mubr.f32.gmra.mrb[0].mxu0 %v1055
    %v1123 = vpop.f32.mrb[0].mxu0
    %v1124 = vadd.f32 0.0, %v1123
    %v1125 = vpop.f32.mrb[0].mxu0
    %1126 = vdwg.mxu0
    %1127 = vrot.lane.b32.xlu0 %v130, 104
    %v1128 = vpop.permute.xlu0 %1127
    %1129 = vrot.lane.b32.xlu0 %v130, 72
    %v1130 = vpop.permute.xlu0 %1129
    %v1131 = vsel %vm141, %v1128, 0
    %v1133 = vsel %vm141, %v1130, 0
    %1135 = vmatprep.subr.mxu0 0.0
    %1136 = vmatpush1.xpose.msra.mxu0 %v1133
    %1137 = vmatprep.subr.mxu0 0.0
    %1138 = vmatpush1.xpose.msra.mxu0 0.0
    %1139 = vmatprep.subr.mxu0 0.0
    %1140 = vmatpush1.xpose.msra.mxu0 0.0
    %1141 = vmatprep.subr.mxu0 0.0
    %1142 = vmatpush1.xpose.msra.mxu0 0.0
    %1143 = vmatprep.subr.mxu0 0.0
    %1144 = vmatpush1.xpose.msra.mxu0 0.0
    %1145 = vmatprep.subr.mxu0 0.0
    %1146 = vmatpush1.xpose.msra.mxu0 0.0
    %1147 = vmatprep.subr.mxu0 0.0
    %1148 = vmatpush1.xpose.msra.mxu0 0.0
    %1149 = vmatprep.subr.mxu0 0.0
    %1150 = vmatpush1.xpose.msra.mxu0 0.0
    %1151 = vmatprep.subr.mxu0 0.0
    %1152 = vmatpush1.xpose.msra.mxu0 0.0
    %1153 = vmatprep.subr.mxu0 0.0
    %1154 = vmatpush1.xpose.msra.mxu0 0.0
    %1155 = vmatprep.subr.mxu0 0.0
    %1156 = vmatpush1.xpose.msra.mxu0 0.0
    %1157 = vmatprep.subr.mxu0 0.0
    %1158 = vmatpush1.xpose.msra.mxu0 0.0
    %1159 = vmatprep.subr.mxu0 0.0
    %1160 = vmatpush1.xpose.msra.mxu0 0.0
    %1161 = vmatprep.subr.mxu0 0.0
    %1162 = vmatpush1.xpose.msra.mxu0 0.0
    %1163 = vmatprep.subr.mxu0 0.0
    %1164 = vmatpush1.xpose.msra.mxu0 0.0
    %1165 = vmatprep.subr.mxu0 0.0
    %1166 = vmatpush1.xpose.msra.mxu0 0.0
    %1167 = vmatprep.subr.mxu0 0.0
    %1168 = vmatpush1.xpose.msra.mxu0 0.0
    %1169 = vmatprep.subr.mxu0 0.0
    %1170 = vmatpush1.xpose.msra.mxu0 0.0
    %1171 = vmatprep.subr.mxu0 0.0
    %1172 = vmatpush1.xpose.msra.mxu0 0.0
    %1173 = vmatprep.subr.mxu0 0.0
    %1174 = vmatpush1.xpose.msra.mxu0 0.0
    %1175 = vmatprep.subr.mxu0 0.0
    %1176 = vmatpush1.xpose.msra.mxu0 0.0
    %1177 = vmatprep.subr.mxu0 0.0
    %1178 = vmatpush1.xpose.msra.mxu0 0.0
    %1179 = vmatprep.subr.mxu0 0.0
    %1180 = vmatpush1.xpose.msra.mxu0 0.0
    %1181 = vmatprep.subr.mxu0 0.0
    %1182 = vmatpush1.xpose.msra.mxu0 0.0
    %1183 = vmatprep.subr.mxu0 0.0
    %1184 = vmatpush1.xpose.msra.mxu0 0.0
    %1185 = vmatprep.subr.mxu0 0.0
    %1186 = vmatpush1.xpose.msra.mxu0 0.0
    %1187 = vmatprep.subr.mxu0 0.0
    %1188 = vmatpush1.xpose.msra.mxu0 0.0
    %1189 = vmatprep.subr.mxu0 0.0
    %1190 = vmatpush1.xpose.msra.mxu0 0.0
    %1191 = vmatprep.subr.mxu0 0.0
    %1192 = vmatpush1.xpose.msra.mxu0 0.0
    %1193 = vmatprep.subr.mxu0 0.0
    %1194 = vmatpush1.xpose.msra.mxu0 0.0
    %1195 = vmatprep.subr.mxu0 0.0
    %1196 = vmatpush1.xpose.msra.mxu0 0.0
    %1197 = vmatprep.subr.mxu0 0.0
    %1198 = vmatpush1.xpose.msra.mxu0 0.0
    %1199 = vmatprep.mubr.f32.mxu0 0.0
    %1200 = vmatmul.mubr.f32.gmra.mrb[0].mxu0 %v1131
    %v1201 = vpop.f32.mrb[0].mxu0
    %v1202 = vadd.f32 0.0, %v1201
    %v1203 = vpop.f32.mrb[0].mxu0
    %1204 = vdwg.mxu0
    %1205 = vrot.lane.b32.xlu0 %v135, 104
    %v1206 = vpop.permute.xlu0 %1205
    %1207 = vrot.lane.b32.xlu0 %v135, 72
    %v1208 = vpop.permute.xlu0 %1207
    %v1209 = vsel %vm141, %v1206, 0
    %v1211 = vsel %vm141, %v1208, 0
    %1213 = vmatprep.subr.mxu0 0.0
    %1214 = vmatpush1.xpose.msra.mxu0 %v1211
    %1215 = vmatprep.subr.mxu0 0.0
    %1216 = vmatpush1.xpose.msra.mxu0 0.0
    %1217 = vmatprep.subr.mxu0 0.0
    %1218 = vmatpush1.xpose.msra.mxu0 0.0
    %1219 = vmatprep.subr.mxu0 0.0
    %1220 = vmatpush1.xpose.msra.mxu0 0.0
    %1221 = vmatprep.subr.mxu0 0.0
    %1222 = vmatpush1.xpose.msra.mxu0 0.0
    %1223 = vmatprep.subr.mxu0 0.0
    %1224 = vmatpush1.xpose.msra.mxu0 0.0
    %1225 = vmatprep.subr.mxu0 0.0
    %1226 = vmatpush1.xpose.msra.mxu0 0.0
    %1227 = vmatprep.subr.mxu0 0.0
    %1228 = vmatpush1.xpose.msra.mxu0 0.0
    %1229 = vmatprep.subr.mxu0 0.0
    %1230 = vmatpush1.xpose.msra.mxu0 0.0
    %1231 = vmatprep.subr.mxu0 0.0
    %1232 = vmatpush1.xpose.msra.mxu0 0.0
    %1233 = vmatprep.subr.mxu0 0.0
    %1234 = vmatpush1.xpose.msra.mxu0 0.0
    %1235 = vmatprep.subr.mxu0 0.0
    %1236 = vmatpush1.xpose.msra.mxu0 0.0
    %1237 = vmatprep.subr.mxu0 0.0
    %1238 = vmatpush1.xpose.msra.mxu0 0.0
    %1239 = vmatprep.subr.mxu0 0.0
    %1240 = vmatpush1.xpose.msra.mxu0 0.0
    %1241 = vmatprep.subr.mxu0 0.0
    %1242 = vmatpush1.xpose.msra.mxu0 0.0
    %1243 = vmatprep.subr.mxu0 0.0
    %1244 = vmatpush1.xpose.msra.mxu0 0.0
    %1245 = vmatprep.subr.mxu0 0.0
    %1246 = vmatpush1.xpose.msra.mxu0 0.0
    %1247 = vmatprep.subr.mxu0 0.0
    %1248 = vmatpush1.xpose.msra.mxu0 0.0
    %1249 = vmatprep.subr.mxu0 0.0
    %1250 = vmatpush1.xpose.msra.mxu0 0.0
    %1251 = vmatprep.subr.mxu0 0.0
    %1252 = vmatpush1.xpose.msra.mxu0 0.0
    %1253 = vmatprep.subr.mxu0 0.0
    %1254 = vmatpush1.xpose.msra.mxu0 0.0
    %1255 = vmatprep.subr.mxu0 0.0
    %1256 = vmatpush1.xpose.msra.mxu0 0.0
    %1257 = vmatprep.subr.mxu0 0.0
    %1258 = vmatpush1.xpose.msra.mxu0 0.0
    %1259 = vmatprep.subr.mxu0 0.0
    %1260 = vmatpush1.xpose.msra.mxu0 0.0
    %1261 = vmatprep.subr.mxu0 0.0
    %1262 = vmatpush1.xpose.msra.mxu0 0.0
    %1263 = vmatprep.subr.mxu0 0.0
    %1264 = vmatpush1.xpose.msra.mxu0 0.0
    %1265 = vmatprep.subr.mxu0 0.0
    %1266 = vmatpush1.xpose.msra.mxu0 0.0
    %1267 = vmatprep.subr.mxu0 0.0
    %1268 = vmatpush1.xpose.msra.mxu0 0.0
    %1269 = vmatprep.subr.mxu0 0.0
    %1270 = vmatpush1.xpose.msra.mxu0 0.0
    %1271 = vmatprep.subr.mxu0 0.0
    %1272 = vmatpush1.xpose.msra.mxu0 0.0
    %1273 = vmatprep.subr.mxu0 0.0
    %1274 = vmatpush1.xpose.msra.mxu0 0.0
    %1275 = vmatprep.subr.mxu0 0.0
    %1276 = vmatpush1.xpose.msra.mxu0 0.0
    %1277 = vmatprep.mubr.f32.mxu0 0.0
    %1278 = vmatmul.mubr.f32.gmra.mrb[0].mxu0 %v1209
    %v1279 = vpop.f32.mrb[0].mxu0
    %v1280 = vadd.f32 0.0, %v1279
    %v1281 = vpop.f32.mrb[0].mxu0
    %1282 = vdwg.mxu0
    %v1283 = vsel %vm141, %v1202, -inf
    %1284 = vmax.xlane.f32.xlu0 %v1283
    %v1285 = vpop.xlane.xlu0 %1284
    %v1286 = vsel %vm141, %v1280, -inf
    %1287 = vmax.xlane.f32.xlu0 %v1286
    %v1288 = vpop.xlane.xlu0 %1287
    %v1289 = vsub.f32 %v1202, %v1285
    %v1290 = vsub.f32 %v1280, %v1288
    %v1291 = vmul.f32 %v1289, 1.442695
    %v1292 = vpow.pop %v1291
    %v1293 = vmul.f32 %v1290, 1.442695
    %v1294 = vpow.pop %v1293
    %v1295 = vsel %vm141, %v1292, 0.0
    %1296 = vadd.xlane.f32.xlu0 %v1295
    %v1297 = vpop.xlane.xlu0 %1296
    %v1298 = vsel %vm141, %v1294, 0.0
    %1299 = vadd.xlane.f32.xlu0 %v1298
    %v1300 = vpop.xlane.xlu0 %1299
    %v1301 = vrcp.pop %v1297
    %v1302 = vrcp.pop %v1300
    %v1303 = vmul.f32 %v1292, %v1301
    %v1304 = vmul.f32 %v1294, %v1302
    %1305 = vrot.lane.b32.xlu0 %v130, 40
    %v1306 = vpop.permute.xlu0 %1305
    %v1309 = vsel %vm141, %v1303, 0
    %1311 = vmatprep.subr.mxu0 0.0
    %1312 = vmatpush1.msra.mxu0 %v1306
    %1313 = vmatprep.subr.mxu0 0.0
    %1314 = vmatpush1.msra.mxu0 0.0
    %1315 = vmatprep.subr.mxu0 0.0
    %1316 = vmatpush1.msra.mxu0 0.0
    %1317 = vmatprep.subr.mxu0 0.0
    %1318 = vmatpush1.msra.mxu0 0.0
    %1319 = vmatprep.subr.mxu0 0.0
    %1320 = vmatpush1.msra.mxu0 0.0
    %1321 = vmatprep.subr.mxu0 0.0
    %1322 = vmatpush1.msra.mxu0 0.0
    %1323 = vmatprep.subr.mxu0 0.0
    %1324 = vmatpush1.msra.mxu0 0.0
    %1325 = vmatprep.subr.mxu0 0.0
    %1326 = vmatpush1.msra.mxu0 0.0
    %1327 = vmatprep.subr.mxu0 0.0
    %1328 = vmatpush1.msra.mxu0 0.0
    %1329 = vmatprep.subr.mxu0 0.0
    %1330 = vmatpush1.msra.mxu0 0.0
    %1331 = vmatprep.subr.mxu0 0.0
    %1332 = vmatpush1.msra.mxu0 0.0
    %1333 = vmatprep.subr.mxu0 0.0
    %1334 = vmatpush1.msra.mxu0 0.0
    %1335 = vmatprep.subr.mxu0 0.0
    %1336 = vmatpush1.msra.mxu0 0.0
    %1337 = vmatprep.subr.mxu0 0.0
    %1338 = vmatpush1.msra.mxu0 0.0
    %1339 = vmatprep.subr.mxu0 0.0
    %1340 = vmatpush1.msra.mxu0 0.0
    %1341 = vmatprep.subr.mxu0 0.0
    %1342 = vmatpush1.msra.mxu0 0.0
    %1343 = vmatprep.subr.mxu0 0.0
    %1344 = vmatpush1.msra.mxu0 0.0
    %1345 = vmatprep.subr.mxu0 0.0
    %1346 = vmatpush1.msra.mxu0 0.0
    %1347 = vmatprep.subr.mxu0 0.0
    %1348 = vmatpush1.msra.mxu0 0.0
    %1349 = vmatprep.subr.mxu0 0.0
    %1350 = vmatpush1.msra.mxu0 0.0
    %1351 = vmatprep.subr.mxu0 0.0
    %1352 = vmatpush1.msra.mxu0 0.0
    %1353 = vmatprep.subr.mxu0 0.0
    %1354 = vmatpush1.msra.mxu0 0.0
    %1355 = vmatprep.subr.mxu0 0.0
    %1356 = vmatpush1.msra.mxu0 0.0
    %1357 = vmatprep.subr.mxu0 0.0
    %1358 = vmatpush1.msra.mxu0 0.0
    %1359 = vmatprep.subr.mxu0 0.0
    %1360 = vmatpush1.msra.mxu0 0.0
    %1361 = vmatprep.subr.mxu0 0.0
    %1362 = vmatpush1.msra.mxu0 0.0
    %1363 = vmatprep.subr.mxu0 0.0
    %1364 = vmatpush1.msra.mxu0 0.0
    %1365 = vmatprep.subr.mxu0 0.0
    %1366 = vmatpush1.msra.mxu0 0.0
    %1367 = vmatprep.subr.mxu0 0.0
    %1368 = vmatpush1.msra.mxu0 0.0
    %1369 = vmatprep.subr.mxu0 0.0
    %1370 = vmatpush1.msra.mxu0 0.0
    %1371 = vmatprep.subr.mxu0 0.0
    %1372 = vmatpush1.msra.mxu0 0.0
    %1373 = vmatprep.subr.mxu0 0.0
    %1374 = vmatpush1.msra.mxu0 0.0
    %1375 = vmatprep.mubr.f32.mxu0 0.0
    %1376 = vmatmul.mubr.f32.gmra.mrb[0].mxu0 %v1309
    %v1377 = vpop.f32.mrb[0].mxu0
    %v1378 = vadd.f32 0.0, %v1377
    %v1379 = vpop.f32.mrb[0].mxu0
    %1380 = vdwg.mxu0
    %1381 = vrot.lane.b32.xlu0 %v135, 40
    %v1382 = vpop.permute.xlu0 %1381
    %v1385 = vsel %vm141, %v1304, 0
    %1387 = vmatprep.subr.mxu0 0.0
    %1388 = vmatpush1.msra.mxu0 %v1382
    %1389 = vmatprep.subr.mxu0 0.0
    %1390 = vmatpush1.msra.mxu0 0.0
    %1391 = vmatprep.subr.mxu0 0.0
    %1392 = vmatpush1.msra.mxu0 0.0
    %1393 = vmatprep.subr.mxu0 0.0
    %1394 = vmatpush1.msra.mxu0 0.0
    %1395 = vmatprep.subr.mxu0 0.0
    %1396 = vmatpush1.msra.mxu0 0.0
    %1397 = vmatprep.subr.mxu0 0.0
    %1398 = vmatpush1.msra.mxu0 0.0
    %1399 = vmatprep.subr.mxu0 0.0
    %1400 = vmatpush1.msra.mxu0 0.0
    %1401 = vmatprep.subr.mxu0 0.0
    %1402 = vmatpush1.msra.mxu0 0.0
    %1403 = vmatprep.subr.mxu0 0.0
    %1404 = vmatpush1.msra.mxu0 0.0
    %1405 = vmatprep.subr.mxu0 0.0
    %1406 = vmatpush1.msra.mxu0 0.0
    %1407 = vmatprep.subr.mxu0 0.0
    %1408 = vmatpush1.msra.mxu0 0.0
    %1409 = vmatprep.subr.mxu0 0.0
    %1410 = vmatpush1.msra.mxu0 0.0
    %1411 = vmatprep.subr.mxu0 0.0
    %1412 = vmatpush1.msra.mxu0 0.0
    %1413 = vmatprep.subr.mxu0 0.0
    %1414 = vmatpush1.msra.mxu0 0.0
    %1415 = vmatprep.subr.mxu0 0.0
    %1416 = vmatpush1.msra.mxu0 0.0
    %1417 = vmatprep.subr.mxu0 0.0
    %1418 = vmatpush1.msra.mxu0 0.0
    %1419 = vmatprep.subr.mxu0 0.0
    %1420 = vmatpush1.msra.mxu0 0.0
    %1421 = vmatprep.subr.mxu0 0.0
    %1422 = vmatpush1.msra.mxu0 0.0
    %1423 = vmatprep.subr.mxu0 0.0
    %1424 = vmatpush1.msra.mxu0 0.0
    %1425 = vmatprep.subr.mxu0 0.0
    %1426 = vmatpush1.msra.mxu0 0.0
    %1427 = vmatprep.subr.mxu0 0.0
    %1428 = vmatpush1.msra.mxu0 0.0
    %1429 = vmatprep.subr.mxu0 0.0
    %1430 = vmatpush1.msra.mxu0 0.0
    %1431 = vmatprep.subr.mxu0 0.0
    %1432 = vmatpush1.msra.mxu0 0.0
    %1433 = vmatprep.subr.mxu0 0.0
    %1434 = vmatpush1.msra.mxu0 0.0
    %1435 = vmatprep.subr.mxu0 0.0
    %1436 = vmatpush1.msra.mxu0 0.0
    %1437 = vmatprep.subr.mxu0 0.0
    %1438 = vmatpush1.msra.mxu0 0.0
    %1439 = vmatprep.subr.mxu0 0.0
    %1440 = vmatpush1.msra.mxu0 0.0
    %1441 = vmatprep.subr.mxu0 0.0
    %1442 = vmatpush1.msra.mxu0 0.0
    %1443 = vmatprep.subr.mxu0 0.0
    %1444 = vmatpush1.msra.mxu0 0.0
    %1445 = vmatprep.subr.mxu0 0.0
    %1446 = vmatpush1.msra.mxu0 0.0
    %1447 = vmatprep.subr.mxu0 0.0
    %1448 = vmatpush1.msra.mxu0 0.0
    %1449 = vmatprep.subr.mxu0 0.0
    %1450 = vmatpush1.msra.mxu0 0.0
    %1451 = vmatprep.mubr.f32.mxu0 0.0
    %1452 = vmatmul.mubr.f32.gmra.mrb[0].mxu0 %v1385
    %v1453 = vpop.f32.mrb[0].mxu0
    %v1454 = vadd.f32 0.0, %v1453
    %v1455 = vpop.f32.mrb[0].mxu0
    %1456 = vdwg.mxu0
    %1459 = vrot.lane.b32.xlu0 %v718, 8
    %v1460 = vpop.permute.xlu0 %1459
    %1461 = vrot.lane.b32.xlu0 %v794, 8
    %v1462 = vpop.permute.xlu0 %1461
    %1467 = vrot.lane.b32.xlu0 %v1048, 16
    %v1468 = vpop.permute.xlu0 %1467
    %1469 = vrot.lane.b32.xlu0 %v1124, 16
    %v1470 = vpop.permute.xlu0 %1469
    %1475 = vrot.lane.b32.xlu0 %v1378, 24
    %v1476 = vpop.permute.xlu0 %1475
    %1477 = vrot.lane.b32.xlu0 %v1454, 24
    %v1478 = vpop.permute.xlu0 %1477
    %v1481 = vsel %vm141, %v388, %v1460
    %v1482 = vsel %vm141, %v464, %v1462
    %vm1483 = vcmask 130048
    %v1484 = vsel %vm1483, %v1481, %v1468
    %v1485 = vsel %vm1483, %v1482, %v1470
    %vm1486 = vcmask 195584
    %v1487 = vsel %vm1486, %v1484, %v1476
    %v1488 = vsel %vm1486, %v1485, %v1478
    %1489 = vst.msk [vmem:[#allocation7] sm:$0xff] %vm56, %v1487
    %1490 = vst.msk [vmem:[#allocation7 + $0x8] sm:$0xff] %vm56, %v1488
    // Predicated region
    $region22: #{tpu_custom_call.1} parent=1 // pred_check
      _
    $region23: #{tpu_custom_call.1} parent=1 // pred_check_branch
      %1492 = sbr.rel (0) target = $region25
    $region24: #{tpu_custom_call.1} parent=1 // pred_region
      %s1494 = ssub.s32 256, 256
      %1495 = vsyncadd [#allocation4], %s1494
      %s1496 = sshll.u32 [#allocation7], 4
      %s1497 = int_to_ptr.vmem [resolvable:$true] %s1496
      %1502 = dma.vmem_to_hbm [thread:$0]  %s1497, 256, %s3, [#allocation4], 128, 128, 8
    $region25: #{tpu_custom_call.1} parent=1 // pred_fallthru
      _
    // Predicated region
    $region26: #{tpu_custom_call.1} parent=1 // pred_check
      _
    $region27: #{tpu_custom_call.1} parent=1 // pred_check_branch
      %1504 = sbr.rel (0) target = $region29
    $region28: #{tpu_custom_call.1} parent=1 // pred_region
      %1505 = dma.done [#allocation4], 256
    $region29: #{tpu_custom_call.1} parent=1 // pred_fallthru
      _
    %1506 = vsyncpa [#allocation3], 1
    %1507 = vsyncpa [#allocation6], 1
    %1508 = vsyncpa [#allocation4], 1

// kernel: tpu_custom_call.1
$region0: #{tpu_custom_call.1}
  #allocation0 [shape = 'u32[]', space=smem, size = 0x4, offset = 0x4, fixed_abs, tag = 'smem constant byte address 0x4 - core index']
  #allocation1 [shape = 'u32[144,128]{1,0:T(1,128)}', space=vmem, size = 0x12000, scoped, tag = 'internal scratch']
  %s0 = inlined_call_operand.hbm [shape: f32[2,8,32], index: 0, kind: input, shape index: {}]
  %s1 = inlined_call_operand.hbm [shape: f32[32,96], index: 1, kind: input, shape index: {}]
  %s2 = inlined_call_operand.vmem [shape: f32[1,96], index: 2, kind: input, shape index: {}]
  %s3 = inlined_call_operand.hbm [shape: f32[2,8,32], index: 3, kind: output, shape index: {}]
  %s4 = sld [smem:[#allocation0]]
  $region30: #{tpu_custom_call.1} parent=0
    _
  %s6 = ssub.s32 1, %s4
  %s7 = scalar_select 0, %s6, %s4
  $region1: #{tpu_custom_call.1} parent=0
    #allocation2 [shape = 'u8[8192]{0}', space=vmem, size = 0x2000, scoped, tag = 'input window, operand 0, single buffered']
    #allocation3 [shape = 's32[1]{0}', space=sflag, size = 0x4, scoped, tag = 'scoped memory for tpu_custom_call.1']
    #allocation4 [shape = 's32[1]{0}', space=sflag, size = 0x4, scoped, tag = 'scoped memory for tpu_custom_call.1']
    #allocation5 [shape = 'u8[16384]{0}', space=vmem, size = 0x4000, scoped, tag = 'input window, operand 1, single buffered']
    #allocation6 [shape = 's32[1]{0}', space=sflag, size = 0x4, scoped, tag = 'scoped memory for tpu_custom_call.1']
    #allocation7 [shape = 'u8[8192]{0}', space=vmem, size = 0x2000, scoped, tag = 'output window, operand 0, single buffered']
    %8 = vsyncpa [#allocation3], 0
    %9 = vsyncpa [#allocation6], 0
    %10 = vsyncpa [#allocation4], 0
    // Predicated region
    $region2: #{tpu_custom_call.1} parent=1 // pred_check
      _
    $region3: #{tpu_custom_call.1} parent=1 // pred_check_branch
      %12 = sbr.rel (0) target = $region5
    $region4: #{tpu_custom_call.1} parent=1 // pred_region
      %s14 = ssub.s32 256, 256
      %15 = vsyncadd [#allocation3], %s14
      %s16 = sshll.u32 [#allocation2], 4
      %s17 = int_to_ptr.vmem [resolvable:$true] %s16
      %22 = dma.hbm_to_vmem [thread:$0]  %s0, 256, %s17, [#allocation3], 128, 128, 8
    $region5: #{tpu_custom_call.1} parent=1 // pred_fallthru
      _
    // Predicated region
    $region6: #{tpu_custom_call.1} parent=1 // pred_check
      _
    $region7: #{tpu_custom_call.1} parent=1 // pred_check_branch
      %24 = sbr.rel (0) target = $region9
    $region8: #{tpu_custom_call.1} parent=1 // pred_region
      %s26 = ssub.s32 512, 512
      %27 = vsyncadd [#allocation6], %s26
      %s28 = sshll.u32 [#allocation5], 4
      %s29 = int_to_ptr.vmem [resolvable:$true] %s28
      %34 = dma.hbm_to_vmem [thread:$0]  %s1, 512, %s29, [#allocation6], 128, 128, 8
    $region9: #{tpu_custom_call.1} parent=1 // pred_fallthru
      _
    // Predicated region
    $region10: #{tpu_custom_call.1} parent=1 // pred_check
      _
    $region11: #{tpu_custom_call.1} parent=1 // pred_check_branch
      %36 = sbr.rel (0) target = $region13
    $region12: #{tpu_custom_call.1} parent=1 // pred_region
      _
    $region13: #{tpu_custom_call.1} parent=1 // pred_fallthru
      _
    // Predicated region
    $region14: #{tpu_custom_call.1} parent=1 // pred_check
      _
    $region15: #{tpu_custom_call.1} parent=1 // pred_check_branch
      %38 = sbr.rel (0) target = $region17
    $region16: #{tpu_custom_call.1} parent=1 // pred_region
      %39 = dma.done [#allocation3], 256
    $region17: #{tpu_custom_call.1} parent=1 // pred_fallthru
      _
    // Predicated region
    $region18: #{tpu_custom_call.1} parent=1 // pred_check
      _
    $region19: #{tpu_custom_call.1} parent=1 // pred_check_branch
      %41 = sbr.rel (0) target = $region21
    $region20: #{tpu_custom_call.1} parent=1 // pred_region
      %42 = dma.done [#allocation6], 512
    $region21: #{tpu_custom_call.1} parent=1 // pred_fallthru
      _
    %v43 = vld [vmem:[#allocation2] sm:$0xff]
    %v44 = vld [vmem:[#allocation2 + $0x8] sm:$0xff]
    %v45 = vld [vmem:[#allocation5] sm:$0xff]
    %v46 = vld [vmem:[#allocation5 + $0x8] sm:$0xff]
    %v47 = vld [vmem:[#allocation5 + $0x10] sm:$0xff]
    %v48 = vld [vmem:[#allocation5 + $0x18] sm:$0xff]
    %v49 = vld [vmem:[%s2] sm:$0x1]
    %v51 = vlaneseq
    %v52 = vshrl.u32 %v51, 7
    %v53 = vsub.s32 0, %v52
    %v54 = vrot.slane %v49, %v53
    %vm56 = vcmask 261120
    %v58 = vsel %vm56, %v43, 0
    %v61 = vsel %vm56, %v44, 0
    %63 = vmatprep.subr.mxu0 0.0
    %64 = vmatpush1.msra.mxu0 %v45
    %65 = vmatprep.subr.mxu0 0.0
    %66 = vmatpush1.msra.mxu0 %v46
    %67 = vmatprep.subr.mxu0 0.0
    %68 = vmatpush1.msra.mxu0 %v47
    %69 = vmatprep.subr.mxu0 0.0
    %70 = vmatpush1.msra.mxu0 %v48
    %71 = vmatprep.subr.mxu0 0.0
    %72 = vmatpush1.msra.mxu0 0.0
    %73 = vmatprep.subr.mxu0 0.0
    %74 = vmatpush1.msra.mxu0 0.0
    %75 = vmatprep.subr.mxu0 0.0
    %76 = vmatpush1.msra.mxu0 0.0
    %77 = vmatprep.subr.mxu0 0.0
    %78 = vmatpush1.msra.mxu0 0.0
    %79 = vmatprep.subr.mxu0 0.0
    %80 = vmatpush1.msra.mxu0 0.0
    %81 = vmatprep.subr.mxu0 0.0
    %82 = vmatpush1.msra.mxu0 0.0
    %83 = vmatprep.subr.mxu0 0.0
    %84 = vmatpush1.msra.mxu0 0.0
    %85 = vmatprep.subr.mxu0 0.0
    %86 = vmatpush1.msra.mxu0 0.0
    %87 = vmatprep.subr.mxu0 0.0
    %88 = vmatpush1.msra.mxu0 0.0
    %89 = vmatprep.subr.mxu0 0.0
    %90 = vmatpush1.msra.mxu0 0.0
    %91 = vmatprep.subr.mxu0 0.0
    %92 = vmatpush1.msra.mxu0 0.0
    %93 = vmatprep.subr.mxu0 0.0
    %94 = vmatpush1.msra.mxu0 0.0
    %95 = vmatprep.subr.mxu0 0.0
    %96 = vmatpush1.msra.mxu0 0.0
    %97 = vmatprep.subr.mxu0 0.0
    %98 = vmatpush1.msra.mxu0 0.0
    %99 = vmatprep.subr.mxu0 0.0
    %100 = vmatpush1.msra.mxu0 0.0
    %101 = vmatprep.subr.mxu0 0.0
    %102 = vmatpush1.msra.mxu0 0.0
    %103 = vmatprep.subr.mxu0 0.0
    %104 = vmatpush1.msra.mxu0 0.0
    %105 = vmatprep.subr.mxu0 0.0
    %106 = vmatpush1.msra.mxu0 0.0
    %107 = vmatprep.subr.mxu0 0.0
    %108 = vmatpush1.msra.mxu0 0.0
    %109 = vmatprep.subr.mxu0 0.0
    %110 = vmatpush1.msra.mxu0 0.0
    %111 = vmatprep.subr.mxu0 0.0
    %112 = vmatpush1.msra.mxu0 0.0
    %113 = vmatprep.subr.mxu0 0.0
    %114 = vmatpush1.msra.mxu0 0.0
    %115 = vmatprep.subr.mxu0 0.0
    %116 = vmatpush1.msra.mxu0 0.0
    %117 = vmatprep.subr.mxu0 0.0
    %118 = vmatpush1.msra.mxu0 0.0
    %119 = vmatprep.subr.mxu0 0.0
    %120 = vmatpush1.msra.mxu0 0.0
    %121 = vmatprep.subr.mxu0 0.0
    %122 = vmatpush1.msra.mxu0 0.0
    %123 = vmatprep.subr.mxu0 0.0
    %124 = vmatpush1.msra.mxu0 0.0
    %125 = vmatprep.subr.mxu0 0.0
    %126 = vmatpush1.msra.mxu0 0.0
    %127 = vmatprep.mubr.f32.mxu0 0.0
    %128 = vmatmul.mubr.f32.gmra.mrb[0].mxu0 %v58
    %v129 = vpop.f32.mrb[0].mxu0
    %v130 = vadd.f32 %v54, %v129
    %v131 = vpop.f32.mrb[0].mxu0
    %132 = vmatprep.mubr.f32.mxu0 0.0
    %133 = vmatmul.mubr.f32.gmra.mrb[0].mxu0 %v61
    %v134 = vpop.f32.mrb[0].mxu0
    %v135 = vadd.f32 %v54, %v134
    %v136 = vpop.f32.mrb[0].mxu0
    %137 = vdwg.mxu0
    %139 = vrot.lane.b32.xlu0 %v130, 96
    %v140 = vpop.permute.xlu0 %139
    %vm141 = vcmask 64512
    %v142 = vsel %vm141, %v130, 0
    %v144 = vsel %vm141, %v140, 0
    %146 = vmatprep.subr.mxu0 0.0
    %147 = vmatpush1.xpose.msra.mxu0 %v144
    %148 = vmatprep.subr.mxu0 0.0
    %149 = vmatpush1.xpose.msra.mxu0 0.0
    %150 = vmatprep.subr.mxu0 0.0
    %151 = vmatpush1.xpose.msra.mxu0 0.0
    %152 = vmatprep.subr.mxu0 0.0
    %153 = vmatpush1.xpose.msra.mxu0 0.0
    %154 = vmatprep.subr.mxu0 0.0
    %155 = vmatpush1.xpose.msra.mxu0 0.0
    %156 = vmatprep.subr.mxu0 0.0
    %157 = vmatpush1.xpose.msra.mxu0 0.0
    %158 = vmatprep.subr.mxu0 0.0
    %159 = vmatpush1.xpose.msra.mxu0 0.0
    %160 = vmatprep.subr.mxu0 0.0
    %161 = vmatpush1.xpose.msra.mxu0 0.0
    %162 = vmatprep.subr.mxu0 0.0
    %163 = vmatpush1.xpose.msra.mxu0 0.0
    %164 = vmatprep.subr.mxu0 0.0
    %165 = vmatpush1.xpose.msra.mxu0 0.0
    %166 = vmatprep.subr.mxu0 0.0
    %167 = vmatpush1.xpose.msra.mxu0 0.0
    %168 = vmatprep.subr.mxu0 0.0
    %169 = vmatpush1.xpose.msra.mxu0 0.0
    %170 = vmatprep.subr.mxu0 0.0
    %171 = vmatpush1.xpose.msra.mxu0 0.0
    %172 = vmatprep.subr.mxu0 0.0
    %173 = vmatpush1.xpose.msra.mxu0 0.0
    %174 = vmatprep.subr.mxu0 0.0
    %175 = vmatpush1.xpose.msra.mxu0 0.0
    %176 = vmatprep.subr.mxu0 0.0
    %177 = vmatpush1.xpose.msra.mxu0 0.0
    %178 = vmatprep.subr.mxu0 0.0
    %179 = vmatpush1.xpose.msra.mxu0 0.0
    %180 = vmatprep.subr.mxu0 0.0
    %181 = vmatpush1.xpose.msra.mxu0 0.0
    %182 = vmatprep.subr.mxu0 0.0
    %183 = vmatpush1.xpose.msra.mxu0 0.0
    %184 = vmatprep.subr.mxu0 0.0
    %185 = vmatpush1.xpose.msra.mxu0 0.0
    %186 = vmatprep.subr.mxu0 0.0
    %187 = vmatpush1.xpose.msra.mxu0 0.0
    %188 = vmatprep.subr.mxu0 0.0
    %189 = vmatpush1.xpose.msra.mxu0 0.0
    %190 = vmatprep.subr.mxu0 0.0
    %191 = vmatpush1.xpose.msra.mxu0 0.0
    %192 = vmatprep.subr.mxu0 0.0
    %193 = vmatpush1.xpose.msra.mxu0 0.0
    %194 = vmatprep.subr.mxu0 0.0
    %195 = vmatpush1.xpose.msra.mxu0 0.0
    %196 = vmatprep.subr.mxu0 0.0
    %197 = vmatpush1.xpose.msra.mxu0 0.0
    %198 = vmatprep.subr.mxu0 0.0
    %199 = vmatpush1.xpose.msra.mxu0 0.0
    %200 = vmatprep.subr.mxu0 0.0
    %201 = vmatpush1.xpose.msra.mxu0 0.0
    %202 = vmatprep.subr.mxu0 0.0
    %203 = vmatpush1.xpose.msra.mxu0 0.0
    %204 = vmatprep.subr.mxu0 0.0
    %205 = vmatpush1.xpose.msra.mxu0 0.0
    %206 = vmatprep.subr.mxu0 0.0
    %207 = vmatpush1.xpose.msra.mxu0 0.0
    %208 = vmatprep.subr.mxu0 0.0
    %209 = vmatpush1.xpose.msra.mxu0 0.0
    %210 = vmatprep.mubr.f32.mxu0 0.0
    %211 = vmatmul.mubr.f32.gmra.mrb[0].mxu0 %v142
    %v212 = vpop.f32.mrb[0].mxu0
    %v213 = vadd.f32 0.0, %v212
    %v214 = vpop.f32.mrb[0].mxu0
    %215 = vdwg.mxu0
    %217 = vrot.lane.b32.xlu0 %v135, 96
    %v218 = vpop.permute.xlu0 %217
    %v219 = vsel %vm141, %v135, 0
    %v221 = vsel %vm141, %v218, 0
    %223 = vmatprep.subr.mxu0 0.0
    %224 = vmatpush1.xpose.msra.mxu0 %v221
    %225 = vmatprep.subr.mxu0 0.0
    %226 = vmatpush1.xpose.msra.mxu0 0.0
    %227 = vmatprep.subr.mxu0 0.0
    %228 = vmatpush1.xpose.msra.mxu0 0.0
    %229 = vmatprep.subr.mxu0 0.0
    %230 = vmatpush1.xpose.msra.mxu0 0.0
    %231 = vmatprep.subr.mxu0 0.0
    %232 = vmatpush1.xpose.msra.mxu0 0.0
    %233 = vmatprep.subr.mxu0 0.0
    %234 = vmatpush1.xpose.msra.mxu0 0.0
    %235 = vmatprep.subr.mxu0 0.0
    %236 = vmatpush1.xpose.msra.mxu0 0.0
    %237 = vmatprep.subr.mxu0 0.0
    %238 = vmatpush1.xpose.msra.mxu0 0.0
    %239 = vmatprep.subr.mxu0 0.0
    %240 = vmatpush1.xpose.msra.mxu0 0.0
    %241 = vmatprep.subr.mxu0 0.0
    %242 = vmatpush1.xpose.msra.mxu0 0.0
    %243 = vmatprep.subr.mxu0 0.0
    %244 = vmatpush1.xpose.msra.mxu0 0.0
    %245 = vmatprep.subr.mxu0 0.0
    %246 = vmatpush1.xpose.msra.mxu0 0.0
    %247 = vmatprep.subr.mxu0 0.0
    %248 = vmatpush1.xpose.msra.mxu0 0.0
    %249 = vmatprep.subr.mxu0 0.0
    %250 = vmatpush1.xpose.msra.mxu0 0.0
    %251 = vmatprep.subr.mxu0 0.0
    %252 = vmatpush1.xpose.msra.mxu0 0.0
    %253 = vmatprep.subr.mxu0 0.0
    %254 = vmatpush1.xpose.msra.mxu0 0.0
    %255 = vmatprep.subr.mxu0 0.0
    %256 = vmatpush1.xpose.msra.mxu0 0.0
    %257 = vmatprep.subr.mxu0 0.0
    %258 = vmatpush1.xpose.msra.mxu0 0.0
    %259 = vmatprep.subr.mxu0 0.0
    %260 = vmatpush1.xpose.msra.mxu0 0.0
    %261 = vmatprep.subr.mxu0 0.0
    %262 = vmatpush1.xpose.msra.mxu0 0.0
    %263 = vmatprep.subr.mxu0 0.0
    %264 = vmatpush1.xpose.msra.mxu0 0.0
    %265 = vmatprep.subr.mxu0 0.0
    %266 = vmatpush1.xpose.msra.mxu0 0.0
    %267 = vmatprep.subr.mxu0 0.0
    %268 = vmatpush1.xpose.msra.mxu0 0.0
    %269 = vmatprep.subr.mxu0 0.0
    %270 = vmatpush1.xpose.msra.mxu0 0.0
    %271 = vmatprep.subr.mxu0 0.0
    %272 = vmatpush1.xpose.msra.mxu0 0.0
    %273 = vmatprep.subr.mxu0 0.0
    %274 = vmatpush1.xpose.msra.mxu0 0.0
    %275 = vmatprep.subr.mxu0 0.0
    %276 = vmatpush1.xpose.msra.mxu0 0.0
    %277 = vmatprep.subr.mxu0 0.0
    %278 = vmatpush1.xpose.msra.mxu0 0.0
    %279 = vmatprep.subr.mxu0 0.0
    %280 = vmatpush1.xpose.msra.mxu0 0.0
    %281 = vmatprep.subr.mxu0 0.0
    %282 = vmatpush1.xpose.msra.mxu0 0.0
    %283 = vmatprep.subr.mxu0 0.0
    %284 = vmatpush1.xpose.msra.mxu0 0.0
    %285 = vmatprep.subr.mxu0 0.0
    %286 = vmatpush1.xpose.msra.mxu0 0.0
    %287 = vmatprep.mubr.f32.mxu0 0.0
    %288 = vmatmul.mubr.f32.gmra.mrb[0].mxu0 %v219
    %v289 = vpop.f32.mrb[0].mxu0
    %v290 = vadd.f32 0.0, %v289
    %v291 = vpop.f32.mrb[0].mxu0
    %292 = vdwg.mxu0
    %v293 = vsel %vm141, %v213, -inf
    %294 = vmax.xlane.f32.xlu0 %v293
    %v295 = vpop.xlane.xlu0 %294
    %v296 = vsel %vm141, %v290, -inf
    %297 = vmax.xlane.f32.xlu0 %v296
    %v298 = vpop.xlane.xlu0 %297
    %v299 = vsub.f32 %v213, %v295
    %v300 = vsub.f32 %v290, %v298
    %v301 = vmul.f32 %v299, 1.442695
    %v302 = vpow.pop %v301
    %v303 = vmul.f32 %v300, 1.442695
    %v304 = vpow.pop %v303
    %v305 = vsel %vm141, %v302, 0.0
    %306 = vadd.xlane.f32.xlu0 %v305
    %v307 = vpop.xlane.xlu0 %306
    %v308 = vsel %vm141, %v304, 0.0
    %309 = vadd.xlane.f32.xlu0 %v308
    %v310 = vpop.xlane.xlu0 %309
    %v311 = vrcp.pop %v307
    %v312 = vrcp.pop %v310
    %v313 = vmul.f32 %v302, %v311
    %v314 = vmul.f32 %v304, %v312
    %315 = vrot.lane.b32.xlu0 %v130, 64
    %v316 = vpop.permute.xlu0 %315
    %v319 = vsel %vm141, %v313, 0
    %321 = vmatprep.subr.mxu0 0.0
    %322 = vmatpush1.msra.mxu0 %v316
    %323 = vmatprep.subr.mxu0 0.0
    %324 = vmatpush1.msra.mxu0 0.0
    %325 = vmatprep.subr.mxu0 0.0
    %326 = vmatpush1.msra.mxu0 0.0
    %327 = vmatprep.subr.mxu0 0.0
    %328 = vmatpush1.msra.mxu0 0.0
    %329 = vmatprep.subr.mxu0 0.0
    %330 = vmatpush1.msra.mxu0 0.0
    %331 = vmatprep.subr.mxu0 0.0
    %332 = vmatpush1.msra.mxu0 0.0
    %333 = vmatprep.subr.mxu0 0.0
    %334 = vmatpush1.msra.mxu0 0.0
    %335 = vmatprep.subr.mxu0 0.0
    %336 = vmatpush1.msra.mxu0 0.0
    %337 = vmatprep.subr.mxu0 0.0
    %338 = vmatpush1.msra.mxu0 0.0
    %339 = vmatprep.subr.mxu0 0.0
    %340 = vmatpush1.msra.mxu0 0.0
    %341 = vmatprep.subr.mxu0 0.0
    %342 = vmatpush1.msra.mxu0 0.0
    %343 = vmatprep.subr.mxu0 0.0
    %344 = vmatpush1.msra.mxu0 0.0
    %345 = vmatprep.subr.mxu0 0.0
    %346 = vmatpush1.msra.mxu0 0.0
    %347 = vmatprep.subr.mxu0 0.0
    %348 = vmatpush1.msra.mxu0 0.0
    %349 = vmatprep.subr.mxu0 0.0
    %350 = vmatpush1.msra.mxu0 0.0
    %351 = vmatprep.subr.mxu0 0.0
    %352 = vmatpush1.msra.mxu0 0.0
    %353 = vmatprep.subr.mxu0 0.0
    %354 = vmatpush1.msra.mxu0 0.0
    %355 = vmatprep.subr.mxu0 0.0
    %356 = vmatpush1.msra.mxu0 0.0
    %357 = vmatprep.subr.mxu0 0.0
    %358 = vmatpush1.msra.mxu0 0.0
    %359 = vmatprep.subr.mxu0 0.0
    %360 = vmatpush1.msra.mxu0 0.0
    %361 = vmatprep.subr.mxu0 0.0
    %362 = vmatpush1.msra.mxu0 0.0
    %363 = vmatprep.subr.mxu0 0.0
    %364 = vmatpush1.msra.mxu0 0.0
    %365 = vmatprep.subr.mxu0 0.0
    %366 = vmatpush1.msra.mxu0 0.0
    %367 = vmatprep.subr.mxu0 0.0
    %368 = vmatpush1.msra.mxu0 0.0
    %369 = vmatprep.subr.mxu0 0.0
    %370 = vmatpush1.msra.mxu0 0.0
    %371 = vmatprep.subr.mxu0 0.0
    %372 = vmatpush1.msra.mxu0 0.0
    %373 = vmatprep.subr.mxu0 0.0
    %374 = vmatpush1.msra.mxu0 0.0
    %375 = vmatprep.subr.mxu0 0.0
    %376 = vmatpush1.msra.mxu0 0.0
    %377 = vmatprep.subr.mxu0 0.0
    %378 = vmatpush1.msra.mxu0 0.0
    %379 = vmatprep.subr.mxu0 0.0
    %380 = vmatpush1.msra.mxu0 0.0
    %381 = vmatprep.subr.mxu0 0.0
    %382 = vmatpush1.msra.mxu0 0.0
    %383 = vmatprep.subr.mxu0 0.0
    %384 = vmatpush1.msra.mxu0 0.0
    %385 = vmatprep.mubr.f32.mxu0 0.0
    %386 = vmatmul.mubr.f32.gmra.mrb[0].mxu0 %v319
    %v387 = vpop.f32.mrb[0].mxu0
    %v388 = vadd.f32 0.0, %v387
    %v389 = vpop.f32.mrb[0].mxu0
    %390 = vdwg.mxu0
    %391 = vrot.lane.b32.xlu0 %v135, 64
    %v392 = vpop.permute.xlu0 %391
    %v395 = vsel %vm141, %v314, 0
    %397 = vmatprep.subr.mxu0 0.0
    %398 = vmatpush1.msra.mxu0 %v392
    %399 = vmatprep.subr.mxu0 0.0
    %400 = vmatpush1.msra.mxu0 0.0
    %401 = vmatprep.subr.mxu0 0.0
    %402 = vmatpush1.msra.mxu0 0.0
    %403 = vmatprep.subr.mxu0 0.0
    %404 = vmatpush1.msra.mxu0 0.0
    %405 = vmatprep.subr.mxu0 0.0
    %406 = vmatpush1.msra.mxu0 0.0
    %407 = vmatprep.subr.mxu0 0.0
    %408 = vmatpush1.msra.mxu0 0.0
    %409 = vmatprep.subr.mxu0 0.0
    %410 = vmatpush1.msra.mxu0 0.0
    %411 = vmatprep.subr.mxu0 0.0
    %412 = vmatpush1.msra.mxu0 0.0
    %413 = vmatprep.subr.mxu0 0.0
    %414 = vmatpush1.msra.mxu0 0.0
    %415 = vmatprep.subr.mxu0 0.0
    %416 = vmatpush1.msra.mxu0 0.0
    %417 = vmatprep.subr.mxu0 0.0
    %418 = vmatpush1.msra.mxu0 0.0
    %419 = vmatprep.subr.mxu0 0.0
    %420 = vmatpush1.msra.mxu0 0.0
    %421 = vmatprep.subr.mxu0 0.0
    %422 = vmatpush1.msra.mxu0 0.0
    %423 = vmatprep.subr.mxu0 0.0
    %424 = vmatpush1.msra.mxu0 0.0
    %425 = vmatprep.subr.mxu0 0.0
    %426 = vmatpush1.msra.mxu0 0.0
    %427 = vmatprep.subr.mxu0 0.0
    %428 = vmatpush1.msra.mxu0 0.0
    %429 = vmatprep.subr.mxu0 0.0
    %430 = vmatpush1.msra.mxu0 0.0
    %431 = vmatprep.subr.mxu0 0.0
    %432 = vmatpush1.msra.mxu0 0.0
    %433 = vmatprep.subr.mxu0 0.0
    %434 = vmatpush1.msra.mxu0 0.0
    %435 = vmatprep.subr.mxu0 0.0
    %436 = vmatpush1.msra.mxu0 0.0
    %437 = vmatprep.subr.mxu0 0.0
    %438 = vmatpush1.msra.mxu0 0.0
    %439 = vmatprep.subr.mxu0 0.0
    %440 = vmatpush1.msra.mxu0 0.0
    %441 = vmatprep.subr.mxu0 0.0
    %442 = vmatpush1.msra.mxu0 0.0
    %443 = vmatprep.subr.mxu0 0.0
    %444 = vmatpush1.msra.mxu0 0.0
    %445 = vmatprep.subr.mxu0 0.0
    %446 = vmatpush1.msra.mxu0 0.0
    %447 = vmatprep.subr.mxu0 0.0
    %448 = vmatpush1.msra.mxu0 0.0
    %449 = vmatprep.subr.mxu0 0.0
    %450 = vmatpush1.msra.mxu0 0.0
    %451 = vmatprep.subr.mxu0 0.0
    %452 = vmatpush1.msra.mxu0 0.0
    %453 = vmatprep.subr.mxu0 0.0
    %454 = vmatpush1.msra.mxu0 0.0
    %455 = vmatprep.subr.mxu0 0.0
    %456 = vmatpush1.msra.mxu0 0.0
    %457 = vmatprep.subr.mxu0 0.0
    %458 = vmatpush1.msra.mxu0 0.0
    %459 = vmatprep.subr.mxu0 0.0
    %460 = vmatpush1.msra.mxu0 0.0
    %461 = vmatprep.mubr.f32.mxu0 0.0
    %462 = vmatmul.mubr.f32.gmra.mrb[0].mxu0 %v395
    %v463 = vpop.f32.mrb[0].mxu0
    %v464 = vadd.f32 0.0, %v463
    %v465 = vpop.f32.mrb[0].mxu0
    %466 = vdwg.mxu0
    %467 = vrot.lane.b32.xlu0 %v130, 120
    %v468 = vpop.permute.xlu0 %467
    %469 = vrot.lane.b32.xlu0 %v130, 88
    %v470 = vpop.permute.xlu0 %469
    %v471 = vsel %vm141, %v468, 0
    %v473 = vsel %vm141, %v470, 0
    %475 = vmatprep.subr.mxu0 0.0
    %476 = vmatpush1.xpose.msra.mxu0 %v473
    %477 = vmatprep.subr.mxu0 0.0
    %478 = vmatpush1.xpose.msra.mxu0 0.0
    %479 = vmatprep.subr.mxu0 0.0
    %480 = vmatpush1.xpose.msra.mxu0 0.0
    %481 = vmatprep.subr.mxu0 0.0
    %482 = vmatpush1.xpose.msra.mxu0 0.0
    %483 = vmatprep.subr.mxu0 0.0
    %484 = vmatpush1.xpose.msra.mxu0 0.0
    %485 = vmatprep.subr.mxu0 0.0
    %486 = vmatpush1.xpose.msra.mxu0 0.0
    %487 = vmatprep.subr.mxu0 0.0
    %488 = vmatpush1.xpose.msra.mxu0 0.0
    %489 = vmatprep.subr.mxu0 0.0
    %490 = vmatpush1.xpose.msra.mxu0 0.0
    %491 = vmatprep.subr.mxu0 0.0
    %492 = vmatpush1.xpose.msra.mxu0 0.0
    %493 = vmatprep.subr.mxu0 0.0
    %494 = vmatpush1.xpose.msra.mxu0 0.0
    %495 = vmatprep.subr.mxu0 0.0
    %496 = vmatpush1.xpose.msra.mxu0 0.0
    %497 = vmatprep.subr.mxu0 0.0
    %498 = vmatpush1.xpose.msra.mxu0 0.0
    %499 = vmatprep.subr.mxu0 0.0
    %500 = vmatpush1.xpose.msra.mxu0 0.0
    %501 = vmatprep.subr.mxu0 0.0
    %502 = vmatpush1.xpose.msra.mxu0 0.0
    %503 = vmatprep.subr.mxu0 0.0
    %504 = vmatpush1.xpose.msra.mxu0 0.0
    %505 = vmatprep.subr.mxu0 0.0
    %506 = vmatpush1.xpose.msra.mxu0 0.0
    %507 = vmatprep.subr.mxu0 0.0
    %508 = vmatpush1.xpose.msra.mxu0 0.0
    %509 = vmatprep.subr.mxu0 0.0
    %510 = vmatpush1.xpose.msra.mxu0 0.0
    %511 = vmatprep.subr.mxu0 0.0
    %512 = vmatpush1.xpose.msra.mxu0 0.0
    %513 = vmatprep.subr.mxu0 0.0
    %514 = vmatpush1.xpose.msra.mxu0 0.0
    %515 = vmatprep.subr.mxu0 0.0
    %516 = vmatpush1.xpose.msra.mxu0 0.0
    %517 = vmatprep.subr.mxu0 0.0
    %518 = vmatpush1.xpose.msra.mxu0 0.0
    %519 = vmatprep.subr.mxu0 0.0
    %520 = vmatpush1.xpose.msra.mxu0 0.0
    %521 = vmatprep.subr.mxu0 0.0
    %522 = vmatpush1.xpose.msra.mxu0 0.0
    %523 = vmatprep.subr.mxu0 0.0
    %524 = vmatpush1.xpose.msra.mxu0 0.0
    %525 = vmatprep.subr.mxu0 0.0
    %526 = vmatpush1.xpose.msra.mxu0 0.0
    %527 = vmatprep.subr.mxu0 0.0
    %528 = vmatpush1.xpose.msra.mxu0 0.0
    %529 = vmatprep.subr.mxu0 0.0
    %530 = vmatpush1.xpose.msra.mxu0 0.0
    %531 = vmatprep.subr.mxu0 0.0
    %532 = vmatpush1.xpose.msra.mxu0 0.0
    %533 = vmatprep.subr.mxu0 0.0
    %534 = vmatpush1.xpose.msra.mxu0 0.0
    %535 = vmatprep.subr.mxu0 0.0
    %536 = vmatpush1.xpose.msra.mxu0 0.0
    %537 = vmatprep.subr.mxu0 0.0
    %538 = vmatpush1.xpose.msra.mxu0 0.0
    %539 = vmatprep.mubr.f32.mxu0 0.0
    %540 = vmatmul.mubr.f32.gmra.mrb[0].mxu0 %v471
    %v541 = vpop.f32.mrb[0].mxu0
    %v542 = vadd.f32 0.0, %v541
    %v543 = vpop.f32.mrb[0].mxu0
    %544 = vdwg.mxu0
    %545 = vrot.lane.b32.xlu0 %v135, 120
    %v546 = vpop.permute.xlu0 %545
    %547 = vrot.lane.b32.xlu0 %v135, 88
    %v548 = vpop.permute.xlu0 %547
    %v549 = vsel %vm141, %v546, 0
    %v551 = vsel %vm141, %v548, 0
    %553 = vmatprep.subr.mxu0 0.0
    %554 = vmatpush1.xpose.msra.mxu0 %v551
    %555 = vmatprep.subr.mxu0 0.0
    %556 = vmatpush1.xpose.msra.mxu0 0.0
    %557 = vmatprep.subr.mxu0 0.0
    %558 = vmatpush1.xpose.msra.mxu0 0.0
    %559 = vmatprep.subr.mxu0 0.0
    %560 = vmatpush1.xpose.msra.mxu0 0.0
    %561 = vmatprep.subr.mxu0 0.0
    %562 = vmatpush1.xpose.msra.mxu0 0.0
    %563 = vmatprep.subr.mxu0 0.0
    %564 = vmatpush1.xpose.msra.mxu0 0.0
    %565 = vmatprep.subr.mxu0 0.0
    %566 = vmatpush1.xpose.msra.mxu0 0.0
    %567 = vmatprep.subr.mxu0 0.0
    %568 = vmatpush1.xpose.msra.mxu0 0.0
    %569 = vmatprep.subr.mxu0 0.0
    %570 = vmatpush1.xpose.msra.mxu0 0.0
    %571 = vmatprep.subr.mxu0 0.0
    %572 = vmatpush1.xpose.msra.mxu0 0.0
    %573 = vmatprep.subr.mxu0 0.0
    %574 = vmatpush1.xpose.msra.mxu0 0.0
    %575 = vmatprep.subr.mxu0 0.0
    %576 = vmatpush1.xpose.msra.mxu0 0.0
    %577 = vmatprep.subr.mxu0 0.0
    %578 = vmatpush1.xpose.msra.mxu0 0.0
    %579 = vmatprep.subr.mxu0 0.0
    %580 = vmatpush1.xpose.msra.mxu0 0.0
    %581 = vmatprep.subr.mxu0 0.0
    %582 = vmatpush1.xpose.msra.mxu0 0.0
    %583 = vmatprep.subr.mxu0 0.0
    %584 = vmatpush1.xpose.msra.mxu0 0.0
    %585 = vmatprep.subr.mxu0 0.0
    %586 = vmatpush1.xpose.msra.mxu0 0.0
    %587 = vmatprep.subr.mxu0 0.0
    %588 = vmatpush1.xpose.msra.mxu0 0.0
    %589 = vmatprep.subr.mxu0 0.0
    %590 = vmatpush1.xpose.msra.mxu0 0.0
    %591 = vmatprep.subr.mxu0 0.0
    %592 = vmatpush1.xpose.msra.mxu0 0.0
    %593 = vmatprep.subr.mxu0 0.0
    %594 = vmatpush1.xpose.msra.mxu0 0.0
    %595 = vmatprep.subr.mxu0 0.0
    %596 = vmatpush1.xpose.msra.mxu0 0.0
    %597 = vmatprep.subr.mxu0 0.0
    %598 = vmatpush1.xpose.msra.mxu0 0.0
    %599 = vmatprep.subr.mxu0 0.0
    %600 = vmatpush1.xpose.msra.mxu0 0.0
    %601 = vmatprep.subr.mxu0 0.0
    %602 = vmatpush1.xpose.msra.mxu0 0.0
    %603 = vmatprep.subr.mxu0 0.0
    %604 = vmatpush1.xpose.msra.mxu0 0.0
    %605 = vmatprep.subr.mxu0 0.0
    %606 = vmatpush1.xpose.msra.mxu0 0.0
    %607 = vmatprep.subr.mxu0 0.0
    %608 = vmatpush1.xpose.msra.mxu0 0.0
    %609 = vmatprep.subr.mxu0 0.0
    %610 = vmatpush1.xpose.msra.mxu0 0.0
    %611 = vmatprep.subr.mxu0 0.0
    %612 = vmatpush1.xpose.msra.mxu0 0.0
    %613 = vmatprep.subr.mxu0 0.0
    %614 = vmatpush1.xpose.msra.mxu0 0.0
    %615 = vmatprep.subr.mxu0 0.0
    %616 = vmatpush1.xpose.msra.mxu0 0.0
    %617 = vmatprep.mubr.f32.mxu0 0.0
    %618 = vmatmul.mubr.f32.gmra.mrb[0].mxu0 %v549
    %v619 = vpop.f32.mrb[0].mxu0
    %v620 = vadd.f32 0.0, %v619
    %v621 = vpop.f32.mrb[0].mxu0
    %622 = vdwg.mxu0
    %v623 = vsel %vm141, %v542, -inf
    %624 = vmax.xlane.f32.xlu0 %v623
    %v625 = vpop.xlane.xlu0 %624
    %v626 = vsel %vm141, %v620, -inf
    %627 = vmax.xlane.f32.xlu0 %v626
    %v628 = vpop.xlane.xlu0 %627
    %v629 = vsub.f32 %v542, %v625
    %v630 = vsub.f32 %v620, %v628
    %v631 = vmul.f32 %v629, 1.442695
    %v632 = vpow.pop %v631
    %v633 = vmul.f32 %v630, 1.442695
    %v634 = vpow.pop %v633
    %v635 = vsel %vm141, %v632, 0.0
    %636 = vadd.xlane.f32.xlu0 %v635
    %v637 = vpop.xlane.xlu0 %636
    %v638 = vsel %vm141, %v634, 0.0
    %639 = vadd.xlane.f32.xlu0 %v638
    %v640 = vpop.xlane.xlu0 %639
    %v641 = vrcp.pop %v637
    %v642 = vrcp.pop %v640
    %v643 = vmul.f32 %v632, %v641
    %v644 = vmul.f32 %v634, %v642
    %645 = vrot.lane.b32.xlu0 %v130, 56
    %v646 = vpop.permute.xlu0 %645
    %v649 = vsel %vm141, %v643, 0
    %651 = vmatprep.subr.mxu0 0.0
    %652 = vmatpush1.msra.mxu0 %v646
    %653 = vmatprep.subr.mxu0 0.0
    %654 = vmatpush1.msra.mxu0 0.0
    %655 = vmatprep.subr.mxu0 0.0
    %656 = vmatpush1.msra.mxu0 0.0
    %657 = vmatprep.subr.mxu0 0.0
    %658 = vmatpush1.msra.mxu0 0.0
    %659 = vmatprep.subr.mxu0 0.0
    %660 = vmatpush1.msra.mxu0 0.0
    %661 = vmatprep.subr.mxu0 0.0
    %662 = vmatpush1.msra.mxu0 0.0
    %663 = vmatprep.subr.mxu0 0.0
    %664 = vmatpush1.msra.mxu0 0.0
    %665 = vmatprep.subr.mxu0 0.0
    %666 = vmatpush1.msra.mxu0 0.0
    %667 = vmatprep.subr.mxu0 0.0
    %668 = vmatpush1.msra.mxu0 0.0
    %669 = vmatprep.subr.mxu0 0.0
    %670 = vmatpush1.msra.mxu0 0.0
    %671 = vmatprep.subr.mxu0 0.0
    %672 = vmatpush1.msra.mxu0 0.0
    %673 = vmatprep.subr.mxu0 0.0
    %674 = vmatpush1.msra.mxu0 0.0
    %675 = vmatprep.subr.mxu0 0.0
    %676 = vmatpush1.msra.mxu0 0.0
    %677 = vmatprep.subr.mxu0 0.0
    %678 = vmatpush1.msra.mxu0 0.0
    %679 = vmatprep.subr.mxu0 0.0
    %680 = vmatpush1.msra.mxu0 0.0
    %681 = vmatprep.subr.mxu0 0.0
    %682 = vmatpush1.msra.mxu0 0.0
    %683 = vmatprep.subr.mxu0 0.0
    %684 = vmatpush1.msra.mxu0 0.0
    %685 = vmatprep.subr.mxu0 0.0
    %686 = vmatpush1.msra.mxu0 0.0
    %687 = vmatprep.subr.mxu0 0.0
    %688 = vmatpush1.msra.mxu0 0.0
    %689 = vmatprep.subr.mxu0 0.0
    %690 = vmatpush1.msra.mxu0 0.0
    %691 = vmatprep.subr.mxu0 0.0
    %692 = vmatpush1.msra.mxu0 0.0
    %693 = vmatprep.subr.mxu0 0.0
    %694 = vmatpush1.msra.mxu0 0.0
    %695 = vmatprep.subr.mxu0 0.0
    %696 = vmatpush1.msra.mxu0 0.0
    %697 = vmatprep.subr.mxu0 0.0
    %698 = vmatpush1.msra.mxu0 0.0
    %699 = vmatprep.subr.mxu0 0.0
    %700 = vmatpush1.msra.mxu0 0.0
    %701 = vmatprep.subr.mxu0 0.0
    %702 = vmatpush1.msra.mxu0 0.0
    %703 = vmatprep.subr.mxu0 0.0
    %704 = vmatpush1.msra.mxu0 0.0
    %705 = vmatprep.subr.mxu0 0.0
    %706 = vmatpush1.msra.mxu0 0.0
    %707 = vmatprep.subr.mxu0 0.0
    %708 = vmatpush1.msra.mxu0 0.0
    %709 = vmatprep.subr.mxu0 0.0
    %710 = vmatpush1.msra.mxu0 0.0
    %711 = vmatprep.subr.mxu0 0.0
    %712 = vmatpush1.msra.mxu0 0.0
    %713 = vmatprep.subr.mxu0 0.0
    %714 = vmatpush1.msra.mxu0 0.0
    %715 = vmatprep.mubr.f32.mxu0 0.0
    %716 = vmatmul.mubr.f32.gmra.mrb[0].mxu0 %v649
    %v717 = vpop.f32.mrb[0].mxu0
    %v718 = vadd.f32 0.0, %v717
    %v719 = vpop.f32.mrb[0].mxu0
    %720 = vdwg.mxu0
    %721 = vrot.lane.b32.xlu0 %v135, 56
    %v722 = vpop.permute.xlu0 %721
    %v725 = vsel %vm141, %v644, 0
    %727 = vmatprep.subr.mxu0 0.0
    %728 = vmatpush1.msra.mxu0 %v722
    %729 = vmatprep.subr.mxu0 0.0
    %730 = vmatpush1.msra.mxu0 0.0
    %731 = vmatprep.subr.mxu0 0.0
    %732 = vmatpush1.msra.mxu0 0.0
    %733 = vmatprep.subr.mxu0 0.0
    %734 = vmatpush1.msra.mxu0 0.0
    %735 = vmatprep.subr.mxu0 0.0
    %736 = vmatpush1.msra.mxu0 0.0
    %737 = vmatprep.subr.mxu0 0.0
    %738 = vmatpush1.msra.mxu0 0.0
    %739 = vmatprep.subr.mxu0 0.0
    %740 = vmatpush1.msra.mxu0 0.0
    %741 = vmatprep.subr.mxu0 0.0
    %742 = vmatpush1.msra.mxu0 0.0
    %743 = vmatprep.subr.mxu0 0.0
    %744 = vmatpush1.msra.mxu0 0.0
    %745 = vmatprep.subr.mxu0 0.0
    %746 = vmatpush1.msra.mxu0 0.0
    %747 = vmatprep.subr.mxu0 0.0
    %748 = vmatpush1.msra.mxu0 0.0
    %749 = vmatprep.subr.mxu0 0.0
    %750 = vmatpush1.msra.mxu0 0.0
    %751 = vmatprep.subr.mxu0 0.0
    %752 = vmatpush1.msra.mxu0 0.0
    %753 = vmatprep.subr.mxu0 0.0
    %754 = vmatpush1.msra.mxu0 0.0
    %755 = vmatprep.subr.mxu0 0.0
    %756 = vmatpush1.msra.mxu0 0.0
    %757 = vmatprep.subr.mxu0 0.0
    %758 = vmatpush1.msra.mxu0 0.0
    %759 = vmatprep.subr.mxu0 0.0
    %760 = vmatpush1.msra.mxu0 0.0
    %761 = vmatprep.subr.mxu0 0.0
    %762 = vmatpush1.msra.mxu0 0.0
    %763 = vmatprep.subr.mxu0 0.0
    %764 = vmatpush1.msra.mxu0 0.0
    %765 = vmatprep.subr.mxu0 0.0
    %766 = vmatpush1.msra.mxu0 0.0
    %767 = vmatprep.subr.mxu0 0.0
    %768 = vmatpush1.msra.mxu0 0.0
    %769 = vmatprep.subr.mxu0 0.0
    %770 = vmatpush1.msra.mxu0 0.0
    %771 = vmatprep.subr.mxu0 0.0
    %772 = vmatpush1.msra.mxu0 0.0
    %773 = vmatprep.subr.mxu0 0.0
    %774 = vmatpush1.msra.mxu0 0.0
    %775 = vmatprep.subr.mxu0 0.0
    %776 = vmatpush1.msra.mxu0 0.0
    %777 = vmatprep.subr.mxu0 0.0
    %778 = vmatpush1.msra.mxu0 0.0
    %779 = vmatprep.subr.mxu0 0.0
    %780 = vmatpush1.msra.mxu0 0.0
    %781 = vmatprep.subr.mxu0 0.0
    %782 = vmatpush1.msra.mxu0 0.0
    %783 = vmatprep.subr.mxu0 0.0
    %784 = vmatpush1.msra.mxu0 0.0
    %785 = vmatprep.subr.mxu0 0.0
    %786 = vmatpush1.msra.mxu0 0.0
    %787 = vmatprep.subr.mxu0 0.0
    %788 = vmatpush1.msra.mxu0 0.0
    %789 = vmatprep.subr.mxu0 0.0
    %790 = vmatpush1.msra.mxu0 0.0
    %791 = vmatprep.mubr.f32.mxu0 0.0
    %792 = vmatmul.mubr.f32.gmra.mrb[0].mxu0 %v725
    %v793 = vpop.f32.mrb[0].mxu0
    %v794 = vadd.f32 0.0, %v793
    %v795 = vpop.f32.mrb[0].mxu0
    %796 = vdwg.mxu0
    %797 = vrot.lane.b32.xlu0 %v130, 112
    %v798 = vpop.permute.xlu0 %797
    %799 = vrot.lane.b32.xlu0 %v130, 80
    %v800 = vpop.permute.xlu0 %799
    %v801 = vsel %vm141, %v798, 0
    %v803 = vsel %vm141, %v800, 0
    %805 = vmatprep.subr.mxu0 0.0
    %806 = vmatpush1.xpose.msra.mxu0 %v803
    %807 = vmatprep.subr.mxu0 0.0
    %808 = vmatpush1.xpose.msra.mxu0 0.0
    %809 = vmatprep.subr.mxu0 0.0
    %810 = vmatpush1.xpose.msra.mxu0 0.0
    %811 = vmatprep.subr.mxu0 0.0
    %812 = vmatpush1.xpose.msra.mxu0 0.0
    %813 = vmatprep.subr.mxu0 0.0
    %814 = vmatpush1.xpose.msra.mxu0 0.0
    %815 = vmatprep.subr.mxu0 0.0
    %816 = vmatpush1.xpose.msra.mxu0 0.0
    %817 = vmatprep.subr.mxu0 0.0
    %818 = vmatpush1.xpose.msra.mxu0 0.0
    %819 = vmatprep.subr.mxu0 0.0
    %820 = vmatpush1.xpose.msra.mxu0 0.0
    %821 = vmatprep.subr.mxu0 0.0
    %822 = vmatpush1.xpose.msra.mxu0 0.0
    %823 = vmatprep.subr.mxu0 0.0
    %824 = vmatpush1.xpose.msra.mxu0 0.0
    %825 = vmatprep.subr.mxu0 0.0
    %826 = vmatpush1.xpose.msra.mxu0 0.0
    %827 = vmatprep.subr.mxu0 0.0
    %828 = vmatpush1.xpose.msra.mxu0 0.0
    %829 = vmatprep.subr.mxu0 0.0
    %830 = vmatpush1.xpose.msra.mxu0 0.0
    %831 = vmatprep.subr.mxu0 0.0
    %832 = vmatpush1.xpose.msra.mxu0 0.0
    %833 = vmatprep.subr.mxu0 0.0
    %834 = vmatpush1.xpose.msra.mxu0 0.0
    %835 = vmatprep.subr.mxu0 0.0
    %836 = vmatpush1.xpose.msra.mxu0 0.0
    %837 = vmatprep.subr.mxu0 0.0
    %838 = vmatpush1.xpose.msra.mxu0 0.0
    %839 = vmatprep.subr.mxu0 0.0
    %840 = vmatpush1.xpose.msra.mxu0 0.0
    %841 = vmatprep.subr.mxu0 0.0
    %842 = vmatpush1.xpose.msra.mxu0 0.0
    %843 = vmatprep.subr.mxu0 0.0
    %844 = vmatpush1.xpose.msra.mxu0 0.0
    %845 = vmatprep.subr.mxu0 0.0
    %846 = vmatpush1.xpose.msra.mxu0 0.0
    %847 = vmatprep.subr.mxu0 0.0
    %848 = vmatpush1.xpose.msra.mxu0 0.0
    %849 = vmatprep.subr.mxu0 0.0
    %850 = vmatpush1.xpose.msra.mxu0 0.0
    %851 = vmatprep.subr.mxu0 0.0
    %852 = vmatpush1.xpose.msra.mxu0 0.0
    %853 = vmatprep.subr.mxu0 0.0
    %854 = vmatpush1.xpose.msra.mxu0 0.0
    %855 = vmatprep.subr.mxu0 0.0
    %856 = vmatpush1.xpose.msra.mxu0 0.0
    %857 = vmatprep.subr.mxu0 0.0
    %858 = vmatpush1.xpose.msra.mxu0 0.0
    %859 = vmatprep.subr.mxu0 0.0
    %860 = vmatpush1.xpose.msra.mxu0 0.0
    %861 = vmatprep.subr.mxu0 0.0
    %862 = vmatpush1.xpose.msra.mxu0 0.0
    %863 = vmatprep.subr.mxu0 0.0
    %864 = vmatpush1.xpose.msra.mxu0 0.0
    %865 = vmatprep.subr.mxu0 0.0
    %866 = vmatpush1.xpose.msra.mxu0 0.0
    %867 = vmatprep.subr.mxu0 0.0
    %868 = vmatpush1.xpose.msra.mxu0 0.0
    %869 = vmatprep.mubr.f32.mxu0 0.0
    %870 = vmatmul.mubr.f32.gmra.mrb[0].mxu0 %v801
    %v871 = vpop.f32.mrb[0].mxu0
    %v872 = vadd.f32 0.0, %v871
    %v873 = vpop.f32.mrb[0].mxu0
    %874 = vdwg.mxu0
    %875 = vrot.lane.b32.xlu0 %v135, 112
    %v876 = vpop.permute.xlu0 %875
    %877 = vrot.lane.b32.xlu0 %v135, 80
    %v878 = vpop.permute.xlu0 %877
    %v879 = vsel %vm141, %v876, 0
    %v881 = vsel %vm141, %v878, 0
    %883 = vmatprep.subr.mxu0 0.0
    %884 = vmatpush1.xpose.msra.mxu0 %v881
    %885 = vmatprep.subr.mxu0 0.0
    %886 = vmatpush1.xpose.msra.mxu0 0.0
    %887 = vmatprep.subr.mxu0 0.0
    %888 = vmatpush1.xpose.msra.mxu0 0.0
    %889 = vmatprep.subr.mxu0 0.0
    %890 = vmatpush1.xpose.msra.mxu0 0.0
    %891 = vmatprep.subr.mxu0 0.0
    %892 = vmatpush1.xpose.msra.mxu0 0.0
    %893 = vmatprep.subr.mxu0 0.0
    %894 = vmatpush1.xpose.msra.mxu0 0.0
    %895 = vmatprep.subr.mxu0 0.0
    %896 = vmatpush1.xpose.msra.mxu0 0.0
    %897 = vmatprep.subr.mxu0 0.0
    %898 = vmatpush1.xpose.msra.mxu0 0.0
    %899 = vmatprep.subr.mxu0 0.0
    %900 = vmatpush1.xpose.msra.mxu0 0.0
    %901 = vmatprep.subr.mxu0 0.0
    %902 = vmatpush1.xpose.msra.mxu0 0.0
    %903 = vmatprep.subr.mxu0 0.0
    %904 = vmatpush1.xpose.msra.mxu0 0.0
    %905 = vmatprep.subr.mxu0 0.0
    %906 = vmatpush1.xpose.msra.mxu0 0.0
    %907 = vmatprep.subr.mxu0 0.0
    %908 = vmatpush1.xpose.msra.mxu0 0.0
    %909 = vmatprep.subr.mxu0 0.0
    %910 = vmatpush1.xpose.msra.mxu0 0.0
    %911 = vmatprep.subr.mxu0 0.0
    %912 = vmatpush1.xpose.msra.mxu0 0.0
    %913 = vmatprep.subr.mxu0 0.0
    %914 = vmatpush1.xpose.msra.mxu0 0.0
    %915 = vmatprep.subr.mxu0 0.0
    %916 = vmatpush1.xpose.msra.mxu0 0.0
    %917 = vmatprep.subr.mxu0 0.0
    %918 = vmatpush1.xpose.msra.mxu0 0.0
    %919 = vmatprep.subr.mxu0 0.0
    %920 = vmatpush1.xpose.msra.mxu0 0.0
    %921 = vmatprep.subr.mxu0 0.0
    %922 = vmatpush1.xpose.msra.mxu0 0.0
    %923 = vmatprep.subr.mxu0 0.0
    %924 = vmatpush1.xpose.msra.mxu0 0.0
    %925 = vmatprep.subr.mxu0 0.0
    %926 = vmatpush1.xpose.msra.mxu0 0.0
    %927 = vmatprep.subr.mxu0 0.0
    %928 = vmatpush1.xpose.msra.mxu0 0.0
    %929 = vmatprep.subr.mxu0 0.0
    %930 = vmatpush1.xpose.msra.mxu0 0.0
    %931 = vmatprep.subr.mxu0 0.0
    %932 = vmatpush1.xpose.msra.mxu0 0.0
    %933 = vmatprep.subr.mxu0 0.0
    %934 = vmatpush1.xpose.msra.mxu0 0.0
    %935 = vmatprep.subr.mxu0 0.0
    %936 = vmatpush1.xpose.msra.mxu0 0.0
    %937 = vmatprep.subr.mxu0 0.0
    %938 = vmatpush1.xpose.msra.mxu0 0.0
    %939 = vmatprep.subr.mxu0 0.0
    %940 = vmatpush1.xpose.msra.mxu0 0.0
    %941 = vmatprep.subr.mxu0 0.0
    %942 = vmatpush1.xpose.msra.mxu0 0.0
    %943 = vmatprep.subr.mxu0 0.0
    %944 = vmatpush1.xpose.msra.mxu0 0.0
    %945 = vmatprep.subr.mxu0 0.0
    %946 = vmatpush1.xpose.msra.mxu0 0.0
    %947 = vmatprep.mubr.f32.mxu0 0.0
    %948 = vmatmul.mubr.f32.gmra.mrb[0].mxu0 %v879
    %v949 = vpop.f32.mrb[0].mxu0
    %v950 = vadd.f32 0.0, %v949
    %v951 = vpop.f32.mrb[0].mxu0
    %952 = vdwg.mxu0
    %v953 = vsel %vm141, %v872, -inf
    %954 = vmax.xlane.f32.xlu0 %v953
    %v955 = vpop.xlane.xlu0 %954
    %v956 = vsel %vm141, %v950, -inf
    %957 = vmax.xlane.f32.xlu0 %v956
    %v958 = vpop.xlane.xlu0 %957
    %v959 = vsub.f32 %v872, %v955
    %v960 = vsub.f32 %v950, %v958
    %v961 = vmul.f32 %v959, 1.442695
    %v962 = vpow.pop %v961
    %v963 = vmul.f32 %v960, 1.442695
    %v964 = vpow.pop %v963
    %v965 = vsel %vm141, %v962, 0.0
    %966 = vadd.xlane.f32.xlu0 %v965
    %v967 = vpop.xlane.xlu0 %966
    %v968 = vsel %vm141, %v964, 0.0
    %969 = vadd.xlane.f32.xlu0 %v968
    %v970 = vpop.xlane.xlu0 %969
    %v971 = vrcp.pop %v967
    %v972 = vrcp.pop %v970
    %v973 = vmul.f32 %v962, %v971
    %v974 = vmul.f32 %v964, %v972
    %975 = vrot.lane.b32.xlu0 %v130, 48
    %v976 = vpop.permute.xlu0 %975
    %v979 = vsel %vm141, %v973, 0
    %981 = vmatprep.subr.mxu0 0.0
    %982 = vmatpush1.msra.mxu0 %v976
    %983 = vmatprep.subr.mxu0 0.0
    %984 = vmatpush1.msra.mxu0 0.0
    %985 = vmatprep.subr.mxu0 0.0
    %986 = vmatpush1.msra.mxu0 0.0
    %987 = vmatprep.subr.mxu0 0.0
    %988 = vmatpush1.msra.mxu0 0.0
    %989 = vmatprep.subr.mxu0 0.0
    %990 = vmatpush1.msra.mxu0 0.0
    %991 = vmatprep.subr.mxu0 0.0
    %992 = vmatpush1.msra.mxu0 0.0
    %993 = vmatprep.subr.mxu0 0.0
    %994 = vmatpush1.msra.mxu0 0.0
    %995 = vmatprep.subr.mxu0 0.0
    %996 = vmatpush1.msra.mxu0 0.0
    %997 = vmatprep.subr.mxu0 0.0
    %998 = vmatpush1.msra.mxu0 0.0
    %999 = vmatprep.subr.mxu0 0.0
    %1000 = vmatpush1.msra.mxu0 0.0
    %1001 = vmatprep.subr.mxu0 0.0
    %1002 = vmatpush1.msra.mxu0 0.0
    %1003 = vmatprep.subr.mxu0 0.0
    %1004 = vmatpush1.msra.mxu0 0.0
    %1005 = vmatprep.subr.mxu0 0.0
    %1006 = vmatpush1.msra.mxu0 0.0
    %1007 = vmatprep.subr.mxu0 0.0
    %1008 = vmatpush1.msra.mxu0 0.0
    %1009 = vmatprep.subr.mxu0 0.0
    %1010 = vmatpush1.msra.mxu0 0.0
    %1011 = vmatprep.subr.mxu0 0.0
    %1012 = vmatpush1.msra.mxu0 0.0
    %1013 = vmatprep.subr.mxu0 0.0
    %1014 = vmatpush1.msra.mxu0 0.0
    %1015 = vmatprep.subr.mxu0 0.0
    %1016 = vmatpush1.msra.mxu0 0.0
    %1017 = vmatprep.subr.mxu0 0.0
    %1018 = vmatpush1.msra.mxu0 0.0
    %1019 = vmatprep.subr.mxu0 0.0
    %1020 = vmatpush1.msra.mxu0 0.0
    %1021 = vmatprep.subr.mxu0 0.0
    %1022 = vmatpush1.msra.mxu0 0.0
    %1023 = vmatprep.subr.mxu0 0.0
    %1024 = vmatpush1.msra.mxu0 0.0
    %1025 = vmatprep.subr.mxu0 0.0
    %1026 = vmatpush1.msra.mxu0 0.0
    %1027 = vmatprep.subr.mxu0 0.0
    %1028 = vmatpush1.msra.mxu0 0.0
    %1029 = vmatprep.subr.mxu0 0.0
    %1030 = vmatpush1.msra.mxu0 0.0
    %1031 = vmatprep.subr.mxu0 0.0
    %1032 = vmatpush1.msra.mxu0 0.0
    %1033 = vmatprep.subr.mxu0 0.0
    %1034 = vmatpush1.msra.mxu0 0.0
    %1035 = vmatprep.subr.mxu0 0.0
    %1036 = vmatpush1.msra.mxu0 0.0
    %1037 = vmatprep.subr.mxu0 0.0
    %1038 = vmatpush1.msra.mxu0 0.0
    %1039 = vmatprep.subr.mxu0 0.0
    %1040 = vmatpush1.msra.mxu0 0.0
    %1041 = vmatprep.subr.mxu0 0.0
    %1042 = vmatpush1.msra.mxu0 0.0
    %1043 = vmatprep.subr.mxu0 0.0
    %1044 = vmatpush1.msra.mxu0 0.0
    %1045 = vmatprep.mubr.f32.mxu0 0.0
    %1046 = vmatmul.mubr.f32.gmra.mrb[0].mxu0 %v979
    %v1047 = vpop.f32.mrb[0].mxu0
    %v1048 = vadd.f32 0.0, %v1047
    %v1049 = vpop.f32.mrb[0].mxu0
    %1050 = vdwg.mxu0
    %1051 = vrot.lane.b32.xlu0 %v135, 48
    %v1052 = vpop.permute.xlu0 %1051
    %v1055 = vsel %vm141, %v974, 0
    %1057 = vmatprep.subr.mxu0 0.0
    %1058 = vmatpush1.msra.mxu0 %v1052
    %1059 = vmatprep.subr.mxu0 0.0
    %1060 = vmatpush1.msra.mxu0 0.0
    %1061 = vmatprep.subr.mxu0 0.0
    %1062 = vmatpush1.msra.mxu0 0.0
    %1063 = vmatprep.subr.mxu0 0.0
    %1064 = vmatpush1.msra.mxu0 0.0
    %1065 = vmatprep.subr.mxu0 0.0
    %1066 = vmatpush1.msra.mxu0 0.0
    %1067 = vmatprep.subr.mxu0 0.0
    %1068 = vmatpush1.msra.mxu0 0.0
    %1069 = vmatprep.subr.mxu0 0.0
    %1070 = vmatpush1.msra.mxu0 0.0
    %1071 = vmatprep.subr.mxu0 0.0
    %1072 = vmatpush1.msra.mxu0 0.0
    %1073 = vmatprep.subr.mxu0 0.0
    %1074 = vmatpush1.msra.mxu0 0.0
    %1075 = vmatprep.subr.mxu0 0.0
    %1076 = vmatpush1.msra.mxu0 0.0
    %1077 = vmatprep.subr.mxu0 0.0
    %1078 = vmatpush1.msra.mxu0 0.0
    %1079 = vmatprep.subr.mxu0 0.0
    %1080 = vmatpush1.msra.mxu0 0.0
    %1081 = vmatprep.subr.mxu0 0.0
    %1082 = vmatpush1.msra.mxu0 0.0
    %1083 = vmatprep.subr.mxu0 0.0
    %1084 = vmatpush1.msra.mxu0 0.0
    %1085 = vmatprep.subr.mxu0 0.0
    %1086 = vmatpush1.msra.mxu0 0.0
    %1087 = vmatprep.subr.mxu0 0.0
    %1088 = vmatpush1.msra.mxu0 0.0
    %1089 = vmatprep.subr.mxu0 0.0
    %1090 = vmatpush1.msra.mxu0 0.0
    %1091 = vmatprep.subr.mxu0 0.0
    %1092 = vmatpush1.msra.mxu0 0.0
    %1093 = vmatprep.subr.mxu0 0.0
    %1094 = vmatpush1.msra.mxu0 0.0
    %1095 = vmatprep.subr.mxu0 0.0
    %1096 = vmatpush1.msra.mxu0 0.0
    %1097 = vmatprep.subr.mxu0 0.0
    %1098 = vmatpush1.msra.mxu0 0.0
    %1099 = vmatprep.subr.mxu0 0.0
    %1100 = vmatpush1.msra.mxu0 0.0
    %1101 = vmatprep.subr.mxu0 0.0
    %1102 = vmatpush1.msra.mxu0 0.0
    %1103 = vmatprep.subr.mxu0 0.0
    %1104 = vmatpush1.msra.mxu0 0.0
    %1105 = vmatprep.subr.mxu0 0.0
    %1106 = vmatpush1.msra.mxu0 0.0
    %1107 = vmatprep.subr.mxu0 0.0
    %1108 = vmatpush1.msra.mxu0 0.0
    %1109 = vmatprep.subr.mxu0 0.0
    %1110 = vmatpush1.msra.mxu0 0.0
    %1111 = vmatprep.subr.mxu0 0.0
    %1112 = vmatpush1.msra.mxu0 0.0
    %1113 = vmatprep.subr.mxu0 0.0
    %1114 = vmatpush1.msra.mxu0 0.0
    %1115 = vmatprep.subr.mxu0 0.0
    %1116 = vmatpush1.msra.mxu0 0.0
    %1117 = vmatprep.subr.mxu0 0.0
    %1118 = vmatpush1.msra.mxu0 0.0
    %1119 = vmatprep.subr.mxu0 0.0
    %1120 = vmatpush1.msra.mxu0 0.0
    %1121 = vmatprep.mubr.f32.mxu0 0.0
    %1122 = vmatmul.mubr.f32.gmra.mrb[0].mxu0 %v1055
    %v1123 = vpop.f32.mrb[0].mxu0
    %v1124 = vadd.f32 0.0, %v1123
    %v1125 = vpop.f32.mrb[0].mxu0
    %1126 = vdwg.mxu0
    %1127 = vrot.lane.b32.xlu0 %v130, 104
    %v1128 = vpop.permute.xlu0 %1127
    %1129 = vrot.lane.b32.xlu0 %v130, 72
    %v1130 = vpop.permute.xlu0 %1129
    %v1131 = vsel %vm141, %v1128, 0
    %v1133 = vsel %vm141, %v1130, 0
    %1135 = vmatprep.subr.mxu0 0.0
    %1136 = vmatpush1.xpose.msra.mxu0 %v1133
    %1137 = vmatprep.subr.mxu0 0.0
    %1138 = vmatpush1.xpose.msra.mxu0 0.0
    %1139 = vmatprep.subr.mxu0 0.0
    %1140 = vmatpush1.xpose.msra.mxu0 0.0
    %1141 = vmatprep.subr.mxu0 0.0
    %1142 = vmatpush1.xpose.msra.mxu0 0.0
    %1143 = vmatprep.subr.mxu0 0.0
    %1144 = vmatpush1.xpose.msra.mxu0 0.0
    %1145 = vmatprep.subr.mxu0 0.0
    %1146 = vmatpush1.xpose.msra.mxu0 0.0
    %1147 = vmatprep.subr.mxu0 0.0
    %1148 = vmatpush1.xpose.msra.mxu0 0.0
    %1149 = vmatprep.subr.mxu0 0.0
    %1150 = vmatpush1.xpose.msra.mxu0 0.0
    %1151 = vmatprep.subr.mxu0 0.0
    %1152 = vmatpush1.xpose.msra.mxu0 0.0
    %1153 = vmatprep.subr.mxu0 0.0
    %1154 = vmatpush1.xpose.msra.mxu0 0.0
    %1155 = vmatprep.subr.mxu0 0.0
    %1156 = vmatpush1.xpose.msra.mxu0 0.0
    %1157 = vmatprep.subr.mxu0 0.0
    %1158 = vmatpush1.xpose.msra.mxu0 0.0
    %1159 = vmatprep.subr.mxu0 0.0
    %1160 = vmatpush1.xpose.msra.mxu0 0.0
    %1161 = vmatprep.subr.mxu0 0.0
    %1162 = vmatpush1.xpose.msra.mxu0 0.0
    %1163 = vmatprep.subr.mxu0 0.0
    %1164 = vmatpush1.xpose.msra.mxu0 0.0
    %1165 = vmatprep.subr.mxu0 0.0
    %1166 = vmatpush1.xpose.msra.mxu0 0.0
    %1167 = vmatprep.subr.mxu0 0.0
    %1168 = vmatpush1.xpose.msra.mxu0 0.0
    %1169 = vmatprep.subr.mxu0 0.0
    %1170 = vmatpush1.xpose.msra.mxu0 0.0
    %1171 = vmatprep.subr.mxu0 0.0
    %1172 = vmatpush1.xpose.msra.mxu0 0.0
    %1173 = vmatprep.subr.mxu0 0.0
    %1174 = vmatpush1.xpose.msra.mxu0 0.0
    %1175 = vmatprep.subr.mxu0 0.0
    %1176 = vmatpush1.xpose.msra.mxu0 0.0
    %1177 = vmatprep.subr.mxu0 0.0
    %1178 = vmatpush1.xpose.msra.mxu0 0.0
    %1179 = vmatprep.subr.mxu0 0.0
    %1180 = vmatpush1.xpose.msra.mxu0 0.0
    %1181 = vmatprep.subr.mxu0 0.0
    %1182 = vmatpush1.xpose.msra.mxu0 0.0
    %1183 = vmatprep.subr.mxu0 0.0
    %1184 = vmatpush1.xpose.msra.mxu0 0.0
    %1185 = vmatprep.subr.mxu0 0.0
    %1186 = vmatpush1.xpose.msra.mxu0 0.0
    %1187 = vmatprep.subr.mxu0 0.0
    %1188 = vmatpush1.xpose.msra.mxu0 0.0
    %1189 = vmatprep.subr.mxu0 0.0
    %1190 = vmatpush1.xpose.msra.mxu0 0.0
    %1191 = vmatprep.subr.mxu0 0.0
    %1192 = vmatpush1.xpose.msra.mxu0 0.0
    %1193 = vmatprep.subr.mxu0 0.0
    %1194 = vmatpush1.xpose.msra.mxu0 0.0
    %1195 = vmatprep.subr.mxu0 0.0
    %1196 = vmatpush1.xpose.msra.mxu0 0.0
    %1197 = vmatprep.subr.mxu0 0.0
    %1198 = vmatpush1.xpose.msra.mxu0 0.0
    %1199 = vmatprep.mubr.f32.mxu0 0.0
    %1200 = vmatmul.mubr.f32.gmra.mrb[0].mxu0 %v1131
    %v1201 = vpop.f32.mrb[0].mxu0
    %v1202 = vadd.f32 0.0, %v1201
    %v1203 = vpop.f32.mrb[0].mxu0
    %1204 = vdwg.mxu0
    %1205 = vrot.lane.b32.xlu0 %v135, 104
    %v1206 = vpop.permute.xlu0 %1205
    %1207 = vrot.lane.b32.xlu0 %v135, 72
    %v1208 = vpop.permute.xlu0 %1207
    %v1209 = vsel %vm141, %v1206, 0
    %v1211 = vsel %vm141, %v1208, 0
    %1213 = vmatprep.subr.mxu0 0.0
    %1214 = vmatpush1.xpose.msra.mxu0 %v1211
    %1215 = vmatprep.subr.mxu0 0.0
    %1216 = vmatpush1.xpose.msra.mxu0 0.0
    %1217 = vmatprep.subr.mxu0 0.0
    %1218 = vmatpush1.xpose.msra.mxu0 0.0
    %1219 = vmatprep.subr.mxu0 0.0
    %1220 = vmatpush1.xpose.msra.mxu0 0.0
    %1221 = vmatprep.subr.mxu0 0.0
    %1222 = vmatpush1.xpose.msra.mxu0 0.0
    %1223 = vmatprep.subr.mxu0 0.0
    %1224 = vmatpush1.xpose.msra.mxu0 0.0
    %1225 = vmatprep.subr.mxu0 0.0
    %1226 = vmatpush1.xpose.msra.mxu0 0.0
    %1227 = vmatprep.subr.mxu0 0.0
    %1228 = vmatpush1.xpose.msra.mxu0 0.0
    %1229 = vmatprep.subr.mxu0 0.0
    %1230 = vmatpush1.xpose.msra.mxu0 0.0
    %1231 = vmatprep.subr.mxu0 0.0
    %1232 = vmatpush1.xpose.msra.mxu0 0.0
    %1233 = vmatprep.subr.mxu0 0.0
    %1234 = vmatpush1.xpose.msra.mxu0 0.0
    %1235 = vmatprep.subr.mxu0 0.0
    %1236 = vmatpush1.xpose.msra.mxu0 0.0
    %1237 = vmatprep.subr.mxu0 0.0
    %1238 = vmatpush1.xpose.msra.mxu0 0.0
    %1239 = vmatprep.subr.mxu0 0.0
    %1240 = vmatpush1.xpose.msra.mxu0 0.0
    %1241 = vmatprep.subr.mxu0 0.0
    %1242 = vmatpush1.xpose.msra.mxu0 0.0
    %1243 = vmatprep.subr.mxu0 0.0
    %1244 = vmatpush1.xpose.msra.mxu0 0.0
    %1245 = vmatprep.subr.mxu0 0.0
    %1246 = vmatpush1.xpose.msra.mxu0 0.0
    %1247 = vmatprep.subr.mxu0 0.0
    %1248 = vmatpush1.xpose.msra.mxu0 0.0
    %1249 = vmatprep.subr.mxu0 0.0
    %1250 = vmatpush1.xpose.msra.mxu0 0.0
    %1251 = vmatprep.subr.mxu0 0.0
    %1252 = vmatpush1.xpose.msra.mxu0 0.0
    %1253 = vmatprep.subr.mxu0 0.0
    %1254 = vmatpush1.xpose.msra.mxu0 0.0
    %1255 = vmatprep.subr.mxu0 0.0
    %1256 = vmatpush1.xpose.msra.mxu0 0.0
    %1257 = vmatprep.subr.mxu0 0.0
    %1258 = vmatpush1.xpose.msra.mxu0 0.0
    %1259 = vmatprep.subr.mxu0 0.0
    %1260 = vmatpush1.xpose.msra.mxu0 0.0
    %1261 = vmatprep.subr.mxu0 0.0
    %1262 = vmatpush1.xpose.msra.mxu0 0.0
    %1263 = vmatprep.subr.mxu0 0.0
    %1264 = vmatpush1.xpose.msra.mxu0 0.0
    %1265 = vmatprep.subr.mxu0 0.0
    %1266 = vmatpush1.xpose.msra.mxu0 0.0
    %1267 = vmatprep.subr.mxu0 0.0
    %1268 = vmatpush1.xpose.msra.mxu0 0.0
    %1269 = vmatprep.subr.mxu0 0.0
    %1270 = vmatpush1.xpose.msra.mxu0 0.0
    %1271 = vmatprep.subr.mxu0 0.0
    %1272 = vmatpush1.xpose.msra.mxu0 0.0
    %1273 = vmatprep.subr.mxu0 0.0
    %1274 = vmatpush1.xpose.msra.mxu0 0.0
    %1275 = vmatprep.subr.mxu0 0.0
    %1276 = vmatpush1.xpose.msra.mxu0 0.0
    %1277 = vmatprep.mubr.f32.mxu0 0.0
    %1278 = vmatmul.mubr.f32.gmra.mrb[0].mxu0 %v1209
    %v1279 = vpop.f32.mrb[0].mxu0
    %v1280 = vadd.f32 0.0, %v1279
    %v1281 = vpop.f32.mrb[0].mxu0
    %1282 = vdwg.mxu0
    %v1283 = vsel %vm141, %v1202, -inf
    %1284 = vmax.xlane.f32.xlu0 %v1283
    %v1285 = vpop.xlane.xlu0 %1284
    %v1286 = vsel %vm141, %v1280, -inf
    %1287 = vmax.xlane.f32.xlu0 %v1286
    %v1288 = vpop.xlane.xlu0 %1287
    %v1289 = vsub.f32 %v1202, %v1285
    %v1290 = vsub.f32 %v1280, %v1288
    %v1291 = vmul.f32 %v1289, 1.442695
    %v1292 = vpow.pop %v1291
    %v1293 = vmul.f32 %v1290, 1.442695
    %v1294 = vpow.pop %v1293
    %v1295 = vsel %vm141, %v1292, 0.0
    %1296 = vadd.xlane.f32.xlu0 %v1295
    %v1297 = vpop.xlane.xlu0 %1296
    %v1298 = vsel %vm141, %v1294, 0.0
    %1299 = vadd.xlane.f32.xlu0 %v1298
    %v1300 = vpop.xlane.xlu0 %1299
    %v1301 = vrcp.pop %v1297
    %v1302 = vrcp.pop %v1300
    %v1303 = vmul.f32 %v1292, %v1301
    %v1304 = vmul.f32 %v1294, %v1302
    %1305 = vrot.lane.b32.xlu0 %v130, 40
    %v1306 = vpop.permute.xlu0 %1305
    %v1309 = vsel %vm141, %v1303, 0
    %1311 = vmatprep.subr.mxu0 0.0
    %1312 = vmatpush1.msra.mxu0 %v1306
    %1313 = vmatprep.subr.mxu0 0.0
    %1314 = vmatpush1.msra.mxu0 0.0
    %1315 = vmatprep.subr.mxu0 0.0
    %1316 = vmatpush1.msra.mxu0 0.0
    %1317 = vmatprep.subr.mxu0 0.0
    %1318 = vmatpush1.msra.mxu0 0.0
    %1319 = vmatprep.subr.mxu0 0.0
    %1320 = vmatpush1.msra.mxu0 0.0
    %1321 = vmatprep.subr.mxu0 0.0
    %1322 = vmatpush1.msra.mxu0 0.0
    %1323 = vmatprep.subr.mxu0 0.0
    %1324 = vmatpush1.msra.mxu0 0.0
    %1325 = vmatprep.subr.mxu0 0.0
    %1326 = vmatpush1.msra.mxu0 0.0
    %1327 = vmatprep.subr.mxu0 0.0
    %1328 = vmatpush1.msra.mxu0 0.0
    %1329 = vmatprep.subr.mxu0 0.0
    %1330 = vmatpush1.msra.mxu0 0.0
    %1331 = vmatprep.subr.mxu0 0.0
    %1332 = vmatpush1.msra.mxu0 0.0
    %1333 = vmatprep.subr.mxu0 0.0
    %1334 = vmatpush1.msra.mxu0 0.0
    %1335 = vmatprep.subr.mxu0 0.0
    %1336 = vmatpush1.msra.mxu0 0.0
    %1337 = vmatprep.subr.mxu0 0.0
    %1338 = vmatpush1.msra.mxu0 0.0
    %1339 = vmatprep.subr.mxu0 0.0
    %1340 = vmatpush1.msra.mxu0 0.0
    %1341 = vmatprep.subr.mxu0 0.0
    %1342 = vmatpush1.msra.mxu0 0.0
    %1343 = vmatprep.subr.mxu0 0.0
    %1344 = vmatpush1.msra.mxu0 0.0
    %1345 = vmatprep.subr.mxu0 0.0
    %1346 = vmatpush1.msra.mxu0 0.0
    %1347 = vmatprep.subr.mxu0 0.0
    %1348 = vmatpush1.msra.mxu0 0.0
    %1349 = vmatprep.subr.mxu0 0.0
    %1350 = vmatpush1.msra.mxu0 0.0
    %1351 = vmatprep.subr.mxu0 0.0
    %1352 = vmatpush1.msra.mxu0 0.0
    %1353 = vmatprep.subr.mxu0 0.0
    %1354 = vmatpush1.msra.mxu0 0.0
    %1355 = vmatprep.subr.mxu0 0.0
    %1356 = vmatpush1.msra.mxu0 0.0
    %1357 = vmatprep.subr.mxu0 0.0
    %1358 = vmatpush1.msra.mxu0 0.0
    %1359 = vmatprep.subr.mxu0 0.0
    %1360 = vmatpush1.msra.mxu0 0.0
    %1361 = vmatprep.subr.mxu0 0.0
    %1362 = vmatpush1.msra.mxu0 0.0
    %1363 = vmatprep.subr.mxu0 0.0
    %1364 = vmatpush1.msra.mxu0 0.0
    %1365 = vmatprep.subr.mxu0 0.0
    %1366 = vmatpush1.msra.mxu0 0.0
    %1367 = vmatprep.subr.mxu0 0.0
    %1368 = vmatpush1.msra.mxu0 0.0
    %1369 = vmatprep.subr.mxu0 0.0
    %1370 = vmatpush1.msra.mxu0 0.0
    %1371 = vmatprep.subr.mxu0 0.0
    %1372 = vmatpush1.msra.mxu0 0.0
    %1373 = vmatprep.subr.mxu0 0.0
    %1374 = vmatpush1.msra.mxu0 0.0
    %1375 = vmatprep.mubr.f32.mxu0 0.0
    %1376 = vmatmul.mubr.f32.gmra.mrb[0].mxu0 %v1309
    %v1377 = vpop.f32.mrb[0].mxu0
    %v1378 = vadd.f32 0.0, %v1377
    %v1379 = vpop.f32.mrb[0].mxu0
    %1380 = vdwg.mxu0
    %1381 = vrot.lane.b32.xlu0 %v135, 40
    %v1382 = vpop.permute.xlu0 %1381
    %v1385 = vsel %vm141, %v1304, 0
    %1387 = vmatprep.subr.mxu0 0.0
    %1388 = vmatpush1.msra.mxu0 %v1382
    %1389 = vmatprep.subr.mxu0 0.0
    %1390 = vmatpush1.msra.mxu0 0.0
    %1391 = vmatprep.subr.mxu0 0.0
    %1392 = vmatpush1.msra.mxu0 0.0
    %1393 = vmatprep.subr.mxu0 0.0
    %1394 = vmatpush1.msra.mxu0 0.0
    %1395 = vmatprep.subr.mxu0 0.0
    %1396 = vmatpush1.msra.mxu0 0.0
    %1397 = vmatprep.subr.mxu0 0.0
    %1398 = vmatpush1.msra.mxu0 0.0
    %1399 = vmatprep.subr.mxu0 0.0
    %1400 = vmatpush1.msra.mxu0 0.0
    %1401 = vmatprep.subr.mxu0 0.0
    %1402 = vmatpush1.msra.mxu0 0.0
    %1403 = vmatprep.subr.mxu0 0.0
    %1404 = vmatpush1.msra.mxu0 0.0
    %1405 = vmatprep.subr.mxu0 0.0
    %1406 = vmatpush1.msra.mxu0 0.0
    %1407 = vmatprep.subr.mxu0 0.0
    %1408 = vmatpush1.msra.mxu0 0.0
    %1409 = vmatprep.subr.mxu0 0.0
    %1410 = vmatpush1.msra.mxu0 0.0
    %1411 = vmatprep.subr.mxu0 0.0
    %1412 = vmatpush1.msra.mxu0 0.0
    %1413 = vmatprep.subr.mxu0 0.0
    %1414 = vmatpush1.msra.mxu0 0.0
    %1415 = vmatprep.subr.mxu0 0.0
    %1416 = vmatpush1.msra.mxu0 0.0
    %1417 = vmatprep.subr.mxu0 0.0
    %1418 = vmatpush1.msra.mxu0 0.0
    %1419 = vmatprep.subr.mxu0 0.0
    %1420 = vmatpush1.msra.mxu0 0.0
    %1421 = vmatprep.subr.mxu0 0.0
    %1422 = vmatpush1.msra.mxu0 0.0
    %1423 = vmatprep.subr.mxu0 0.0
    %1424 = vmatpush1.msra.mxu0 0.0
    %1425 = vmatprep.subr.mxu0 0.0
    %1426 = vmatpush1.msra.mxu0 0.0
    %1427 = vmatprep.subr.mxu0 0.0
    %1428 = vmatpush1.msra.mxu0 0.0
    %1429 = vmatprep.subr.mxu0 0.0
    %1430 = vmatpush1.msra.mxu0 0.0
    %1431 = vmatprep.subr.mxu0 0.0
    %1432 = vmatpush1.msra.mxu0 0.0
    %1433 = vmatprep.subr.mxu0 0.0
    %1434 = vmatpush1.msra.mxu0 0.0
    %1435 = vmatprep.subr.mxu0 0.0
    %1436 = vmatpush1.msra.mxu0 0.0
    %1437 = vmatprep.subr.mxu0 0.0
    %1438 = vmatpush1.msra.mxu0 0.0
    %1439 = vmatprep.subr.mxu0 0.0
    %1440 = vmatpush1.msra.mxu0 0.0
    %1441 = vmatprep.subr.mxu0 0.0
    %1442 = vmatpush1.msra.mxu0 0.0
    %1443 = vmatprep.subr.mxu0 0.0
    %1444 = vmatpush1.msra.mxu0 0.0
    %1445 = vmatprep.subr.mxu0 0.0
    %1446 = vmatpush1.msra.mxu0 0.0
    %1447 = vmatprep.subr.mxu0 0.0
    %1448 = vmatpush1.msra.mxu0 0.0
    %1449 = vmatprep.subr.mxu0 0.0
    %1450 = vmatpush1.msra.mxu0 0.0
    %1451 = vmatprep.mubr.f32.mxu0 0.0
    %1452 = vmatmul.mubr.f32.gmra.mrb[0].mxu0 %v1385
    %v1453 = vpop.f32.mrb[0].mxu0
    %v1454 = vadd.f32 0.0, %v1453
    %v1455 = vpop.f32.mrb[0].mxu0
    %1456 = vdwg.mxu0
    %1459 = vrot.lane.b32.xlu0 %v718, 8
    %v1460 = vpop.permute.xlu0 %1459
    %1461 = vrot.lane.b32.xlu0 %v794, 8
    %v1462 = vpop.permute.xlu0 %1461
    %1467 = vrot.lane.b32.xlu0 %v1048, 16
    %v1468 = vpop.permute.xlu0 %1467
    %1469 = vrot.lane.b32.xlu0 %v1124, 16
    %v1470 = vpop.permute.xlu0 %1469
    %1475 = vrot.lane.b32.xlu0 %v1378, 24
    %v1476 = vpop.permute.xlu0 %1475
    %1477 = vrot.lane.b32.xlu0 %v1454, 24
    %v1478 = vpop.permute.xlu0 %1477
    %v1481 = vsel %vm141, %v388, %v1460
    %v1482 = vsel %vm141, %v464, %v1462
    %vm1483 = vcmask 130048
    %v1484 = vsel %vm1483, %v1481, %v1468
    %v1485 = vsel %vm1483, %v1482, %v1470
    %vm1486 = vcmask 195584
    %v1487 = vsel %vm1486, %v1484, %v1476
    %v1488 = vsel %vm1486, %v1485, %v1478
    %1489 = vst.msk [vmem:[#allocation7] sm:$0xff] %vm56, %v1487
    %1490 = vst.msk [vmem:[#allocation7 + $0x8] sm:$0xff] %vm56, %v1488
    // Predicated region
    $region22: #{tpu_custom_call.1} parent=1 // pred_check
      _
    $region23: #{tpu_custom_call.1} parent=1 // pred_check_branch
      %1492 = sbr.rel (0) target = $region25
    $region24: #{tpu_custom_call.1} parent=1 // pred_region
      %s1494 = ssub.s32 256, 256
      %1495 = vsyncadd [#allocation4], %s1494
      %s1496 = sshll.u32 [#allocation7], 4
      %s1497 = int_to_ptr.vmem [resolvable:$true] %s1496
      %1502 = dma.vmem_to_hbm [thread:$0]  %s1497, 256, %s3, [#allocation4], 128, 128, 8
    $region25: #{tpu_custom_call.1} parent=1 // pred_fallthru
      _
    // Predicated region
    $region26: #{tpu_custom_call.1} parent=1 // pred_check
      _
    $region27: #{tpu_custom_call.1} parent=1 // pred_check_branch
      %1504 = sbr.rel (0) target = $region29
    $region28: #{tpu_custom_call.1} parent=1 // pred_region
      %1505 = dma.done [#allocation4], 256
    $region29: #{tpu_custom_call.1} parent=1 // pred_fallthru
      _
    %1506 = vsyncpa [#allocation3], 1
    %1507 = vsyncpa [#allocation6], 1
    %1508 = vsyncpa [#allocation4], 1

</llo_original>
